<compile_context>
chip_gen: v7x
topology: tpu7x:2x2x1
jax: 0.10.0
libtpu: 0.0.40
codegen_flags: <defaults>
</compile_context>

<pallas_src>
import numpy as np
import jax
import jax.numpy as jnp
from jax.experimental import pallas as pl
from jax.experimental.pallas import tpu as pltpu

NEG_INF = float("-inf")

PARAM_NAMES = (
    "ln_v_w", "ln_v_b", "ln_l_w", "ln_l_b",
    "w_q", "b_q", "w_k", "b_k",
    "w_vv", "b_vv", "w_vl", "b_vl",
    "w_ov", "b_ov", "w_ol", "b_ol",
    "gamma_v", "gamma_l",
)

# Packed per-layer parameter layout:
#   vec_d : (L, 8, D)    rows = [ln_v_w, ln_v_b, ln_l_w, ln_l_b,
#                                b_ov, b_ol, gamma_v, gamma_l]
#   vec_e : (L, 4, E)    rows = [b_q, b_k, b_vv, b_vl]
#   w_in  : (L, 4, D, E)       = [w_q, w_k, w_vv, w_vl]
#   w_out : (L, 2, E, D)       = [w_ov, w_ol]


def make_fusion_kernel(num_heads, head_dim, B, TV, TL, D, E):
    """All BiAttentionBlock layers, one kernel body invoked per grid step."""
    scale = float(head_dim) ** -0.5
    f32 = jnp.float32
    bf16 = jnp.bfloat16

    def kernel(v_in_ref, l_in_ref, mv_ref, ml_ref,
               vec_d_ref, vec_e_ref, w_in_ref, w_out_ref,
               out_v_ref, out_l_ref):
        li = pl.program_id(0)

        # Seed the VMEM-resident activation blocks from the inputs at layer 0.
        @pl.when(li == 0)
        def _():
            out_v_ref[...] = v_in_ref[...]
            out_l_ref[...] = l_in_ref[...]

        v = out_v_ref[...].astype(f32)        # (B, TV, D) carried activation
        l = out_l_ref[...].astype(f32)        # (B, TL, D)

        vec_d = vec_d_ref[0]                  # (8, D)
        vec_e = vec_e_ref[0]                  # (4, E)
        w_in = w_in_ref[0]                    # (4, D, E)
        w_out = w_out_ref[0]                  # (2, E, D)

        def layer_norm(x, w, b):
            mu = jnp.mean(x, axis=-1, keepdims=True)
            xc = x - mu
            var = jnp.mean(xc * xc, axis=-1, keepdims=True)
            return xc * jax.lax.rsqrt(var + 1e-5) * w + b

        vn = layer_norm(v, vec_d[0:1], vec_d[1:2])        # (B, TV, D)
        lnl = layer_norm(l, vec_d[2:3], vec_d[3:4])       # (B, TL, D)

        vn_b = vn.astype(bf16)
        lnl_b = lnl.astype(bf16)

        def linear(x_b, T, w_idx, b_idx):
            w = w_in[w_idx].astype(bf16)                  # (D, E)
            y = jnp.dot(x_b.reshape(B * T, D), w,
                        preferred_element_type=f32).reshape(B, T, E)
            return y + vec_e[b_idx:b_idx + 1]

        q = linear(vn_b, TV, 0, 0) * scale                # (B, TV, E)
        k = linear(lnl_b, TL, 1, 1)                       # (B, TL, E)
        val_v = linear(vn_b, TV, 2, 2)                    # (B, TV, E)
        val_l = linear(lnl_b, TL, 3, 3)                   # (B, TL, E)

        q_b = q.astype(bf16)
        k_b = k.astype(bf16)
        val_v_b = val_v.astype(bf16)
        val_l_b = val_l.astype(bf16)

        # Mask biases hoisted out of the per-head loop (1.0 == padding).
        mv = mv_ref[...]                                  # (B, TV)
        ml = ml_ref[...]                                  # (B, TL)
        bias_v = jnp.broadcast_to(
            jnp.where(mv > 0, NEG_INF, 0.0)[:, None, :], (B, TL, TV))
        bias_l = jnp.broadcast_to(
            jnp.where(ml > 0, NEG_INF, 0.0)[:, None, :], (B, TV, TL))

        # Per-head raw scores (H is tiny; python-unrolled, K=head_dim contraction).
        scores = []
        for h in range(num_heads):
            hs = slice(h * head_dim, (h + 1) * head_dim)
            s = jnp.einsum("btd,bsd->bts", q_b[:, :, hs], k_b[:, :, hs],
                           preferred_element_type=f32)    # (B, TV, TL)
            scores.append(s)

        # stable_softmax_2d: global max over ALL batches and heads.
        gmax = jnp.max(scores[0])
        for h in range(1, num_heads):
            gmax = jnp.maximum(gmax, jnp.max(scores[h]))

        def softmax_last(x):
            m = jnp.max(x, axis=-1, keepdims=True)
            e = jnp.exp(x - m)
            return e / jnp.sum(e, axis=-1, keepdims=True)

        o_v_heads = []
        o_l_heads = []
        for h in range(num_heads):
            hs = slice(h * head_dim, (h + 1) * head_dim)
            s = jnp.clip(scores[h] - gmax, -50000.0, 50000.0)   # (B, TV, TL)

            # language-query direction (keys = vision positions)
            s_t = jnp.swapaxes(s, 1, 2)                         # (B, TL, TV)
            s_l = s_t - jnp.max(s_t, axis=-1, keepdims=True)
            s_l = jnp.clip(s_l, -50000.0, 50000.0) + bias_v
            p_l = softmax_last(s_l)                             # (B, TL, TV)

            # vision-query direction (keys = text positions)
            p_v = softmax_last(s + bias_l)                      # (B, TV, TL)

            # dropout is identity (eval mode)
            o_v_heads.append(jnp.einsum(
                "bts,bsh->bth", p_v.astype(bf16), val_l_b[:, :, hs],
                preferred_element_type=f32))                    # (B, TV, hd)
            o_l_heads.append(jnp.einsum(
                "bst,bth->bsh", p_l.astype(bf16), val_v_b[:, :, hs],
                preferred_element_type=f32))                    # (B, TL, hd)

        # concat over heads + single out-projection matmul per direction
        o_v = jnp.concatenate(o_v_heads, axis=-1).astype(bf16)  # (B, TV, E)
        o_l = jnp.concatenate(o_l_heads, axis=-1).astype(bf16)  # (B, TL, E)

        w_ov = w_out[0].astype(bf16)                            # (E, D)
        w_ol = w_out[1].astype(bf16)                            # (E, D)

        delta_v = jnp.dot(o_v.reshape(B * TV, E), w_ov,
                          preferred_element_type=f32).reshape(B, TV, D)
        delta_l = jnp.dot(o_l.reshape(B * TL, E), w_ol,
                          preferred_element_type=f32).reshape(B, TL, D)
        delta_v = delta_v + vec_d[4:5]                          # + b_ov
        delta_l = delta_l + vec_d[5:6]                          # + b_ol

        out_v_ref[...] = (vn + vec_d[6:7] * delta_v).astype(out_v_ref.dtype)
        out_l_ref[...] = (lnl + vec_d[7:8] * delta_l).astype(out_l_ref.dtype)

    return kernel


def make_vl_bi_encoder(B, TV, TL, D, E, num_heads, num_layers):
    head_dim = E // num_heads
    kernel = make_fusion_kernel(num_heads, head_dim, B, TV, TL, D, E)

    grid_spec = pltpu.PrefetchScalarGridSpec(
        num_scalar_prefetch=0,
        grid=(num_layers,),
        in_specs=[
            pl.BlockSpec((B, TV, D), lambda li: (0, 0, 0)),       # v (resident)
            pl.BlockSpec((B, TL, D), lambda li: (0, 0, 0)),       # l (resident)
            pl.BlockSpec((B, TV), lambda li: (0, 0)),             # mask_v
            pl.BlockSpec((B, TL), lambda li: (0, 0)),             # mask_l
            pl.BlockSpec((1, 8, D), lambda li: (li, 0, 0)),       # vec_d
            pl.BlockSpec((1, 4, E), lambda li: (li, 0, 0)),       # vec_e
            pl.BlockSpec((1, 4, D, E), lambda li: (li, 0, 0, 0)),  # w_in
            pl.BlockSpec((1, 2, E, D), lambda li: (li, 0, 0, 0)),  # w_out
        ],
        out_specs=(
            # Constant block index across the layer axis -> activations stay
            # resident in VMEM for the whole grid, written back to HBM once.
            pl.BlockSpec((B, TV, D), lambda li: (0, 0, 0)),
            pl.BlockSpec((B, TL, D), lambda li: (0, 0, 0)),
        ),
    )

    return pl.pallas_call(
        kernel,
        out_shape=(jax.ShapeDtypeStruct((B, TV, D), jnp.float32),
                   jax.ShapeDtypeStruct((B, TL, D), jnp.float32)),
        grid_spec=grid_spec,
        compiler_params=pltpu.CompilerParams(
            dimension_semantics=("arbitrary",)),
    )


def vision_language_bi_encoder(vision_embeds, text_embeds,
                               vision_attention_mask, text_attention_mask,
                               packed_params, num_heads, num_layers):
    B, TV, D = vision_embeds.shape
    TL = text_embeds.shape[1]
    vec_d, vec_e, w_in, w_out = packed_params
    E = vec_e.shape[-1]
    encoder = make_vl_bi_encoder(B, TV, TL, D, E, num_heads, num_layers)
    return encoder(vision_embeds, text_embeds,
                   vision_attention_mask, text_attention_mask,
                   vec_d, vec_e, w_in, w_out)
    # TODO(synk): DeformableDetrEncoderLayer / get_reference_points were not
    # provided as dependent classes; the per-layer deformable step is identity.


# ----------------------- deterministic parameter init -----------------------

def init_params(key, d_model, ffn_dim, num_layers):
    E = ffn_dim // 2
    D = d_model
    layers = []
    for li in range(num_layers):
        ks = jax.random.split(jax.random.fold_in(key, li), 11)

        def nrm(kk, shape, s=0.05):
            return s * jax.random.normal(kk, shape, dtype=jnp.float32)

        p = dict(
            ln_v_w=jnp.ones((1, D), jnp.float32), ln_v_b=jnp.zeros((1, D), jnp.float32),
            ln_l_w=jnp.ones((1, D), jnp.float32), ln_l_b=jnp.zeros((1, D), jnp.float32),
            w_q=nrm(ks[0], (D, E)),  b_q=nrm(ks[1], (1, E)),
            w_k=nrm(ks[2], (D, E)),  b_k=nrm(ks[3], (1, E)),
            w_vv=nrm(ks[4], (D, E)), b_vv=nrm(ks[5], (1, E)),
            w_vl=nrm(ks[6], (D, E)), b_vl=nrm(ks[7], (1, E)),
            w_ov=nrm(ks[8], (E, D)), b_ov=nrm(ks[9], (1, D)),
            w_ol=nrm(ks[10], (E, D)),
            b_ol=jnp.zeros((1, D), jnp.float32),            # out_l_proj.bias.fill_(0)
            gamma_v=jnp.full((1, D), 1e-4, jnp.float32),    # init_values
            gamma_l=jnp.full((1, D), 1e-4, jnp.float32),
        )
        layers.append(p)
    return layers


def pack_params(layers):
    """Pack the 18 per-layer tensors into 4 stacked arrays (see layout above)."""
    vec_d = jnp.stack([jnp.concatenate(
        [p["ln_v_w"], p["ln_v_b"], p["ln_l_w"], p["ln_l_b"],
         p["b_ov"], p["b_ol"], p["gamma_v"], p["gamma_l"]], axis=0)
        for p in layers])                                      # (L, 8, D)
    vec_e = jnp.stack([jnp.concatenate(
        [p["b_q"], p["b_k"], p["b_vv"], p["b_vl"]], axis=0)
        for p in layers])                                      # (L, 4, E)
    w_in = jnp.stack([jnp.stack(
        [p["w_q"], p["w_k"], p["w_vv"], p["w_vl"]], axis=0)
        for p in layers])                                      # (L, 4, D, E)
    w_out = jnp.stack([jnp.stack(
        [p["w_ov"], p["w_ol"]], axis=0)
        for p in layers])                                      # (L, 2, E, D)
    return vec_d, vec_e, w_in, w_out


# ------------------------- pure-JAX reference (check) ------------------------

def _reference_block(v, l, mask_v, mask_l, p, num_heads, head_dim):
    scale = float(head_dim) ** -0.5
    B, TV, D = v.shape
    TL = l.shape[1]
    E = num_heads * head_dim

    def ln(x, w, b):
        mu = x.mean(-1, keepdims=True)
        var = ((x - mu) ** 2).mean(-1, keepdims=True)
        return (x - mu) / jnp.sqrt(var + 1e-5) * w + b

    vn = ln(v, p["ln_v_w"], p["ln_v_b"])
    lnl = ln(l, p["ln_l_w"], p["ln_l_b"])

    q = (vn @ p["w_q"] + p["b_q"]) * scale
    k = lnl @ p["w_k"] + p["b_k"]
    vv = vn @ p["w_vv"] + p["b_vv"]
    vl = lnl @ p["w_vl"] + p["b_vl"]

    def heads(x, T):
        return x.reshape(B, T, num_heads, head_dim).transpose(0, 2, 1, 3) \
                .reshape(B * num_heads, T, head_dim)

    qh, kh = heads(q, TV), heads(k, TL)
    vvh, vlh = heads(vv, TV), heads(vl, TL)

    s = jnp.einsum("bij,bkj->bik", qh, kh)          # (B*H, TV, TL)
    s = jnp.clip(s - s.max(), -50000.0, 50000.0)
    s_t = jnp.swapaxes(s, 1, 2)
    s_l = jnp.clip(s_t - s_t.max(-1, keepdims=True), -50000.0, 50000.0)

    mv = jnp.repeat(mask_v[:, None, None, :], num_heads, 1).reshape(B * num_heads, 1, TV)
    mlm = jnp.repeat(mask_l[:, None, None, :], num_heads, 1).reshape(B * num_heads, 1, TL)
    s_l = jnp.where(mv > 0, -jnp.inf, s_l)
    p_l = jax.nn.softmax(s_l, axis=-1)
    s_v = jnp.where(mlm > 0, -jnp.inf, s)
    p_v = jax.nn.softmax(s_v, axis=-1)

    o_v = jnp.einsum("bij,bjk->bik", p_v, vlh)
    o_l = jnp.einsum("bij,bjk->bik", p_l, vvh)

    def unheads(x, T):
        return x.reshape(B, num_heads, T, head_dim).transpose(0, 2, 1, 3).reshape(B, T, E)

    delta_v = unheads(o_v, TV) @ p["w_ov"] + p["b_ov"]
    delta_l = unheads(o_l, TL) @ p["w_ol"] + p["b_ol"]
    return vn + p["gamma_v"] * delta_v, lnl + p["gamma_l"] * delta_l


# ---------------------------------- main -------------------------------------

if __name__ == "__main__":
    # config: d_model=32, encoder_ffn_dim=64 -> embed_dim=32,
    # encoder_attention_heads=4 -> fusion heads=2 (head_dim=16), encoder_layers=2
    B, TV, TL = 2, 32, 8
    D_MODEL, FFN_DIM, HEADS_CFG, LAYERS = 32, 64, 4, 2
    E = FFN_DIM // 2
    H = HEADS_CFG // 2
    HD = E // H

    key = jax.random.PRNGKey(0)
    kv, kt = jax.random.split(key)
    vision_embeds = jax.random.normal(kv, (B, TV, D_MODEL), dtype=jnp.float32)
    text_embeds = jax.random.normal(kt, (B, TL, D_MODEL), dtype=jnp.float32)

    # masks: 1.0 == padded position (gets -inf, as in torch masked_fill_)
    vision_attention_mask = jnp.zeros((B, TV), jnp.float32).at[0, TV - 4:].set(1.0)
    text_attention_mask = jnp.zeros((B, TL), jnp.float32).at[1, TL - 2:].set(1.0)

    params = init_params(jax.random.PRNGKey(42), D_MODEL, FFN_DIM, LAYERS)
    packed = pack_params(params)

    out_v, out_l = vision_language_bi_encoder(
        vision_embeds, text_embeds, vision_attention_mask, text_attention_mask,
        packed, H, LAYERS)
    jax.block_until_ready((out_v, out_l))

    # pure-JAX reference of the same fusion-layer stack
    rv, rl = vision_embeds, text_embeds
    for p in params:
        rv, rl = _reference_block(rv, rl, vision_attention_mask, text_attention_mask,
                                  p, H, HD)

    np.testing.assert_allclose(np.asarray(out_v), np.asarray(rv), rtol=2e-3, atol=2e-3)
    np.testing.assert_allclose(np.asarray(out_l), np.asarray(rl), rtol=2e-3, atol=2e-3)
    assert np.all(np.isfinite(np.asarray(out_v))) and np.all(np.isfinite(np.asarray(out_l)))
    print("KERNEL_OK")
</pallas_src>

<mosaic_0001>
module attributes {stable_mosaic.version = 11 : i64} {
  func.func @kernel(%arg0: i32, %arg1: memref<2x32x32xf32, #tpu.memory_space<vmem>>, %arg2: memref<2x8x32xf32, #tpu.memory_space<vmem>>, %arg3: memref<2x32xf32, #tpu.memory_space<vmem>>, %arg4: memref<2x8xf32, #tpu.memory_space<vmem>>, %arg5: memref<1x8x32xf32, #tpu.memory_space<vmem>>, %arg6: memref<1x4x32xf32, #tpu.memory_space<vmem>>, %arg7: memref<1x4x32x32xf32, #tpu.memory_space<vmem>>, %arg8: memref<1x2x32x32xf32, #tpu.memory_space<vmem>>, %arg9: memref<2x32x32xf32, #tpu.memory_space<vmem>>, %arg10: memref<2x8x32xf32, #tpu.memory_space<vmem>>) attributes {dimension_semantics = [#tpu.dimension_semantics<arbitrary>], iteration_bounds = array<i64: 2>, scalar_prefetch = 0 : i64, scratch_operands = 0 : i64, tpu.core_type = #tpu.core_type<tc>, window_params = [{pipeline_mode = #tpu.pipeline_mode<synchronous>, transform_indices = @transform_0, window_bounds = array<i64: 2, 32, 32>}, {pipeline_mode = #tpu.pipeline_mode<synchronous>, transform_indices = @transform_1, window_bounds = array<i64: 2, 8, 32>}, {pipeline_mode = #tpu.pipeline_mode<synchronous>, transform_indices = @transform_2, window_bounds = array<i64: 2, 32>}, {pipeline_mode = #tpu.pipeline_mode<synchronous>, transform_indices = @transform_3, window_bounds = array<i64: 2, 8>}, {transform_indices = @transform_4, window_bounds = array<i64: 1, 8, 32>}, {transform_indices = @transform_5, window_bounds = array<i64: 1, 4, 32>}, {transform_indices = @transform_6, window_bounds = array<i64: 1, 4, 32, 32>}, {transform_indices = @transform_7, window_bounds = array<i64: 1, 2, 32, 32>}, {pipeline_mode = #tpu.pipeline_mode<synchronous>, transform_indices = @transform_8, window_bounds = array<i64: 2, 32, 32>}, {pipeline_mode = #tpu.pipeline_mode<synchronous>, transform_indices = @transform_9, window_bounds = array<i64: 2, 8, 32>}]} {
    %c0_i32 = arith.constant 0 : i32
    %0 = arith.cmpi eq, %arg0, %c0_i32 : i32
    %1 = arith.extui %0 : i1 to i32
    %c0_i32_0 = arith.constant 0 : i32
    %2 = arith.cmpi ne, %1, %c0_i32_0 : i32
    scf.if %2 {
      %c0_78 = arith.constant 0 : index
      %c0_79 = arith.constant 0 : index
      %c0_80 = arith.constant 0 : index
      %260 = vector.load %arg1[%c0_78, %c0_79, %c0_80] : memref<2x32x32xf32, #tpu.memory_space<vmem>>, vector<2x32x32xf32>
      %c0_81 = arith.constant 0 : index
      %c0_82 = arith.constant 0 : index
      %c0_83 = arith.constant 0 : index
      %261 = vector.load %arg9[%c0_81, %c0_82, %c0_83] : memref<2x32x32xf32, #tpu.memory_space<vmem>>, vector<2x32x32xf32>
      tpu.vector_store %arg9[%c0_81, %c0_82, %c0_83], %260 {strides = array<i32>} : memref<2x32x32xf32, #tpu.memory_space<vmem>>, vector<2x32x32xf32>,
      %c0_84 = arith.constant 0 : index
      %c0_85 = arith.constant 0 : index
      %c0_86 = arith.constant 0 : index
      %262 = vector.load %arg2[%c0_84, %c0_85, %c0_86] : memref<2x8x32xf32, #tpu.memory_space<vmem>>, vector<2x8x32xf32>
      %c0_87 = arith.constant 0 : index
      %c0_88 = arith.constant 0 : index
      %c0_89 = arith.constant 0 : index
      %263 = vector.load %arg10[%c0_87, %c0_88, %c0_89] : memref<2x8x32xf32, #tpu.memory_space<vmem>>, vector<2x8x32xf32>
      tpu.vector_store %arg10[%c0_87, %c0_88, %c0_89], %262 {strides = array<i32>} : memref<2x8x32xf32, #tpu.memory_space<vmem>>, vector<2x8x32xf32>,
    } else {
    }
    %c0 = arith.constant 0 : index
    %c0_1 = arith.constant 0 : index
    %c0_2 = arith.constant 0 : index
    %3 = vector.load %arg9[%c0, %c0_1, %c0_2] : memref<2x32x32xf32, #tpu.memory_space<vmem>>, vector<2x32x32xf32>
    %c0_3 = arith.constant 0 : index
    %c0_4 = arith.constant 0 : index
    %c0_5 = arith.constant 0 : index
    %4 = vector.load %arg10[%c0_3, %c0_4, %c0_5] : memref<2x8x32xf32, #tpu.memory_space<vmem>>, vector<2x8x32xf32>
    %c0_6 = arith.constant 0 : index
    %c0_7 = arith.constant 0 : index
    %c0_8 = arith.constant 0 : index
    %5 = vector.load %arg5[%c0_6, %c0_7, %c0_8] : memref<1x8x32xf32, #tpu.memory_space<vmem>>, vector<1x8x32xf32>
    %6 = vector.shape_cast %5 : vector<1x8x32xf32> to vector<8x32xf32>
    %c0_9 = arith.constant 0 : index
    %c0_10 = arith.constant 0 : index
    %c0_11 = arith.constant 0 : index
    %7 = vector.load %arg6[%c0_9, %c0_10, %c0_11] : memref<1x4x32xf32, #tpu.memory_space<vmem>>, vector<1x4x32xf32>
    %8 = vector.shape_cast %7 : vector<1x4x32xf32> to vector<4x32xf32>
    %c0_12 = arith.constant 0 : index
    %c0_13 = arith.constant 0 : index
    %c0_14 = arith.constant 0 : index
    %c0_15 = arith.constant 0 : index
    %9 = vector.load %arg7[%c0_12, %c0_13, %c0_14, %c0_15] : memref<1x4x32x32xf32, #tpu.memory_space<vmem>>, vector<1x4x32x32xf32>
    %10 = vector.shape_cast %9 : vector<1x4x32x32xf32> to vector<4x32x32xf32>
    %c0_16 = arith.constant 0 : index
    %c0_17 = arith.constant 0 : index
    %c0_18 = arith.constant 0 : index
    %c0_19 = arith.constant 0 : index
    %11 = vector.load %arg8[%c0_16, %c0_17, %c0_18, %c0_19] : memref<1x2x32x32xf32, #tpu.memory_space<vmem>>, vector<1x2x32x32xf32>
    %12 = vector.shape_cast %11 : vector<1x2x32x32xf32> to vector<2x32x32xf32>
    %13 = vector.extract_strided_slice %6 {offsets = [0, 0], sizes = [1, 32], strides = [1, 1]} : vector<8x32xf32> to vector<1x32xf32>
    %14 = vector.extract_strided_slice %6 {offsets = [1, 0], sizes = [1, 32], strides = [1, 1]} : vector<8x32xf32> to vector<1x32xf32>
    %cst = arith.constant dense<0.000000e+00> : vector<2x32xf32>
    %15 = vector.multi_reduction <add>, %3, %cst [2] : vector<2x32x32xf32> to vector<2x32xf32>
    %16 = vector.shape_cast %15 : vector<2x32xf32> to vector<2x32x1xf32>
    %cst_20 = arith.constant 3.200000e+01 : f32
    %17 = vector.broadcast %cst_20 : f32 to vector<2x32x1xf32>
    %18 = arith.divf %16, %17 : vector<2x32x1xf32>
    %19 = vector.broadcast %18 : vector<2x32x1xf32> to vector<2x32x32xf32>
    %20 = arith.subf %3, %19 : vector<2x32x32xf32>
    %21 = arith.mulf %20, %20 : vector<2x32x32xf32>
    %cst_21 = arith.constant dense<0.000000e+00> : vector<2x32xf32>
    %22 = vector.multi_reduction <add>, %21, %cst_21 [2] : vector<2x32x32xf32> to vector<2x32xf32>
    %23 = vector.shape_cast %22 : vector<2x32xf32> to vector<2x32x1xf32>
    %cst_22 = arith.constant 3.200000e+01 : f32
    %24 = vector.broadcast %cst_22 : f32 to vector<2x32x1xf32>
    %25 = arith.divf %23, %24 : vector<2x32x1xf32>
    %cst_23 = arith.constant 9.99999974E-6 : f32
    %26 = vector.broadcast %cst_23 : f32 to vector<2x32x1xf32>
    %27 = arith.addf %25, %26 : vector<2x32x1xf32>
    %28 = math.rsqrt %27 : vector<2x32x1xf32>
    %29 = vector.broadcast %28 : vector<2x32x1xf32> to vector<2x32x32xf32>
    %30 = arith.mulf %20, %29 : vector<2x32x32xf32>
    %31 = vector.shape_cast %13 : vector<1x32xf32> to vector<1x1x32xf32>
    %32 = vector.broadcast %31 : vector<1x1x32xf32> to vector<2x32x32xf32>
    %33 = arith.mulf %30, %32 : vector<2x32x32xf32>
    %34 = vector.shape_cast %14 : vector<1x32xf32> to vector<1x1x32xf32>
    %35 = vector.broadcast %34 : vector<1x1x32xf32> to vector<2x32x32xf32>
    %36 = arith.addf %33, %35 : vector<2x32x32xf32>
    %37 = vector.extract_strided_slice %6 {offsets = [2, 0], sizes = [1, 32], strides = [1, 1]} : vector<8x32xf32> to vector<1x32xf32>
    %38 = vector.extract_strided_slice %6 {offsets = [3, 0], sizes = [1, 32], strides = [1, 1]} : vector<8x32xf32> to vector<1x32xf32>
    %cst_24 = arith.constant dense<0.000000e+00> : vector<2x8xf32>
    %39 = vector.multi_reduction <add>, %4, %cst_24 [2] : vector<2x8x32xf32> to vector<2x8xf32>
    %40 = vector.shape_cast %39 : vector<2x8xf32> to vector<2x8x1xf32>
    %cst_25 = arith.constant 3.200000e+01 : f32
    %41 = vector.broadcast %cst_25 : f32 to vector<2x8x1xf32>
    %42 = arith.divf %40, %41 : vector<2x8x1xf32>
    %43 = vector.broadcast %42 : vector<2x8x1xf32> to vector<2x8x32xf32>
    %44 = arith.subf %4, %43 : vector<2x8x32xf32>
    %45 = arith.mulf %44, %44 : vector<2x8x32xf32>
    %cst_26 = arith.constant dense<0.000000e+00> : vector<2x8xf32>
    %46 = vector.multi_reduction <add>, %45, %cst_26 [2] : vector<2x8x32xf32> to vector<2x8xf32>
    %47 = vector.shape_cast %46 : vector<2x8xf32> to vector<2x8x1xf32>
    %cst_27 = arith.constant 3.200000e+01 : f32
    %48 = vector.broadcast %cst_27 : f32 to vector<2x8x1xf32>
    %49 = arith.divf %47, %48 : vector<2x8x1xf32>
    %cst_28 = arith.constant 9.99999974E-6 : f32
    %50 = vector.broadcast %cst_28 : f32 to vector<2x8x1xf32>
    %51 = arith.addf %49, %50 : vector<2x8x1xf32>
    %52 = math.rsqrt %51 : vector<2x8x1xf32>
    %53 = vector.broadcast %52 : vector<2x8x1xf32> to vector<2x8x32xf32>
    %54 = arith.mulf %44, %53 : vector<2x8x32xf32>
    %55 = vector.shape_cast %37 : vector<1x32xf32> to vector<1x1x32xf32>
    %56 = vector.broadcast %55 : vector<1x1x32xf32> to vector<2x8x32xf32>
    %57 = arith.mulf %54, %56 : vector<2x8x32xf32>
    %58 = vector.shape_cast %38 : vector<1x32xf32> to vector<1x1x32xf32>
    %59 = vector.broadcast %58 : vector<1x1x32xf32> to vector<2x8x32xf32>
    %60 = arith.addf %57, %59 : vector<2x8x32xf32>
    %61 = arith.truncf %36 : vector<2x32x32xf32> to vector<2x32x32xbf16>
    %62 = arith.truncf %60 : vector<2x8x32xf32> to vector<2x8x32xbf16>
    %63 = vector.extract_strided_slice %10 {offsets = [0, 0, 0], sizes = [1, 32, 32], strides = [1, 1, 1]} : vector<4x32x32xf32> to vector<1x32x32xf32>
    %64 = vector.shape_cast %63 : vector<1x32x32xf32> to vector<32x32xf32>
    %65 = arith.truncf %64 : vector<32x32xf32> to vector<32x32xbf16>
    %66 = vector.shape_cast %61 : vector<2x32x32xbf16> to vector<64x32xbf16>
    %cst_29 = arith.constant dense<0.000000e+00> : vector<64x32xf32>
    %67 = tpu.matmul %66, %65, %cst_29 {dimension_numbers = #tpu.dot_dimension_numbers<[1], [0], [0], [1], [0, 0, 1, 1], [], []>} : vector<64x32xbf16>, vector<32x32xbf16>, vector<64x32xf32> -> vector<64x32xf32>
    %68 = vector.shape_cast %67 : vector<64x32xf32> to vector<2x32x32xf32>
    %69 = vector.extract_strided_slice %8 {offsets = [0, 0], sizes = [1, 32], strides = [1, 1]} : vector<4x32xf32> to vector<1x32xf32>
    %70 = vector.shape_cast %69 : vector<1x32xf32> to vector<1x1x32xf32>
    %71 = vector.broadcast %70 : vector<1x1x32xf32> to vector<2x32x32xf32>
    %72 = arith.addf %68, %71 : vector<2x32x32xf32>
    %cst_30 = arith.constant 2.500000e-01 : f32
    %73 = vector.broadcast %cst_30 : f32 to vector<2x32x32xf32>
    %74 = arith.mulf %72, %73 : vector<2x32x32xf32>
    %75 = vector.extract_strided_slice %10 {offsets = [1, 0, 0], sizes = [1, 32, 32], strides = [1, 1, 1]} : vector<4x32x32xf32> to vector<1x32x32xf32>
    %76 = vector.shape_cast %75 : vector<1x32x32xf32> to vector<32x32xf32>
    %77 = arith.truncf %76 : vector<32x32xf32> to vector<32x32xbf16>
    %78 = vector.shape_cast %62 : vector<2x8x32xbf16> to vector<16x32xbf16>
    %cst_31 = arith.constant dense<0.000000e+00> : vector<16x32xf32>
    %79 = tpu.matmul %78, %77, %cst_31 {dimension_numbers = #tpu.dot_dimension_numbers<[1], [0], [0], [1], [0, 0, 1, 1], [], []>} : vector<16x32xbf16>, vector<32x32xbf16>, vector<16x32xf32> -> vector<16x32xf32>
    %80 = vector.shape_cast %79 : vector<16x32xf32> to vector<2x8x32xf32>
    %81 = vector.extract_strided_slice %8 {offsets = [1, 0], sizes = [1, 32], strides = [1, 1]} : vector<4x32xf32> to vector<1x32xf32>
    %82 = vector.shape_cast %81 : vector<1x32xf32> to vector<1x1x32xf32>
    %83 = vector.broadcast %82 : vector<1x1x32xf32> to vector<2x8x32xf32>
    %84 = arith.addf %80, %83 : vector<2x8x32xf32>
    %85 = vector.extract_strided_slice %10 {offsets = [2, 0, 0], sizes = [1, 32, 32], strides = [1, 1, 1]} : vector<4x32x32xf32> to vector<1x32x32xf32>
    %86 = vector.shape_cast %85 : vector<1x32x32xf32> to vector<32x32xf32>
    %87 = arith.truncf %86 : vector<32x32xf32> to vector<32x32xbf16>
    %88 = vector.shape_cast %61 : vector<2x32x32xbf16> to vector<64x32xbf16>
    %cst_32 = arith.constant dense<0.000000e+00> : vector<64x32xf32>
    %89 = tpu.matmul %88, %87, %cst_32 {dimension_numbers = #tpu.dot_dimension_numbers<[1], [0], [0], [1], [0, 0, 1, 1], [], []>} : vector<64x32xbf16>, vector<32x32xbf16>, vector<64x32xf32> -> vector<64x32xf32>
    %90 = vector.shape_cast %89 : vector<64x32xf32> to vector<2x32x32xf32>
    %91 = vector.extract_strided_slice %8 {offsets = [2, 0], sizes = [1, 32], strides = [1, 1]} : vector<4x32xf32> to vector<1x32xf32>
    %92 = vector.shape_cast %91 : vector<1x32xf32> to vector<1x1x32xf32>
    %93 = vector.broadcast %92 : vector<1x1x32xf32> to vector<2x32x32xf32>
    %94 = arith.addf %90, %93 : vector<2x32x32xf32>
    %95 = vector.extract_strided_slice %10 {offsets = [3, 0, 0], sizes = [1, 32, 32], strides = [1, 1, 1]} : vector<4x32x32xf32> to vector<1x32x32xf32>
    %96 = vector.shape_cast %95 : vector<1x32x32xf32> to vector<32x32xf32>
    %97 = arith.truncf %96 : vector<32x32xf32> to vector<32x32xbf16>
    %98 = vector.shape_cast %62 : vector<2x8x32xbf16> to vector<16x32xbf16>
    %cst_33 = arith.constant dense<0.000000e+00> : vector<16x32xf32>
    %99 = tpu.matmul %98, %97, %cst_33 {dimension_numbers = #tpu.dot_dimension_numbers<[1], [0], [0], [1], [0, 0, 1, 1], [], []>} : vector<16x32xbf16>, vector<32x32xbf16>, vector<16x32xf32> -> vector<16x32xf32>
    %100 = vector.shape_cast %99 : vector<16x32xf32> to vector<2x8x32xf32>
    %101 = vector.extract_strided_slice %8 {offsets = [3, 0], sizes = [1, 32], strides = [1, 1]} : vector<4x32xf32> to vector<1x32xf32>
    %102 = vector.shape_cast %101 : vector<1x32xf32> to vector<1x1x32xf32>
    %103 = vector.broadcast %102 : vector<1x1x32xf32> to vector<2x8x32xf32>
    %104 = arith.addf %100, %103 : vector<2x8x32xf32>
    %105 = arith.truncf %74 : vector<2x32x32xf32> to vector<2x32x32xbf16>
    %106 = arith.truncf %84 : vector<2x8x32xf32> to vector<2x8x32xbf16>
    %107 = arith.truncf %94 : vector<2x32x32xf32> to vector<2x32x32xbf16>
    %108 = arith.truncf %104 : vector<2x8x32xf32> to vector<2x8x32xbf16>
    %c0_34 = arith.constant 0 : index
    %c0_35 = arith.constant 0 : index
    %109 = vector.load %arg3[%c0_34, %c0_35] : memref<2x32xf32, #tpu.memory_space<vmem>>, vector<2x32xf32>
    %c0_36 = arith.constant 0 : index
    %c0_37 = arith.constant 0 : index
    %110 = vector.load %arg4[%c0_36, %c0_37] : memref<2x8xf32, #tpu.memory_space<vmem>>, vector<2x8xf32>
    %cst_38 = arith.constant 0.000000e+00 : f32
    %111 = vector.broadcast %cst_38 : f32 to vector<2x32xf32>
    %112 = arith.cmpf ogt, %109, %111 : vector<2x32xf32>
    %cst_39 = arith.constant 0xFF800000 : f32
    %cst_40 = arith.constant 0.000000e+00 : f32
    %113 = vector.broadcast %cst_39 : f32 to vector<2x32xf32>
    %114 = vector.broadcast %cst_40 : f32 to vector<2x32xf32>
    %115 = arith.select %112, %113, %114 : vector<2x32xi1>, vector<2x32xf32>
    %116 = vector.shape_cast %115 : vector<2x32xf32> to vector<2x1x32xf32>
    %117 = vector.shape_cast %116 : vector<2x1x32xf32> to vector<2x1x32xf32>
    %118 = vector.broadcast %117 : vector<2x1x32xf32> to vector<2x8x32xf32>
    %cst_41 = arith.constant 0.000000e+00 : f32
    %119 = vector.broadcast %cst_41 : f32 to vector<2x8xf32>
    %120 = arith.cmpf ogt, %110, %119 : vector<2x8xf32>
    %cst_42 = arith.constant 0xFF800000 : f32
    %cst_43 = arith.constant 0.000000e+00 : f32
    %121 = vector.broadcast %cst_42 : f32 to vector<2x8xf32>
    %122 = vector.broadcast %cst_43 : f32 to vector<2x8xf32>
    %123 = arith.select %120, %121, %122 : vector<2x8xi1>, vector<2x8xf32>
    %124 = vector.shape_cast %123 : vector<2x8xf32> to vector<2x1x8xf32>
    %125 = vector.shape_cast %124 : vector<2x1x8xf32> to vector<2x1x8xf32>
    %126 = vector.broadcast %125 : vector<2x1x8xf32> to vector<2x32x8xf32>
    %127 = vector.extract_strided_slice %105 {offsets = [0, 0, 0], sizes = [2, 32, 16], strides = [1, 1, 1]} : vector<2x32x32xbf16> to vector<2x32x16xbf16>
    %128 = vector.extract_strided_slice %106 {offsets = [0, 0, 0], sizes = [2, 8, 16], strides = [1, 1, 1]} : vector<2x8x32xbf16> to vector<2x8x16xbf16>
    "tpu.trace_start"() <{level = 10 : i32, message = "btd,bsd->bts"}> : () -> ()
    %cst_44 = arith.constant dense<0.000000e+00> : vector<2x32x8xf32>
    %129 = tpu.matmul %127, %128, %cst_44 {dimension_numbers = #tpu.dot_dimension_numbers<[2], [2], [1], [1], [0, 0, 0, 1, 1, 1], [0], [0]>} : vector<2x32x16xbf16>, vector<2x8x16xbf16>, vector<2x32x8xf32> -> vector<2x32x8xf32>
    "tpu.trace_stop"() : () -> ()
    %130 = vector.extract_strided_slice %105 {offsets = [0, 0, 16], sizes = [2, 32, 16], strides = [1, 1, 1]} : vector<2x32x32xbf16> to vector<2x32x16xbf16>
    %131 = vector.extract_strided_slice %106 {offsets = [0, 0, 16], sizes = [2, 8, 16], strides = [1, 1, 1]} : vector<2x8x32xbf16> to vector<2x8x16xbf16>
    "tpu.trace_start"() <{level = 10 : i32, message = "btd,bsd->bts"}> : () -> ()
    %cst_45 = arith.constant dense<0.000000e+00> : vector<2x32x8xf32>
    %132 = tpu.matmul %130, %131, %cst_45 {dimension_numbers = #tpu.dot_dimension_numbers<[2], [2], [1], [1], [0, 0, 0, 1, 1, 1], [0], [0]>} : vector<2x32x16xbf16>, vector<2x8x16xbf16>, vector<2x32x8xf32> -> vector<2x32x8xf32>
    "tpu.trace_stop"() : () -> ()
    %133 = vector.shape_cast %129 : vector<2x32x8xf32> to vector<1x2x32x8xf32>
    %cst_46 = arith.constant dense<0xFF800000> : vector<1xf32>
    %134 = vector.multi_reduction <maximumf>, %133, %cst_46 [1, 2, 3] : vector<1x2x32x8xf32> to vector<1xf32>
    %135 = vector.shape_cast %134 : vector<1xf32> to vector<1x1x1x1xf32>
    %136 = vector.extract %135[0, 0, 0, 0] : f32 from vector<1x1x1x1xf32>
    %137 = vector.shape_cast %132 : vector<2x32x8xf32> to vector<1x2x32x8xf32>
    %cst_47 = arith.constant dense<0xFF800000> : vector<1xf32>
    %138 = vector.multi_reduction <maximumf>, %137, %cst_47 [1, 2, 3] : vector<1x2x32x8xf32> to vector<1xf32>
    %139 = vector.shape_cast %138 : vector<1xf32> to vector<1x1x1x1xf32>
    %140 = vector.extract %139[0, 0, 0, 0] : f32 from vector<1x1x1x1xf32>
    %141 = arith.maximumf %136, %140 : f32
    %142 = vector.broadcast %141 : f32 to vector<2x32x8xf32>
    %143 = arith.subf %129, %142 : vector<2x32x8xf32>
    %cst_48 = arith.constant -5.000000e+04 : f32
    %cst_49 = arith.constant 5.000000e+04 : f32
    %144 = vector.broadcast %cst_48 : f32 to vector<2x32x8xf32>
    %145 = arith.maximumf %144, %143 : vector<2x32x8xf32>
    %146 = vector.broadcast %cst_49 : f32 to vector<2x32x8xf32>
    %147 = arith.minimumf %146, %145 : vector<2x32x8xf32>
    %148 = tpu.transpose %147, [0, 2, 1] : vector<2x32x8xf32> -> vector<2x8x32xf32>
    %cst_50 = arith.constant dense<0xFF800000> : vector<2x8xf32>
    %149 = vector.multi_reduction <maximumf>, %148, %cst_50 [2] : vector<2x8x32xf32> to vector<2x8xf32>
    %150 = vector.shape_cast %149 : vector<2x8xf32> to vector<2x8x1xf32>
    %151 = vector.broadcast %150 : vector<2x8x1xf32> to vector<2x8x32xf32>
    %152 = arith.subf %148, %151 : vector<2x8x32xf32>
    %cst_51 = arith.constant -5.000000e+04 : f32
    %cst_52 = arith.constant 5.000000e+04 : f32
    %153 = vector.broadcast %cst_51 : f32 to vector<2x8x32xf32>
    %154 = arith.maximumf %153, %152 : vector<2x8x32xf32>
    %155 = vector.broadcast %cst_52 : f32 to vector<2x8x32xf32>
    %156 = arith.minimumf %155, %154 : vector<2x8x32xf32>
    %157 = arith.addf %156, %118 : vector<2x8x32xf32>
    %cst_53 = arith.constant dense<0xFF800000> : vector<2x8xf32>
    %158 = vector.multi_reduction <maximumf>, %157, %cst_53 [2] : vector<2x8x32xf32> to vector<2x8xf32>
    %159 = vector.shape_cast %158 : vector<2x8xf32> to vector<2x8x1xf32>
    %160 = vector.broadcast %159 : vector<2x8x1xf32> to vector<2x8x32xf32>
    %161 = arith.subf %157, %160 : vector<2x8x32xf32>
    %162 = math.exp %161 : vector<2x8x32xf32>
    %cst_54 = arith.constant dense<0.000000e+00> : vector<2x8xf32>
    %163 = vector.multi_reduction <add>, %162, %cst_54 [2] : vector<2x8x32xf32> to vector<2x8xf32>
    %164 = vector.shape_cast %163 : vector<2x8xf32> to vector<2x8x1xf32>
    %165 = vector.broadcast %164 : vector<2x8x1xf32> to vector<2x8x32xf32>
    %166 = arith.divf %162, %165 : vector<2x8x32xf32>
    %167 = arith.addf %147, %126 : vector<2x32x8xf32>
    %cst_55 = arith.constant dense<0xFF800000> : vector<2x32xf32>
    %168 = vector.multi_reduction <maximumf>, %167, %cst_55 [2] : vector<2x32x8xf32> to vector<2x32xf32>
    %169 = vector.shape_cast %168 : vector<2x32xf32> to vector<2x32x1xf32>
    %170 = vector.broadcast %169 : vector<2x32x1xf32> to vector<2x32x8xf32>
    %171 = arith.subf %167, %170 : vector<2x32x8xf32>
    %172 = math.exp %171 : vector<2x32x8xf32>
    %cst_56 = arith.constant dense<0.000000e+00> : vector<2x32xf32>
    %173 = vector.multi_reduction <add>, %172, %cst_56 [2] : vector<2x32x8xf32> to vector<2x32xf32>
    %174 = vector.shape_cast %173 : vector<2x32xf32> to vector<2x32x1xf32>
    %175 = vector.broadcast %174 : vector<2x32x1xf32> to vector<2x32x8xf32>
    %176 = arith.divf %172, %175 : vector<2x32x8xf32>
    %177 = arith.truncf %176 : vector<2x32x8xf32> to vector<2x32x8xbf16>
    %178 = vector.extract_strided_slice %108 {offsets = [0, 0, 0], sizes = [2, 8, 16], strides = [1, 1, 1]} : vector<2x8x32xbf16> to vector<2x8x16xbf16>
    "tpu.trace_start"() <{level = 10 : i32, message = "bts,bsh->bth"}> : () -> ()
    %cst_57 = arith.constant dense<0.000000e+00> : vector<2x32x16xf32>
    %179 = tpu.matmul %177, %178, %cst_57 {dimension_numbers = #tpu.dot_dimension_numbers<[2], [1], [1], [2], [0, 0, 0, 1, 1, 2], [0], [0]>} : vector<2x32x8xbf16>, vector<2x8x16xbf16>, vector<2x32x16xf32> -> vector<2x32x16xf32>
    "tpu.trace_stop"() : () -> ()
    %180 = arith.truncf %166 : vector<2x8x32xf32> to vector<2x8x32xbf16>
    %181 = vector.extract_strided_slice %107 {offsets = [0, 0, 0], sizes = [2, 32, 16], strides = [1, 1, 1]} : vector<2x32x32xbf16> to vector<2x32x16xbf16>
    "tpu.trace_start"() <{level = 10 : i32, message = "bst,bth->bsh"}> : () -> ()
    %cst_58 = arith.constant dense<0.000000e+00> : vector<2x8x16xf32>
    %182 = tpu.matmul %180, %181, %cst_58 {dimension_numbers = #tpu.dot_dimension_numbers<[2], [1], [1], [2], [0, 0, 0, 1, 1, 2], [0], [0]>} : vector<2x8x32xbf16>, vector<2x32x16xbf16>, vector<2x8x16xf32> -> vector<2x8x16xf32>
    "tpu.trace_stop"() : () -> ()
    %183 = vector.broadcast %141 : f32 to vector<2x32x8xf32>
    %184 = arith.subf %132, %183 : vector<2x32x8xf32>
    %cst_59 = arith.constant -5.000000e+04 : f32
    %cst_60 = arith.constant 5.000000e+04 : f32
    %185 = vector.broadcast %cst_59 : f32 to vector<2x32x8xf32>
    %186 = arith.maximumf %185, %184 : vector<2x32x8xf32>
    %187 = vector.broadcast %cst_60 : f32 to vector<2x32x8xf32>
    %188 = arith.minimumf %187, %186 : vector<2x32x8xf32>
    %189 = tpu.transpose %188, [0, 2, 1] : vector<2x32x8xf32> -> vector<2x8x32xf32>
    %cst_61 = arith.constant dense<0xFF800000> : vector<2x8xf32>
    %190 = vector.multi_reduction <maximumf>, %189, %cst_61 [2] : vector<2x8x32xf32> to vector<2x8xf32>
    %191 = vector.shape_cast %190 : vector<2x8xf32> to vector<2x8x1xf32>
    %192 = vector.broadcast %191 : vector<2x8x1xf32> to vector<2x8x32xf32>
    %193 = arith.subf %189, %192 : vector<2x8x32xf32>
    %cst_62 = arith.constant -5.000000e+04 : f32
    %cst_63 = arith.constant 5.000000e+04 : f32
    %194 = vector.broadcast %cst_62 : f32 to vector<2x8x32xf32>
    %195 = arith.maximumf %194, %193 : vector<2x8x32xf32>
    %196 = vector.broadcast %cst_63 : f32 to vector<2x8x32xf32>
    %197 = arith.minimumf %196, %195 : vector<2x8x32xf32>
    %198 = arith.addf %197, %118 : vector<2x8x32xf32>
    %cst_64 = arith.constant dense<0xFF800000> : vector<2x8xf32>
    %199 = vector.multi_reduction <maximumf>, %198, %cst_64 [2] : vector<2x8x32xf32> to vector<2x8xf32>
    %200 = vector.shape_cast %199 : vector<2x8xf32> to vector<2x8x1xf32>
    %201 = vector.broadcast %200 : vector<2x8x1xf32> to vector<2x8x32xf32>
    %202 = arith.subf %198, %201 : vector<2x8x32xf32>
    %203 = math.exp %202 : vector<2x8x32xf32>
    %cst_65 = arith.constant dense<0.000000e+00> : vector<2x8xf32>
    %204 = vector.multi_reduction <add>, %203, %cst_65 [2] : vector<2x8x32xf32> to vector<2x8xf32>
    %205 = vector.shape_cast %204 : vector<2x8xf32> to vector<2x8x1xf32>
    %206 = vector.broadcast %205 : vector<2x8x1xf32> to vector<2x8x32xf32>
    %207 = arith.divf %203, %206 : vector<2x8x32xf32>
    %208 = arith.addf %188, %126 : vector<2x32x8xf32>
    %cst_66 = arith.constant dense<0xFF800000> : vector<2x32xf32>
    %209 = vector.multi_reduction <maximumf>, %208, %cst_66 [2] : vector<2x32x8xf32> to vector<2x32xf32>
    %210 = vector.shape_cast %209 : vector<2x32xf32> to vector<2x32x1xf32>
    %211 = vector.broadcast %210 : vector<2x32x1xf32> to vector<2x32x8xf32>
    %212 = arith.subf %208, %211 : vector<2x32x8xf32>
    %213 = math.exp %212 : vector<2x32x8xf32>
    %cst_67 = arith.constant dense<0.000000e+00> : vector<2x32xf32>
    %214 = vector.multi_reduction <add>, %213, %cst_67 [2] : vector<2x32x8xf32> to vector<2x32xf32>
    %215 = vector.shape_cast %214 : vector<2x32xf32> to vector<2x32x1xf32>
    %216 = vector.broadcast %215 : vector<2x32x1xf32> to vector<2x32x8xf32>
    %217 = arith.divf %213, %216 : vector<2x32x8xf32>
    %218 = arith.truncf %217 : vector<2x32x8xf32> to vector<2x32x8xbf16>
    %219 = vector.extract_strided_slice %108 {offsets = [0, 0, 16], sizes = [2, 8, 16], strides = [1, 1, 1]} : vector<2x8x32xbf16> to vector<2x8x16xbf16>
    "tpu.trace_start"() <{level = 10 : i32, message = "bts,bsh->bth"}> : () -> ()
    %cst_68 = arith.constant dense<0.000000e+00> : vector<2x32x16xf32>
    %220 = tpu.matmul %218, %219, %cst_68 {dimension_numbers = #tpu.dot_dimension_numbers<[2], [1], [1], [2], [0, 0, 0, 1, 1, 2], [0], [0]>} : vector<2x32x8xbf16>, vector<2x8x16xbf16>, vector<2x32x16xf32> -> vector<2x32x16xf32>
    "tpu.trace_stop"() : () -> ()
    %221 = arith.truncf %207 : vector<2x8x32xf32> to vector<2x8x32xbf16>
    %222 = vector.extract_strided_slice %107 {offsets = [0, 0, 16], sizes = [2, 32, 16], strides = [1, 1, 1]} : vector<2x32x32xbf16> to vector<2x32x16xbf16>
    "tpu.trace_start"() <{level = 10 : i32, message = "bst,bth->bsh"}> : () -> ()
    %cst_69 = arith.constant dense<0.000000e+00> : vector<2x8x16xf32>
    %223 = tpu.matmul %221, %222, %cst_69 {dimension_numbers = #tpu.dot_dimension_numbers<[2], [1], [1], [2], [0, 0, 0, 1, 1, 2], [0], [0]>} : vector<2x8x32xbf16>, vector<2x32x16xbf16>, vector<2x8x16xf32> -> vector<2x8x16xf32>
    "tpu.trace_stop"() : () -> ()
    %224 = tpu.concatenate %179, %220 in 2 : vector<2x32x16xf32>, vector<2x32x16xf32> -> vector<2x32x32xf32>
    %225 = arith.truncf %224 : vector<2x32x32xf32> to vector<2x32x32xbf16>
    %226 = tpu.concatenate %182, %223 in 2 : vector<2x8x16xf32>, vector<2x8x16xf32> -> vector<2x8x32xf32>
    %227 = arith.truncf %226 : vector<2x8x32xf32> to vector<2x8x32xbf16>
    %228 = vector.extract_strided_slice %12 {offsets = [0, 0, 0], sizes = [1, 32, 32], strides = [1, 1, 1]} : vector<2x32x32xf32> to vector<1x32x32xf32>
    %229 = vector.shape_cast %228 : vector<1x32x32xf32> to vector<32x32xf32>
    %230 = arith.truncf %229 : vector<32x32xf32> to vector<32x32xbf16>
    %231 = vector.extract_strided_slice %12 {offsets = [1, 0, 0], sizes = [1, 32, 32], strides = [1, 1, 1]} : vector<2x32x32xf32> to vector<1x32x32xf32>
    %232 = vector.shape_cast %231 : vector<1x32x32xf32> to vector<32x32xf32>
    %233 = arith.truncf %232 : vector<32x32xf32> to vector<32x32xbf16>
    %234 = vector.shape_cast %225 : vector<2x32x32xbf16> to vector<64x32xbf16>
    %cst_70 = arith.constant dense<0.000000e+00> : vector<64x32xf32>
    %235 = tpu.matmul %234, %230, %cst_70 {dimension_numbers = #tpu.dot_dimension_numbers<[1], [0], [0], [1], [0, 0, 1, 1], [], []>} : vector<64x32xbf16>, vector<32x32xbf16>, vector<64x32xf32> -> vector<64x32xf32>
    %236 = vector.shape_cast %235 : vector<64x32xf32> to vector<2x32x32xf32>
    %237 = vector.shape_cast %227 : vector<2x8x32xbf16> to vector<16x32xbf16>
    %cst_71 = arith.constant dense<0.000000e+00> : vector<16x32xf32>
    %238 = tpu.matmul %237, %233, %cst_71 {dimension_numbers = #tpu.dot_dimension_numbers<[1], [0], [0], [1], [0, 0, 1, 1], [], []>} : vector<16x32xbf16>, vector<32x32xbf16>, vector<16x32xf32> -> vector<16x32xf32>
    %239 = vector.shape_cast %238 : vector<16x32xf32> to vector<2x8x32xf32>
    %240 = vector.extract_strided_slice %6 {offsets = [4, 0], sizes = [1, 32], strides = [1, 1]} : vector<8x32xf32> to vector<1x32xf32>
    %241 = vector.shape_cast %240 : vector<1x32xf32> to vector<1x1x32xf32>
    %242 = vector.broadcast %241 : vector<1x1x32xf32> to vector<2x32x32xf32>
    %243 = arith.addf %236, %242 : vector<2x32x32xf32>
    %244 = vector.extract_strided_slice %6 {offsets = [5, 0], sizes = [1, 32], strides = [1, 1]} : vector<8x32xf32> to vector<1x32xf32>
    %245 = vector.shape_cast %244 : vector<1x32xf32> to vector<1x1x32xf32>
    %246 = vector.broadcast %245 : vector<1x1x32xf32> to vector<2x8x32xf32>
    %247 = arith.addf %239, %246 : vector<2x8x32xf32>
    %248 = vector.extract_strided_slice %6 {offsets = [6, 0], sizes = [1, 32], strides = [1, 1]} : vector<8x32xf32> to vector<1x32xf32>
    %249 = vector.shape_cast %248 : vector<1x32xf32> to vector<1x1x32xf32>
    %250 = vector.broadcast %249 : vector<1x1x32xf32> to vector<2x32x32xf32>
    %251 = arith.mulf %250, %243 : vector<2x32x32xf32>
    %252 = arith.addf %36, %251 : vector<2x32x32xf32>
    %c0_72 = arith.constant 0 : index
    %c0_73 = arith.constant 0 : index
    %c0_74 = arith.constant 0 : index
    %253 = vector.load %arg9[%c0_72, %c0_73, %c0_74] : memref<2x32x32xf32, #tpu.memory_space<vmem>>, vector<2x32x32xf32>
    tpu.vector_store %arg9[%c0_72, %c0_73, %c0_74], %252 {strides = array<i32>} : memref<2x32x32xf32, #tpu.memory_space<vmem>>, vector<2x32x32xf32>,
    %254 = vector.extract_strided_slice %6 {offsets = [7, 0], sizes = [1, 32], strides = [1, 1]} : vector<8x32xf32> to vector<1x32xf32>
    %255 = vector.shape_cast %254 : vector<1x32xf32> to vector<1x1x32xf32>
    %256 = vector.broadcast %255 : vector<1x1x32xf32> to vector<2x8x32xf32>
    %257 = arith.mulf %256, %247 : vector<2x8x32xf32>
    %258 = arith.addf %60, %257 : vector<2x8x32xf32>
    %c0_75 = arith.constant 0 : index
    %c0_76 = arith.constant 0 : index
    %c0_77 = arith.constant 0 : index
    %259 = vector.load %arg10[%c0_75, %c0_76, %c0_77] : memref<2x8x32xf32, #tpu.memory_space<vmem>>, vector<2x8x32xf32>
    tpu.vector_store %arg10[%c0_75, %c0_76, %c0_77], %258 {strides = array<i32>} : memref<2x8x32xf32, #tpu.memory_space<vmem>>, vector<2x8x32xf32>,
    return
  }
  func.func @transform_0(%arg0: i32) -> (i32, i32, i32) {
    %c0_i32 = arith.constant 0 : i32
    %c0_i32_0 = arith.constant 0 : i32
    %c0_i32_1 = arith.constant 0 : i32
    %c0_i32_2 = arith.constant 0 : i32
    return %c0_i32, %c0_i32_0, %c0_i32_1 : i32, i32, i32
  }
  func.func @transform_1(%arg0: i32) -> (i32, i32, i32) {
    %c0_i32 = arith.constant 0 : i32
    %c0_i32_0 = arith.constant 0 : i32
    %c0_i32_1 = arith.constant 0 : i32
    %c0_i32_2 = arith.constant 0 : i32
    return %c0_i32, %c0_i32_0, %c0_i32_1 : i32, i32, i32
  }
  func.func @transform_2(%arg0: i32) -> (i32, i32) {
    %c0_i32 = arith.constant 0 : i32
    %c0_i32_0 = arith.constant 0 : i32
    %c0_i32_1 = arith.constant 0 : i32
    return %c0_i32, %c0_i32_0 : i32, i32
  }
  func.func @transform_3(%arg0: i32) -> (i32, i32) {
    %c0_i32 = arith.constant 0 : i32
    %c0_i32_0 = arith.constant 0 : i32
    %c0_i32_1 = arith.constant 0 : i32
    return %c0_i32, %c0_i32_0 : i32, i32
  }
  func.func @transform_4(%arg0: i32) -> (i32, i32, i32) {
    %c0_i32 = arith.constant 0 : i32
    %c0_i32_0 = arith.constant 0 : i32
    %c0_i32_1 = arith.constant 0 : i32
    return %arg0, %c0_i32, %c0_i32_0 : i32, i32, i32
  }
  func.func @transform_5(%arg0: i32) -> (i32, i32, i32) {
    %c0_i32 = arith.constant 0 : i32
    %c0_i32_0 = arith.constant 0 : i32
    %c0_i32_1 = arith.constant 0 : i32
    return %arg0, %c0_i32, %c0_i32_0 : i32, i32, i32
  }
  func.func @transform_6(%arg0: i32) -> (i32, i32, i32, i32) {
    %c0_i32 = arith.constant 0 : i32
    %c0_i32_0 = arith.constant 0 : i32
    %c0_i32_1 = arith.constant 0 : i32
    %c0_i32_2 = arith.constant 0 : i32
    return %arg0, %c0_i32, %c0_i32_0, %c0_i32_1 : i32, i32, i32, i32
  }
  func.func @transform_7(%arg0: i32) -> (i32, i32, i32, i32) {
    %c0_i32 = arith.constant 0 : i32
    %c0_i32_0 = arith.constant 0 : i32
    %c0_i32_1 = arith.constant 0 : i32
    %c0_i32_2 = arith.constant 0 : i32
    return %arg0, %c0_i32, %c0_i32_0, %c0_i32_1 : i32, i32, i32, i32
  }
  func.func @transform_8(%arg0: i32) -> (i32, i32, i32) {
    %c0_i32 = arith.constant 0 : i32
    %c0_i32_0 = arith.constant 0 : i32
    %c0_i32_1 = arith.constant 0 : i32
    %c0_i32_2 = arith.constant 0 : i32
    return %c0_i32, %c0_i32_0, %c0_i32_1 : i32, i32, i32
  }
  func.func @transform_9(%arg0: i32) -> (i32, i32, i32) {
    %c0_i32 = arith.constant 0 : i32
    %c0_i32_0 = arith.constant 0 : i32
    %c0_i32_1 = arith.constant 0 : i32
    %c0_i32_2 = arith.constant 0 : i32
    return %c0_i32, %c0_i32_0, %c0_i32_1 : i32, i32, i32
  }
}

</mosaic_0001>

<llo_original>
// kernel: tpu_custom_call.1
$region0: #{tpu_custom_call.1}
  #allocation0 [shape = 'u32[]', space=smem, size = 0x4, offset = 0x4, fixed_abs, tag = 'smem constant byte address 0x4 - core index']
  #allocation1 [shape = 'u32[144,128]{1,0:T(1,128)}', space=vmem, size = 0x12000, scoped, tag = 'internal scratch']
  %s0 = inlined_call_operand.hbm [shape: f32[2,32,32], index: 0, kind: input, shape index: {}]
  %s1 = inlined_call_operand.hbm [shape: f32[2,8,32], index: 1, kind: input, shape index: {}]
  %s2 = inlined_call_operand.vmem [shape: f32[2,32], index: 2, kind: input, shape index: {}]
  %s3 = inlined_call_operand.vmem [shape: f32[2,8], index: 3, kind: input, shape index: {}]
  %s4 = inlined_call_operand.hbm [shape: f32[2,8,32], index: 4, kind: input, shape index: {}]
  %s5 = inlined_call_operand.vmem [shape: f32[2,4,32], index: 5, kind: input, shape index: {}]
  %s6 = inlined_call_operand.hbm [shape: f32[2,4,32,32], index: 6, kind: input, shape index: {}]
  %s7 = inlined_call_operand.hbm [shape: f32[2,2,32,32], index: 7, kind: input, shape index: {}]
  %s8 = inlined_call_operand.hbm [shape: f32[2,32,32], index: 8, kind: output, shape index: {0}]
  %s9 = inlined_call_operand.hbm [shape: f32[2,8,32], index: 9, kind: output, shape index: {1}]
  %10 = xla_tuple %s8, %s9
  %s11 = sld [smem:[#allocation0]]
  $region97: #{tpu_custom_call.1} parent=0
    _
  %s13 = ssub.s32 1, %s11
  %s14 = scalar_select 0, %s13, %s11
  $region1: #{tpu_custom_call.1} parent=0
    #allocation2 [shape = 'u8[32768]{0}', space=vmem, size = 0x8000, scoped, tag = 'input window, operand 0, single buffered']
    #allocation3 [shape = 's32[2]{0}', space=sflag, size = 0x8, scoped, tag = 'scoped memory for tpu_custom_call.1']
    #allocation4 [shape = 's32[2]{0}', space=sflag, size = 0x8, scoped, tag = 'scoped memory for tpu_custom_call.1']
    #allocation5 [shape = 'u8[8192]{0}', space=vmem, size = 0x2000, scoped, tag = 'input window, operand 1, single buffered']
    #allocation6 [shape = 's32[1]{0}', space=sflag, size = 0x4, scoped, tag = 'scoped memory for tpu_custom_call.1']
    #allocation7 [shape = 'u8[8192]{0}', space=vmem, size = 0x2000, scoped, tag = 'input window, operand 4']
    #allocation8 [shape = 'u8[131072]{0}', space=vmem, size = 0x20000, scoped, tag = 'input window, operand 6']
    #allocation9 [shape = 'u8[65536]{0}', space=vmem, size = 0x10000, scoped, tag = 'input window, operand 7']
    #allocation10 [shape = 'u8[32768]{0}', space=vmem, size = 0x8000, scoped, tag = 'output window, operand 0, single buffered']
    #allocation11 [shape = 'u8[8192]{0}', space=vmem, size = 0x2000, scoped, tag = 'output window, operand 1, single buffered']
    #allocation12 [shape = 's32[1]{0}', space=sflag, size = 0x4, scoped, tag = 'scoped memory for tpu_custom_call.1']
    %15 = vsyncpa [#allocation3], 0
    %16 = vsyncpa [#allocation6], 0
    %17 = vsyncpa [#allocation4], 0
    %18 = vsyncpa [#allocation12], 0
    loop: start=0, step=1, limit=4
    $region2: #{tpu_custom_call.1} parent=1 // loop_pre_header
      _
    $region3: #{tpu_custom_call.1} parent=1 // loop_header
      %s20 = sphi 0, %s24
      %p21 = scmp.ge.s32.totalorder %s20, 4
      %s28 = sphi 0, %s28
      %s30 = sphi 0, %s28
      %s31 = sphi 0, %s30
      %s45 = sphi 0, %s31
      %s49 = sphi 0, %s49
      %s51 = sphi 0, %s49
      %s52 = sphi 0, %s51
      %s66 = sphi 0, %s52
      %s70 = sphi 0, %s70
      %s72 = sphi 0, %s70
      %s73 = sphi 0, %s72
      %s87 = sphi 0, %s73
      %s91 = sphi 0, %s91
      %s93 = sphi 0, %s91
      %s94 = sphi 0, %s93
      %s108 = sphi 0, %s94
      %s114 = sphi 0, %s116
      %s117 = sphi 0, %s114
      %s118 = sphi 0, %s117
      %s134 = sphi 0, %s118
      %s140 = sphi 0, %s142
      %s143 = sphi 0, %s140
      %s144 = sphi 0, %s143
      %s160 = sphi 0, %s144
      %s166 = sphi 0, %s168
      %s169 = sphi 0, %s166
      %s170 = sphi 0, %s169
      %s186 = sphi 0, %s170
      %s192 = sphi 0, %s194
      %s195 = sphi 0, %s192
      %s196 = sphi 0, %s195
      %s212 = sphi 0, %s196
      %s216 = sphi 0, %s216
      %s218 = sphi 0, %s216
      %s219 = sphi 0, %s218
      %s233 = sphi 0, %s219
      %s237 = sphi 0, %s237
      %s239 = sphi 0, %s237
      %s240 = sphi 0, %s239
      %s254 = sphi 0, %s240
    $region4: #{tpu_custom_call.1} parent=1 // loop_header_branch
      %23 = sbr.rel (%p21) target = $region8
    $region5: #{tpu_custom_call.1} parent=1 // loop_body
      %s25 = ssub.s32 %s20, 1
      %s26 = ssub.s32 %s20, 2
      %s27 = sadd.s32 %s20, 1
      %s29 = sadd.s32 %s28, 1
      %p32 = scmp.eq.s32.totalorder %s20, 1
      %p33 = scmp.ne.s32.totalorder %s28, %s30
      %p34 = scmp.eq.s32.totalorder %s20, 0
      %p35 = por %p33, %p34
      %p36 = scmp.ne.s32.totalorder %s28, %s30
      %p37 = scmp.eq.s32.totalorder %s25, 1
      %p38 = por %p36, %p37
      %p39 = scmp.ne.s32.totalorder %s30, %s31
      %p40 = scmp.eq.s32.totalorder %s25, 0
      %p41 = por %p39, %p40
      %p42 = scmp.ne.s32.totalorder %s30, %s31
      %p43 = scmp.eq.s32.totalorder %s26, 1
      %p44 = por %p42, %p43
      %p46 = scmp.ne.s32.totalorder %s31, %s45
      %p47 = scmp.eq.s32.totalorder %s26, 0
      %p48 = por %p46, %p47
      %s50 = sadd.s32 %s49, 1
      %p53 = scmp.eq.s32.totalorder %s20, 1
      %p54 = scmp.ne.s32.totalorder %s49, %s51
      %p55 = scmp.eq.s32.totalorder %s20, 0
      %p56 = por %p54, %p55
      %p57 = scmp.ne.s32.totalorder %s49, %s51
      %p58 = scmp.eq.s32.totalorder %s25, 1
      %p59 = por %p57, %p58
      %p60 = scmp.ne.s32.totalorder %s51, %s52
      %p61 = scmp.eq.s32.totalorder %s25, 0
      %p62 = por %p60, %p61
      %p63 = scmp.ne.s32.totalorder %s51, %s52
      %p64 = scmp.eq.s32.totalorder %s26, 1
      %p65 = por %p63, %p64
      %p67 = scmp.ne.s32.totalorder %s52, %s66
      %p68 = scmp.eq.s32.totalorder %s26, 0
      %p69 = por %p67, %p68
      %s71 = sadd.s32 %s70, 1
      %p74 = scmp.eq.s32.totalorder %s20, 1
      %p75 = scmp.ne.s32.totalorder %s70, %s72
      %p76 = scmp.eq.s32.totalorder %s20, 0
      %p77 = por %p75, %p76
      %p78 = scmp.ne.s32.totalorder %s70, %s72
      %p79 = scmp.eq.s32.totalorder %s25, 1
      %p80 = por %p78, %p79
      %p81 = scmp.ne.s32.totalorder %s72, %s73
      %p82 = scmp.eq.s32.totalorder %s25, 0
      %p83 = por %p81, %p82
      %p84 = scmp.ne.s32.totalorder %s72, %s73
      %p85 = scmp.eq.s32.totalorder %s26, 1
      %p86 = por %p84, %p85
      %p88 = scmp.ne.s32.totalorder %s73, %s87
      %p89 = scmp.eq.s32.totalorder %s26, 0
      %p90 = por %p88, %p89
      %s92 = sadd.s32 %s91, 1
      %p95 = scmp.eq.s32.totalorder %s20, 1
      %p96 = scmp.ne.s32.totalorder %s91, %s93
      %p97 = scmp.eq.s32.totalorder %s20, 0
      %p98 = por %p96, %p97
      %p99 = scmp.ne.s32.totalorder %s91, %s93
      %p100 = scmp.eq.s32.totalorder %s25, 1
      %p101 = por %p99, %p100
      %p102 = scmp.ne.s32.totalorder %s93, %s94
      %p103 = scmp.eq.s32.totalorder %s25, 0
      %p104 = por %p102, %p103
      %p105 = scmp.ne.s32.totalorder %s93, %s94
      %p106 = scmp.eq.s32.totalorder %s26, 1
      %p107 = por %p105, %p106
      %p109 = scmp.ne.s32.totalorder %s94, %s108
      %p110 = scmp.eq.s32.totalorder %s26, 0
      %p111 = por %p109, %p110
      %s112 = ssub.s32 %s20, %s27
      %p113 = scmp.eq.s32.totalorder %s112, 0
      %s115 = sadd.s32 %s114, 1
      %s116 = scalar_select %p113, %s114, %s115
      %p119 = pneg %p113
      %p120 = scmp.eq.s32.totalorder %s20, 1
      %p121 = por %p119, %p120
      %p122 = scmp.ne.s32.totalorder %s114, %s117
      %p123 = scmp.eq.s32.totalorder %s20, 0
      %p124 = por %p122, %p123
      %p125 = scmp.ne.s32.totalorder %s114, %s117
      %p126 = scmp.eq.s32.totalorder %s25, 1
      %p127 = por %p125, %p126
      %p128 = scmp.ne.s32.totalorder %s117, %s118
      %p129 = scmp.eq.s32.totalorder %s25, 0
      %p130 = por %p128, %p129
      %p131 = scmp.ne.s32.totalorder %s117, %s118
      %p132 = scmp.eq.s32.totalorder %s26, 1
      %p133 = por %p131, %p132
      %p135 = scmp.ne.s32.totalorder %s118, %s134
      %p136 = scmp.eq.s32.totalorder %s26, 0
      %p137 = por %p135, %p136
      %s138 = ssub.s32 %s20, %s27
      %p139 = scmp.eq.s32.totalorder %s138, 0
      %s141 = sadd.s32 %s140, 1
      %s142 = scalar_select %p139, %s140, %s141
      %p145 = pneg %p139
      %p146 = scmp.eq.s32.totalorder %s20, 1
      %p147 = por %p145, %p146
      %p148 = scmp.ne.s32.totalorder %s140, %s143
      %p149 = scmp.eq.s32.totalorder %s20, 0
      %p150 = por %p148, %p149
      %p151 = scmp.ne.s32.totalorder %s140, %s143
      %p152 = scmp.eq.s32.totalorder %s25, 1
      %p153 = por %p151, %p152
      %p154 = scmp.ne.s32.totalorder %s143, %s144
      %p155 = scmp.eq.s32.totalorder %s25, 0
      %p156 = por %p154, %p155
      %p157 = scmp.ne.s32.totalorder %s143, %s144
      %p158 = scmp.eq.s32.totalorder %s26, 1
      %p159 = por %p157, %p158
      %p161 = scmp.ne.s32.totalorder %s144, %s160
      %p162 = scmp.eq.s32.totalorder %s26, 0
      %p163 = por %p161, %p162
      %s164 = ssub.s32 %s20, %s27
      %p165 = scmp.eq.s32.totalorder %s164, 0
      %s167 = sadd.s32 %s166, 1
      %s168 = scalar_select %p165, %s166, %s167
      %p171 = pneg %p165
      %p172 = scmp.eq.s32.totalorder %s20, 1
      %p173 = por %p171, %p172
      %p174 = scmp.ne.s32.totalorder %s166, %s169
      %p175 = scmp.eq.s32.totalorder %s20, 0
      %p176 = por %p174, %p175
      %p177 = scmp.ne.s32.totalorder %s166, %s169
      %p178 = scmp.eq.s32.totalorder %s25, 1
      %p179 = por %p177, %p178
      %p180 = scmp.ne.s32.totalorder %s169, %s170
      %p181 = scmp.eq.s32.totalorder %s25, 0
      %p182 = por %p180, %p181
      %p183 = scmp.ne.s32.totalorder %s169, %s170
      %p184 = scmp.eq.s32.totalorder %s26, 1
      %p185 = por %p183, %p184
      %p187 = scmp.ne.s32.totalorder %s170, %s186
      %p188 = scmp.eq.s32.totalorder %s26, 0
      %p189 = por %p187, %p188
      %s190 = ssub.s32 %s20, %s27
      %p191 = scmp.eq.s32.totalorder %s190, 0
      %s193 = sadd.s32 %s192, 1
      %s194 = scalar_select %p191, %s192, %s193
      %p197 = pneg %p191
      %p198 = scmp.eq.s32.totalorder %s20, 1
      %p199 = por %p197, %p198
      %p200 = scmp.ne.s32.totalorder %s192, %s195
      %p201 = scmp.eq.s32.totalorder %s20, 0
      %p202 = por %p200, %p201
      %p203 = scmp.ne.s32.totalorder %s192, %s195
      %p204 = scmp.eq.s32.totalorder %s25, 1
      %p205 = por %p203, %p204
      %p206 = scmp.ne.s32.totalorder %s195, %s196
      %p207 = scmp.eq.s32.totalorder %s25, 0
      %p208 = por %p206, %p207
      %p209 = scmp.ne.s32.totalorder %s195, %s196
      %p210 = scmp.eq.s32.totalorder %s26, 1
      %p211 = por %p209, %p210
      %p213 = scmp.ne.s32.totalorder %s196, %s212
      %p214 = scmp.eq.s32.totalorder %s26, 0
      %p215 = por %p213, %p214
      %s217 = sadd.s32 %s216, 1
      %p220 = scmp.eq.s32.totalorder %s20, 1
      %p221 = scmp.ne.s32.totalorder %s216, %s218
      %p222 = scmp.eq.s32.totalorder %s20, 0
      %p223 = por %p221, %p222
      %p224 = scmp.ne.s32.totalorder %s216, %s218
      %p225 = scmp.eq.s32.totalorder %s25, 1
      %p226 = por %p224, %p225
      %p227 = scmp.ne.s32.totalorder %s218, %s219
      %p228 = scmp.eq.s32.totalorder %s25, 0
      %p229 = por %p227, %p228
      %p230 = scmp.ne.s32.totalorder %s218, %s219
      %p231 = scmp.eq.s32.totalorder %s26, 1
      %p232 = por %p230, %p231
      %p234 = scmp.ne.s32.totalorder %s219, %s233
      %p235 = scmp.eq.s32.totalorder %s26, 0
      %p236 = por %p234, %p235
      %s238 = sadd.s32 %s237, 1
      %p241 = scmp.eq.s32.totalorder %s20, 1
      %p242 = scmp.ne.s32.totalorder %s237, %s239
      %p243 = scmp.eq.s32.totalorder %s20, 0
      %p244 = por %p242, %p243
      %p245 = scmp.ne.s32.totalorder %s237, %s239
      %p246 = scmp.eq.s32.totalorder %s25, 1
      %p247 = por %p245, %p246
      %p248 = scmp.ne.s32.totalorder %s239, %s240
      %p249 = scmp.eq.s32.totalorder %s25, 0
      %p250 = por %p248, %p249
      %p251 = scmp.ne.s32.totalorder %s239, %s240
      %p252 = scmp.eq.s32.totalorder %s26, 1
      %p253 = por %p251, %p252
      %p255 = scmp.ne.s32.totalorder %s240, %s254
      %p256 = scmp.eq.s32.totalorder %s26, 0
      %p257 = por %p255, %p256
      %p258 = scmp.le.s32.totalorder 1, %s20
      %p259 = scmp.lt.s32.totalorder %s20, 3
      %p260 = pnand %p258, %p259
      %p261 = pneg %p260
      // Predicated region
      $region9: #{tpu_custom_call.1} parent=5 // pred_check
        _
      $region10: #{tpu_custom_call.1} parent=5 // pred_check_branch
        %263 = sbr.rel (%p260) target = $region12
      $region11: #{tpu_custom_call.1} parent=5 // pred_region
        %s264 = ssub.s32 %s20, 1
        // Predicated region
        $region13: #{tpu_custom_call.1} parent=11 // pred_check
          %p265 = pneg %p41
        $region14: #{tpu_custom_call.1} parent=11 // pred_check_branch
          %267 = sbr.rel (%p265) target = $region16
        $region15: #{tpu_custom_call.1} parent=11 // pred_region
          %s269 = ssub.s32 1024, 1024
          %270 = vsyncadd [#allocation3], %s269
          %s271 = sshll.u32 [#allocation2], 4
          %s272 = int_to_ptr.vmem [resolvable:$true] %s271
          %277 = dma.hbm_to_vmem [thread:$0]  %s0, 1024, %s272, [#allocation3], 128, 128, 8
        $region16: #{tpu_custom_call.1} parent=11 // pred_fallthru
          _
        // Predicated region
        $region17: #{tpu_custom_call.1} parent=11 // pred_check
          %p278 = pneg %p62
        $region18: #{tpu_custom_call.1} parent=11 // pred_check_branch
          %280 = sbr.rel (%p278) target = $region20
        $region19: #{tpu_custom_call.1} parent=11 // pred_region
          %s282 = ssub.s32 256, 256
          %283 = vsyncadd [#allocation6], %s282
          %s284 = sshll.u32 [#allocation5], 4
          %s285 = int_to_ptr.vmem [resolvable:$true] %s284
          %290 = dma.hbm_to_vmem [thread:$0]  %s1, 256, %s285, [#allocation6], 128, 128, 8
        $region20: #{tpu_custom_call.1} parent=11 // pred_fallthru
          _
        // Predicated region
        $region21: #{tpu_custom_call.1} parent=11 // pred_check
          %p291 = pneg %p83
        $region22: #{tpu_custom_call.1} parent=11 // pred_check_branch
          %293 = sbr.rel (%p291) target = $region24
        $region23: #{tpu_custom_call.1} parent=11 // pred_region
          _
        $region24: #{tpu_custom_call.1} parent=11 // pred_fallthru
          _
        // Predicated region
        $region25: #{tpu_custom_call.1} parent=11 // pred_check
          %p294 = pneg %p104
        $region26: #{tpu_custom_call.1} parent=11 // pred_check_branch
          %296 = sbr.rel (%p294) target = $region28
        $region27: #{tpu_custom_call.1} parent=11 // pred_region
          _
        $region28: #{tpu_custom_call.1} parent=11 // pred_fallthru
          _
      $region12: #{tpu_custom_call.1} parent=5 // pred_fallthru
        _
      %p297 = scmp.lt.s32.totalorder %s20, 2
      // Predicated region
      $region29: #{tpu_custom_call.1} parent=5 // pred_check
        %p298 = pneg %p297
      $region30: #{tpu_custom_call.1} parent=5 // pred_check_branch
        %300 = sbr.rel (%p298) target = $region32
      $region31: #{tpu_custom_call.1} parent=5 // pred_region
        // Predicated region
        $region33: #{tpu_custom_call.1} parent=31 // pred_check
          %p301 = pneg %p124
        $region34: #{tpu_custom_call.1} parent=31 // pred_check_branch
          %303 = sbr.rel (%p301) target = $region36
        $region35: #{tpu_custom_call.1} parent=31 // pred_region
          %s304 = sand.u32 %s20, 1
          %s305 = scalar_lea.sflag [#allocation3], %s304
          %s306 = sand.u32 %s114, 1
          %s307 = smul.addr %s306, 8
          %s308 = scalar_lea.vmem [#allocation7], %s307
          %s310 = ssub.s32 128, 128
          %311 = vsyncadd %s305, %s310
          %s312 = smul.addr %s20, 128
          %s313 = scalar_lea.hbm %s4, %s312
          %s315 = sshll.u32 %s308, 4
          %s316 = int_to_ptr.vmem [resolvable:$true] %s315
          %318 = dma.hbm_to_vmem [thread:$0]  %s313, 128, %s316, %s305
        $region36: #{tpu_custom_call.1} parent=31 // pred_fallthru
          _
        // Predicated region
        $region37: #{tpu_custom_call.1} parent=31 // pred_check
          %p319 = pneg %p150
        $region38: #{tpu_custom_call.1} parent=31 // pred_check_branch
          %321 = sbr.rel (%p319) target = $region40
        $region39: #{tpu_custom_call.1} parent=31 // pred_region
          %p322 = scmp.lt.s32.totalorder %s20, 1
          %s323 = scalar_select %p322, %s20, 1
          %s324 = smul.addr %s323, 4
          %s325 = scalar_lea.vmem %s5, %s324
        $region40: #{tpu_custom_call.1} parent=31 // pred_fallthru
          _
        // Predicated region
        $region41: #{tpu_custom_call.1} parent=31 // pred_check
          %p326 = pneg %p176
        $region42: #{tpu_custom_call.1} parent=31 // pred_check_branch
          %328 = sbr.rel (%p326) target = $region44
        $region43: #{tpu_custom_call.1} parent=31 // pred_region
          %s329 = sand.u32 %s20, 1
          %s330 = scalar_lea.sflag [#allocation3], %s329
          %s331 = sand.u32 %s166, 1
          %s332 = smul.addr %s331, 128
          %s333 = scalar_lea.vmem [#allocation8], %s332
          %s335 = ssub.s32 2048, 2048
          %336 = vsyncadd %s330, %s335
          %s337 = smul.addr %s20, 16
          %s338 = smul.addr %s337, 128
          %s339 = scalar_lea.hbm %s6, %s338
          %s340 = sshll.u32 %s333, 4
          %s341 = int_to_ptr.vmem [resolvable:$true] %s340
          %346 = dma.hbm_to_vmem [thread:$0]  %s339, 2048, %s341, %s330, 128, 128, 8
        $region44: #{tpu_custom_call.1} parent=31 // pred_fallthru
          _
        // Predicated region
        $region45: #{tpu_custom_call.1} parent=31 // pred_check
          %p347 = pneg %p202
        $region46: #{tpu_custom_call.1} parent=31 // pred_check_branch
          %349 = sbr.rel (%p347) target = $region48
        $region47: #{tpu_custom_call.1} parent=31 // pred_region
          %s350 = sand.u32 %s20, 1
          %s351 = scalar_lea.sflag [#allocation3], %s350
          %s352 = sand.u32 %s192, 1
          %s353 = smul.addr %s352, 64
          %s354 = scalar_lea.vmem [#allocation9], %s353
          %s356 = ssub.s32 1024, 1024
          %357 = vsyncadd %s351, %s356
          %s358 = smul.addr %s20, 8
          %s359 = smul.addr %s358, 128
          %s360 = scalar_lea.hbm %s7, %s359
          %s361 = sshll.u32 %s354, 4
          %s362 = int_to_ptr.vmem [resolvable:$true] %s361
          %367 = dma.hbm_to_vmem [thread:$0]  %s360, 1024, %s362, %s351, 128, 128, 8
        $region48: #{tpu_custom_call.1} parent=31 // pred_fallthru
          _
      $region32: #{tpu_custom_call.1} parent=5 // pred_fallthru
        _
      %p368 = scmp.le.s32.totalorder 1, %s20
      %p369 = scmp.lt.s32.totalorder %s20, 3
      %p370 = pnand %p368, %p369
      %p371 = pneg %p370
      // Predicated region
      $region49: #{tpu_custom_call.1} parent=5 // pred_check
        _
      $region50: #{tpu_custom_call.1} parent=5 // pred_check_branch
        %373 = sbr.rel (%p370) target = $region52
      $region51: #{tpu_custom_call.1} parent=5 // pred_region
        %s374 = ssub.s32 %s20, 1
        // Predicated region
        $region53: #{tpu_custom_call.1} parent=51 // pred_check
          %p375 = pneg %p41
        $region54: #{tpu_custom_call.1} parent=51 // pred_check_branch
          %377 = sbr.rel (%p375) target = $region56
        $region55: #{tpu_custom_call.1} parent=51 // pred_region
          %378 = dma.done [#allocation3], 1024
        $region56: #{tpu_custom_call.1} parent=51 // pred_fallthru
          _
        // Predicated region
        $region57: #{tpu_custom_call.1} parent=51 // pred_check
          %p379 = pneg %p62
        $region58: #{tpu_custom_call.1} parent=51 // pred_check_branch
          %381 = sbr.rel (%p379) target = $region60
        $region59: #{tpu_custom_call.1} parent=51 // pred_region
          %382 = dma.done [#allocation6], 256
        $region60: #{tpu_custom_call.1} parent=51 // pred_fallthru
          _
        %s383 = sand.u32 %s25, 1
        %s384 = scalar_lea.sflag [#allocation3], %s383
        %s385 = sand.u32 %s117, 1
        %s386 = smul.addr %s385, 8
        %s387 = scalar_lea.vmem [#allocation7], %s386
        // Predicated region
        $region61: #{tpu_custom_call.1} parent=51 // pred_check
          %p388 = pneg %p130
        $region62: #{tpu_custom_call.1} parent=51 // pred_check_branch
          %390 = sbr.rel (%p388) target = $region64
        $region63: #{tpu_custom_call.1} parent=51 // pred_region
          %391 = dma.done %s384, 128
        $region64: #{tpu_custom_call.1} parent=51 // pred_fallthru
          _
        %s392 = sand.u32 %s25, 1
        %s393 = scalar_lea.sflag [#allocation3], %s392
        %s394 = sand.u32 %s169, 1
        %s395 = smul.addr %s394, 128
        %s396 = scalar_lea.vmem [#allocation8], %s395
        // Predicated region
        $region65: #{tpu_custom_call.1} parent=51 // pred_check
          %p397 = pneg %p182
        $region66: #{tpu_custom_call.1} parent=51 // pred_check_branch
          %399 = sbr.rel (%p397) target = $region68
        $region67: #{tpu_custom_call.1} parent=51 // pred_region
          %400 = dma.done %s393, 2048
        $region68: #{tpu_custom_call.1} parent=51 // pred_fallthru
          _
        %s401 = sand.u32 %s25, 1
        %s402 = scalar_lea.sflag [#allocation3], %s401
        %s403 = sand.u32 %s195, 1
        %s404 = smul.addr %s403, 64
        %s405 = scalar_lea.vmem [#allocation9], %s404
        // Predicated region
        $region69: #{tpu_custom_call.1} parent=51 // pred_check
          %p406 = pneg %p208
        $region70: #{tpu_custom_call.1} parent=51 // pred_check_branch
          %408 = sbr.rel (%p406) target = $region72
        $region71: #{tpu_custom_call.1} parent=51 // pred_region
          %409 = dma.done %s402, 1024
        $region72: #{tpu_custom_call.1} parent=51 // pred_fallthru
          _
        %p410 = pneg %p41
        %p411 = pneg %p38
        %p412 = pneg %p62
        %p413 = pneg %p59
        %p414 = pneg %p83
        %p415 = pneg %p80
        %p416 = pneg %p104
        %p417 = pneg %p101
        %s418 = sand.u32 %s25, 1
        %s419 = scalar_lea.sflag [#allocation3], %s418
        %s420 = sand.u32 %s117, 1
        %s421 = smul.addr %s420, 8
        %s422 = scalar_lea.vmem [#allocation7], %s421
        %p423 = pneg %p130
        %p424 = pneg %p127
        %p425 = scmp.lt.s32.totalorder %s25, 1
        %s426 = scalar_select %p425, %s25, 1
        %s427 = smul.addr %s426, 4
        %s428 = scalar_lea.vmem %s5, %s427
        %p429 = pneg %p156
        %p430 = pneg %p153
        %s431 = sand.u32 %s25, 1
        %s432 = scalar_lea.sflag [#allocation3], %s431
        %s433 = sand.u32 %s169, 1
        %s434 = smul.addr %s433, 128
        %s435 = scalar_lea.vmem [#allocation8], %s434
        %p436 = pneg %p182
        %p437 = pneg %p179
        %s438 = sand.u32 %s25, 1
        %s439 = scalar_lea.sflag [#allocation3], %s438
        %s440 = sand.u32 %s195, 1
        %s441 = smul.addr %s440, 64
        %s442 = scalar_lea.vmem [#allocation9], %s441
        %p443 = pneg %p208
        %p444 = pneg %p205
        %p445 = pneg %p229
        %p446 = pneg %p226
        %p447 = pneg %p250
        %p448 = pneg %p247
        %p449 = scmp.lt.s32.totalorder %s25, 1
        %s450 = scalar_select %p449, %s25, 1
        %s451 = smul.addr %s450, 4
        %s452 = scalar_lea.vmem %s5, %s451
        %p454 = scmp.eq.s32.totalorder %s25, 0
        // Predicated region
        $region73: #{tpu_custom_call.1} parent=51 // pred_check
          %p455 = pneg %p454
        $region74: #{tpu_custom_call.1} parent=51 // pred_check_branch
          %457 = sbr.rel (%p455) target = $region76
        $region75: #{tpu_custom_call.1} parent=51 // pred_region
          %v458 = vld [vmem:[#allocation2] sm:$0xff]
          %v459 = vld [vmem:[#allocation2 + $0x8] sm:$0xff]
          %v460 = vld [vmem:[#allocation2 + $0x10] sm:$0xff]
          %v461 = vld [vmem:[#allocation2 + $0x18] sm:$0xff]
          %v462 = vld [vmem:[#allocation2 + $0x20] sm:$0xff]
          %v463 = vld [vmem:[#allocation2 + $0x28] sm:$0xff]
          %v464 = vld [vmem:[#allocation2 + $0x30] sm:$0xff]
          %v465 = vld [vmem:[#allocation2 + $0x38] sm:$0xff]
          %vm466 = vcmask 261120
          %467 = vst.msk [vmem:[#allocation10] sm:$0xff] %vm466, %v458
          %468 = vst.msk [vmem:[#allocation10 + $0x8] sm:$0xff] %vm466, %v459
          %469 = vst.msk [vmem:[#allocation10 + $0x10] sm:$0xff] %vm466, %v460
          %470 = vst.msk [vmem:[#allocation10 + $0x18] sm:$0xff] %vm466, %v461
          %471 = vst.msk [vmem:[#allocation10 + $0x20] sm:$0xff] %vm466, %v462
          %472 = vst.msk [vmem:[#allocation10 + $0x28] sm:$0xff] %vm466, %v463
          %473 = vst.msk [vmem:[#allocation10 + $0x30] sm:$0xff] %vm466, %v464
          %474 = vst.msk [vmem:[#allocation10 + $0x38] sm:$0xff] %vm466, %v465
          %v475 = vld [vmem:[#allocation5] sm:$0xff]
          %v476 = vld [vmem:[#allocation5 + $0x8] sm:$0xff]
          %477 = vst.msk [vmem:[#allocation11] sm:$0xff] %vm466, %v475
          %478 = vst.msk [vmem:[#allocation11 + $0x8] sm:$0xff] %vm466, %v476
        $region76: #{tpu_custom_call.1} parent=51 // pred_fallthru
          _
        %v479 = vld [vmem:[#allocation10] sm:$0xff]
        %v480 = vld [vmem:[#allocation10 + $0x8] sm:$0xff]
        %v481 = vld [vmem:[#allocation10 + $0x10] sm:$0xff]
        %v482 = vld [vmem:[#allocation10 + $0x18] sm:$0xff]
        %v483 = vld [vmem:[#allocation10 + $0x20] sm:$0xff]
        %v484 = vld [vmem:[#allocation10 + $0x28] sm:$0xff]
        %v485 = vld [vmem:[#allocation10 + $0x30] sm:$0xff]
        %v486 = vld [vmem:[#allocation10 + $0x38] sm:$0xff]
        %v487 = vld [vmem:[#allocation11] sm:$0xff]
        %v488 = vld [vmem:[#allocation11 + $0x8] sm:$0xff]
        %v489 = vld [vmem:[%s387] sm:$0xff]
        %v490 = vld [vmem:[%s452] sm:$0xf]
        %v491 = vld [vmem:[%s396] sm:$0xff]
        %v492 = vld [vmem:[%s396 + $0x8] sm:$0xff]
        %v493 = vld [vmem:[%s396 + $0x10] sm:$0xff]
        %v494 = vld [vmem:[%s396 + $0x18] sm:$0xff]
        %v495 = vld [vmem:[%s396 + $0x20] sm:$0xff]
        %v496 = vld [vmem:[%s396 + $0x28] sm:$0xff]
        %v497 = vld [vmem:[%s396 + $0x30] sm:$0xff]
        %v498 = vld [vmem:[%s396 + $0x38] sm:$0xff]
        %v499 = vld [vmem:[%s396 + $0x40] sm:$0xff]
        %v500 = vld [vmem:[%s396 + $0x48] sm:$0xff]
        %v501 = vld [vmem:[%s396 + $0x50] sm:$0xff]
        %v502 = vld [vmem:[%s396 + $0x58] sm:$0xff]
        %v503 = vld [vmem:[%s396 + $0x60] sm:$0xff]
        %v504 = vld [vmem:[%s396 + $0x68] sm:$0xff]
        %v505 = vld [vmem:[%s396 + $0x70] sm:$0xff]
        %v506 = vld [vmem:[%s396 + $0x78] sm:$0xff]
        %v507 = vld [vmem:[%s405] sm:$0xff]
        %v508 = vld [vmem:[%s405 + $0x8] sm:$0xff]
        %v509 = vld [vmem:[%s405 + $0x10] sm:$0xff]
        %v510 = vld [vmem:[%s405 + $0x18] sm:$0xff]
        %v511 = vld [vmem:[%s405 + $0x20] sm:$0xff]
        %v512 = vld [vmem:[%s405 + $0x28] sm:$0xff]
        %v513 = vld [vmem:[%s405 + $0x30] sm:$0xff]
        %v514 = vld [vmem:[%s405 + $0x38] sm:$0xff]
        %vm515 = vcmask 261120
        %v516 = vsel %vm515, %v479, 0.0
        %517 = vadd.xlane.f32.xlu0 %v516
        %v518 = vpop.xlane.xlu0 %517
        %v519 = vsel %vm515, %v480, 0.0
        %520 = vadd.xlane.f32.xlu0 %v519
        %v521 = vpop.xlane.xlu0 %520
        %v522 = vsel %vm515, %v481, 0.0
        %523 = vadd.xlane.f32.xlu0 %v522
        %v524 = vpop.xlane.xlu0 %523
        %v525 = vsel %vm515, %v482, 0.0
        %526 = vadd.xlane.f32.xlu0 %v525
        %v527 = vpop.xlane.xlu0 %526
        %v528 = vsel %vm515, %v483, 0.0
        %529 = vadd.xlane.f32.xlu0 %v528
        %v530 = vpop.xlane.xlu0 %529
        %v531 = vsel %vm515, %v484, 0.0
        %532 = vadd.xlane.f32.xlu0 %v531
        %v533 = vpop.xlane.xlu0 %532
        %v534 = vsel %vm515, %v485, 0.0
        %535 = vadd.xlane.f32.xlu0 %v534
        %v536 = vpop.xlane.xlu0 %535
        %v537 = vsel %vm515, %v486, 0.0
        %538 = vadd.xlane.f32.xlu0 %v537
        %v539 = vpop.xlane.xlu0 %538
        %v540 = vrcp.pop 32.0
        %v541 = vmul.f32 %v518, %v540
        %v542 = vmul.f32 %v521, %v540
        %v543 = vmul.f32 %v524, %v540
        %v544 = vmul.f32 %v527, %v540
        %v545 = vmul.f32 %v530, %v540
        %v546 = vmul.f32 %v533, %v540
        %v547 = vmul.f32 %v536, %v540
        %v548 = vmul.f32 %v539, %v540
        %v549 = vsub.f32 %v479, %v541
        %v550 = vsub.f32 %v480, %v542
        %v551 = vsub.f32 %v481, %v543
        %v552 = vsub.f32 %v482, %v544
        %v553 = vsub.f32 %v483, %v545
        %v554 = vsub.f32 %v484, %v546
        %v555 = vsub.f32 %v485, %v547
        %v556 = vsub.f32 %v486, %v548
        %v557 = vmul.f32 %v549, %v549
        %v558 = vmul.f32 %v550, %v550
        %v559 = vmul.f32 %v551, %v551
        %v560 = vmul.f32 %v552, %v552
        %v561 = vmul.f32 %v553, %v553
        %v562 = vmul.f32 %v554, %v554
        %v563 = vmul.f32 %v555, %v555
        %v564 = vmul.f32 %v556, %v556
        %v565 = vsel %vm515, %v557, 0.0
        %566 = vadd.xlane.f32.xlu0 %v565
        %v567 = vpop.xlane.xlu0 %566
        %v568 = vsel %vm515, %v558, 0.0
        %569 = vadd.xlane.f32.xlu0 %v568
        %v570 = vpop.xlane.xlu0 %569
        %v571 = vsel %vm515, %v559, 0.0
        %572 = vadd.xlane.f32.xlu0 %v571
        %v573 = vpop.xlane.xlu0 %572
        %v574 = vsel %vm515, %v560, 0.0
        %575 = vadd.xlane.f32.xlu0 %v574
        %v576 = vpop.xlane.xlu0 %575
        %v577 = vsel %vm515, %v561, 0.0
        %578 = vadd.xlane.f32.xlu0 %v577
        %v579 = vpop.xlane.xlu0 %578
        %v580 = vsel %vm515, %v562, 0.0
        %581 = vadd.xlane.f32.xlu0 %v580
        %v582 = vpop.xlane.xlu0 %581
        %v583 = vsel %vm515, %v563, 0.0
        %584 = vadd.xlane.f32.xlu0 %v583
        %v585 = vpop.xlane.xlu0 %584
        %v586 = vsel %vm515, %v564, 0.0
        %587 = vadd.xlane.f32.xlu0 %v586
        %v588 = vpop.xlane.xlu0 %587
        %v589 = vmul.f32 %v567, %v540
        %v590 = vmul.f32 %v570, %v540
        %v591 = vmul.f32 %v573, %v540
        %v592 = vmul.f32 %v576, %v540
        %v593 = vmul.f32 %v579, %v540
        %v594 = vmul.f32 %v582, %v540
        %v595 = vmul.f32 %v585, %v540
        %v596 = vmul.f32 %v588, %v540
        %v597 = vadd.f32 %v589, 1e-05
        %v598 = vadd.f32 %v590, 1e-05
        %v599 = vadd.f32 %v591, 1e-05
        %v600 = vadd.f32 %v592, 1e-05
        %v601 = vadd.f32 %v593, 1e-05
        %v602 = vadd.f32 %v594, 1e-05
        %v603 = vadd.f32 %v595, 1e-05
        %v604 = vadd.f32 %v596, 1e-05
        %v605 = vrsqrt.pop %v597
        %v606 = vrsqrt.pop %v598
        %v607 = vrsqrt.pop %v599
        %v608 = vrsqrt.pop %v600
        %v609 = vrsqrt.pop %v601
        %v610 = vrsqrt.pop %v602
        %v611 = vrsqrt.pop %v603
        %v612 = vrsqrt.pop %v604
        %v613 = vmul.f32 %v549, %v605
        %v614 = vmul.f32 %v550, %v606
        %v615 = vmul.f32 %v551, %v607
        %v616 = vmul.f32 %v552, %v608
        %v617 = vmul.f32 %v553, %v609
        %v618 = vmul.f32 %v554, %v610
        %v619 = vmul.f32 %v555, %v611
        %v620 = vmul.f32 %v556, %v612
        %v621 = vlaneseq
        %v622 = vshrl.u32 %v621, 7
        %v623 = vsub.s32 0, %v622
        %v624 = vrot.slane %v489, %v623
        %v625 = vmul.f32 %v613, %v624
        %v626 = vmul.f32 %v614, %v624
        %v627 = vmul.f32 %v615, %v624
        %v628 = vmul.f32 %v616, %v624
        %v629 = vmul.f32 %v617, %v624
        %v630 = vmul.f32 %v618, %v624
        %v631 = vmul.f32 %v619, %v624
        %v632 = vmul.f32 %v620, %v624
        %v633 = vlaneseq
        %v634 = vshrl.u32 %v633, 7
        %v635 = vsub.s32 1, %v634
        %v636 = vrot.slane %v489, %v635
        %v637 = vadd.f32 %v625, %v636
        %v638 = vadd.f32 %v626, %v636
        %v639 = vadd.f32 %v627, %v636
        %v640 = vadd.f32 %v628, %v636
        %v641 = vadd.f32 %v629, %v636
        %v642 = vadd.f32 %v630, %v636
        %v643 = vadd.f32 %v631, %v636
        %v644 = vadd.f32 %v632, %v636
        %v645 = vsel %vm515, %v487, 0.0
        %646 = vadd.xlane.f32.xlu0 %v645
        %v647 = vpop.xlane.xlu0 %646
        %v648 = vsel %vm515, %v488, 0.0
        %649 = vadd.xlane.f32.xlu0 %v648
        %v650 = vpop.xlane.xlu0 %649
        %v651 = vmul.f32 %v647, %v540
        %v652 = vmul.f32 %v650, %v540
        %v653 = vsub.f32 %v487, %v651
        %v654 = vsub.f32 %v488, %v652
        %v655 = vmul.f32 %v653, %v653
        %v656 = vmul.f32 %v654, %v654
        %v657 = vsel %vm515, %v655, 0.0
        %658 = vadd.xlane.f32.xlu0 %v657
        %v659 = vpop.xlane.xlu0 %658
        %v660 = vsel %vm515, %v656, 0.0
        %661 = vadd.xlane.f32.xlu0 %v660
        %v662 = vpop.xlane.xlu0 %661
        %v663 = vmul.f32 %v659, %v540
        %v664 = vmul.f32 %v662, %v540
        %v665 = vadd.f32 %v663, 1e-05
        %v666 = vadd.f32 %v664, 1e-05
        %v667 = vrsqrt.pop %v665
        %v668 = vrsqrt.pop %v666
        %v669 = vmul.f32 %v653, %v667
        %v670 = vmul.f32 %v654, %v668
        %v671 = vlaneseq
        %v672 = vshrl.u32 %v671, 7
        %v673 = vsub.s32 2, %v672
        %v674 = vrot.slane %v489, %v673
        %v675 = vmul.f32 %v669, %v674
        %v676 = vmul.f32 %v670, %v674
        %v677 = vlaneseq
        %v678 = vshrl.u32 %v677, 7
        %v679 = vsub.s32 3, %v678
        %v680 = vrot.slane %v489, %v679
        %v681 = vadd.f32 %v675, %v680
        %v682 = vadd.f32 %v676, %v680
        %v683 = vpack.c.bf16 %v638, %v637
        %v684 = vpack.c.bf16 %v640, %v639
        %v685 = vpack.c.bf16 %v642, %v641
        %v686 = vpack.c.bf16 %v644, %v643
        %v687 = vpack.c.bf16 %v681, %v681
        %v688 = vpack.c.bf16 %v682, %v682
        %v689 = vpack.c.bf16 %v492, %v491
        %v690 = vpack.c.bf16 %v494, %v493
        %v692 = vsel %vm515, %v683, 0
        %v695 = vsel %vm515, %v684, 0
        %v698 = vsel %vm515, %v685, 0
        %v701 = vsel %vm515, %v686, 0
        %703 = vmatprep.subr.bf16.mxu0 0
        %704 = vmatpush1.bf16.msra.mxu0 %v689
        %705 = vmatprep.subr.bf16.mxu0 0
        %706 = vmatpush1.bf16.msra.mxu0 %v690
        %707 = vmatprep.subr.bf16.mxu0 0
        %708 = vmatpush1.bf16.msra.mxu0 0
        %709 = vmatprep.subr.bf16.mxu0 0
        %710 = vmatpush1.bf16.msra.mxu0 0
        %711 = vmatprep.subr.bf16.mxu0 0
        %712 = vmatpush1.bf16.msra.mxu0 0
        %713 = vmatprep.subr.bf16.mxu0 0
        %714 = vmatpush1.bf16.msra.mxu0 0
        %715 = vmatprep.subr.bf16.mxu0 0
        %716 = vmatpush1.bf16.msra.mxu0 0
        %717 = vmatprep.subr.bf16.mxu0 0
        %718 = vmatpush1.bf16.msra.mxu0 0
        %719 = vmatprep.subr.bf16.mxu0 0
        %720 = vmatpush1.bf16.msra.mxu0 0
        %721 = vmatprep.subr.bf16.mxu0 0
        %722 = vmatpush1.bf16.msra.mxu0 0
        %723 = vmatprep.subr.bf16.mxu0 0
        %724 = vmatpush1.bf16.msra.mxu0 0
        %725 = vmatprep.subr.bf16.mxu0 0
        %726 = vmatpush1.bf16.msra.mxu0 0
        %727 = vmatprep.subr.bf16.mxu0 0
        %728 = vmatpush1.bf16.msra.mxu0 0
        %729 = vmatprep.subr.bf16.mxu0 0
        %730 = vmatpush1.bf16.msra.mxu0 0
        %731 = vmatprep.subr.bf16.mxu0 0
        %732 = vmatpush1.bf16.msra.mxu0 0
        %733 = vmatprep.subr.bf16.mxu0 0
        %734 = vmatpush1.bf16.msra.mxu0 0
        %735 = vmatprep.mubr.bf16.mxu0 0
        %736 = vmatmul.mubr.bf16.gmra.mrb[0].mxu0 %v692
        %v737 = vpop.f32.mrb[0].mxu0
        %v738 = vadd.f32 0.0, %v737
        %v739 = vpop.f32.mrb[0].mxu0
        %v740 = vpop.f32.mrb[0].mxu0
        %v741 = vadd.f32 0.0, %v740
        %v742 = vpop.f32.mrb[0].mxu0
        %743 = vmatprep.mubr.bf16.mxu0 0
        %744 = vmatmul.mubr.bf16.gmra.mrb[0].mxu0 %v695
        %v745 = vpop.f32.mrb[0].mxu0
        %v746 = vadd.f32 0.0, %v745
        %v747 = vpop.f32.mrb[0].mxu0
        %v748 = vpop.f32.mrb[0].mxu0
        %v749 = vadd.f32 0.0, %v748
        %v750 = vpop.f32.mrb[0].mxu0
        %751 = vmatprep.mubr.bf16.mxu0 0
        %752 = vmatmul.mubr.bf16.gmra.mrb[0].mxu0 %v698
        %v753 = vpop.f32.mrb[0].mxu0
        %v754 = vadd.f32 0.0, %v753
        %v755 = vpop.f32.mrb[0].mxu0
        %v756 = vpop.f32.mrb[0].mxu0
        %v757 = vadd.f32 0.0, %v756
        %v758 = vpop.f32.mrb[0].mxu0
        %759 = vmatprep.mubr.bf16.mxu0 0
        %760 = vmatmul.mubr.bf16.gmra.mrb[0].mxu0 %v701
        %v761 = vpop.f32.mrb[0].mxu0
        %v762 = vadd.f32 0.0, %v761
        %v763 = vpop.f32.mrb[0].mxu0
        %v764 = vpop.f32.mrb[0].mxu0
        %v765 = vadd.f32 0.0, %v764
        %v766 = vpop.f32.mrb[0].mxu0
        %767 = vdwg.mxu0
        %v768 = vlaneseq
        %v769 = vshrl.u32 %v768, 7
        %v770 = vsub.s32 0, %v769
        %v771 = vrot.slane %v490, %v770
        %v772 = vadd.f32 %v738, %v771
        %v773 = vadd.f32 %v741, %v771
        %v774 = vadd.f32 %v746, %v771
        %v775 = vadd.f32 %v749, %v771
        %v776 = vadd.f32 %v754, %v771
        %v777 = vadd.f32 %v757, %v771
        %v778 = vadd.f32 %v762, %v771
        %v779 = vadd.f32 %v765, %v771
        %v780 = vmul.f32 %v772, 0.25
        %v781 = vmul.f32 %v773, 0.25
        %v782 = vmul.f32 %v774, 0.25
        %v783 = vmul.f32 %v775, 0.25
        %v784 = vmul.f32 %v776, 0.25
        %v785 = vmul.f32 %v777, 0.25
        %v786 = vmul.f32 %v778, 0.25
        %v787 = vmul.f32 %v779, 0.25
        %v788 = vpack.c.bf16 %v496, %v495
        %v789 = vpack.c.bf16 %v498, %v497
        %v792 = vunpack.c.l.b16 %v687
        %v793 = vunpack.c.l.b16 %v688
        %v794 = vpack.c.b16 %v793, %v792
        %v796 = vsel %vm515, %v794, 0
        %798 = vmatprep.subr.bf16.mxu0 0
        %799 = vmatpush1.bf16.msra.mxu0 %v788
        %800 = vmatprep.subr.bf16.mxu0 0
        %801 = vmatpush1.bf16.msra.mxu0 %v789
        %802 = vmatprep.subr.bf16.mxu0 0
        %803 = vmatpush1.bf16.msra.mxu0 0
        %804 = vmatprep.subr.bf16.mxu0 0
        %805 = vmatpush1.bf16.msra.mxu0 0
        %806 = vmatprep.subr.bf16.mxu0 0
        %807 = vmatpush1.bf16.msra.mxu0 0
        %808 = vmatprep.subr.bf16.mxu0 0
        %809 = vmatpush1.bf16.msra.mxu0 0
        %810 = vmatprep.subr.bf16.mxu0 0
        %811 = vmatpush1.bf16.msra.mxu0 0
        %812 = vmatprep.subr.bf16.mxu0 0
        %813 = vmatpush1.bf16.msra.mxu0 0
        %814 = vmatprep.subr.bf16.mxu0 0
        %815 = vmatpush1.bf16.msra.mxu0 0
        %816 = vmatprep.subr.bf16.mxu0 0
        %817 = vmatpush1.bf16.msra.mxu0 0
        %818 = vmatprep.subr.bf16.mxu0 0
        %819 = vmatpush1.bf16.msra.mxu0 0
        %820 = vmatprep.subr.bf16.mxu0 0
        %821 = vmatpush1.bf16.msra.mxu0 0
        %822 = vmatprep.subr.bf16.mxu0 0
        %823 = vmatpush1.bf16.msra.mxu0 0
        %824 = vmatprep.subr.bf16.mxu0 0
        %825 = vmatpush1.bf16.msra.mxu0 0
        %826 = vmatprep.subr.bf16.mxu0 0
        %827 = vmatpush1.bf16.msra.mxu0 0
        %828 = vmatprep.subr.bf16.mxu0 0
        %829 = vmatpush1.bf16.msra.mxu0 0
        %830 = vmatprep.mubr.bf16.mxu0 0
        %831 = vmatmul.mubr.bf16.gmra.mrb[0].mxu0 %v796
        %v832 = vpop.f32.mrb[0].mxu0
        %v833 = vadd.f32 0.0, %v832
        %v834 = vpop.f32.mrb[0].mxu0
        %v835 = vpop.f32.mrb[0].mxu0
        %v836 = vadd.f32 0.0, %v835
        %v837 = vpop.f32.mrb[0].mxu0
        %838 = vdwg.mxu0
        %v839 = vlaneseq
        %v840 = vshrl.u32 %v839, 7
        %v841 = vsub.s32 1, %v840
        %v842 = vrot.slane %v490, %v841
        %v843 = vadd.f32 %v833, %v842
        %v844 = vadd.f32 %v836, %v842
        %v845 = vpack.c.bf16 %v500, %v499
        %v846 = vpack.c.bf16 %v502, %v501
        %847 = vmatprep.subr.bf16.mxu0 0
        %848 = vmatpush1.bf16.msra.mxu0 %v845
        %849 = vmatprep.subr.bf16.mxu0 0
        %850 = vmatpush1.bf16.msra.mxu0 %v846
        %851 = vmatprep.subr.bf16.mxu0 0
        %852 = vmatpush1.bf16.msra.mxu0 0
        %853 = vmatprep.subr.bf16.mxu0 0
        %854 = vmatpush1.bf16.msra.mxu0 0
        %855 = vmatprep.subr.bf16.mxu0 0
        %856 = vmatpush1.bf16.msra.mxu0 0
        %857 = vmatprep.subr.bf16.mxu0 0
        %858 = vmatpush1.bf16.msra.mxu0 0
        %859 = vmatprep.subr.bf16.mxu0 0
        %860 = vmatpush1.bf16.msra.mxu0 0
        %861 = vmatprep.subr.bf16.mxu0 0
        %862 = vmatpush1.bf16.msra.mxu0 0
        %863 = vmatprep.subr.bf16.mxu0 0
        %864 = vmatpush1.bf16.msra.mxu0 0
        %865 = vmatprep.subr.bf16.mxu0 0
        %866 = vmatpush1.bf16.msra.mxu0 0
        %867 = vmatprep.subr.bf16.mxu0 0
        %868 = vmatpush1.bf16.msra.mxu0 0
        %869 = vmatprep.subr.bf16.mxu0 0
        %870 = vmatpush1.bf16.msra.mxu0 0
        %871 = vmatprep.subr.bf16.mxu0 0
        %872 = vmatpush1.bf16.msra.mxu0 0
        %873 = vmatprep.subr.bf16.mxu0 0
        %874 = vmatpush1.bf16.msra.mxu0 0
        %875 = vmatprep.subr.bf16.mxu0 0
        %876 = vmatpush1.bf16.msra.mxu0 0
        %877 = vmatprep.subr.bf16.mxu0 0
        %878 = vmatpush1.bf16.msra.mxu0 0
        %879 = vmatprep.mubr.bf16.mxu0 0
        %880 = vmatmul.mubr.bf16.gmra.mrb[0].mxu0 %v692
        %v881 = vpop.f32.mrb[0].mxu0
        %v882 = vadd.f32 0.0, %v881
        %v883 = vpop.f32.mrb[0].mxu0
        %v884 = vpop.f32.mrb[0].mxu0
        %v885 = vadd.f32 0.0, %v884
        %v886 = vpop.f32.mrb[0].mxu0
        %887 = vmatprep.mubr.bf16.mxu0 0
        %888 = vmatmul.mubr.bf16.gmra.mrb[0].mxu0 %v695
        %v889 = vpop.f32.mrb[0].mxu0
        %v890 = vadd.f32 0.0, %v889
        %v891 = vpop.f32.mrb[0].mxu0
        %v892 = vpop.f32.mrb[0].mxu0
        %v893 = vadd.f32 0.0, %v892
        %v894 = vpop.f32.mrb[0].mxu0
        %895 = vmatprep.mubr.bf16.mxu0 0
        %896 = vmatmul.mubr.bf16.gmra.mrb[0].mxu0 %v698
        %v897 = vpop.f32.mrb[0].mxu0
        %v898 = vadd.f32 0.0, %v897
        %v899 = vpop.f32.mrb[0].mxu0
        %v900 = vpop.f32.mrb[0].mxu0
        %v901 = vadd.f32 0.0, %v900
        %v902 = vpop.f32.mrb[0].mxu0
        %903 = vmatprep.mubr.bf16.mxu0 0
        %904 = vmatmul.mubr.bf16.gmra.mrb[0].mxu0 %v701
        %v905 = vpop.f32.mrb[0].mxu0
        %v906 = vadd.f32 0.0, %v905
        %v907 = vpop.f32.mrb[0].mxu0
        %v908 = vpop.f32.mrb[0].mxu0
        %v909 = vadd.f32 0.0, %v908
        %v910 = vpop.f32.mrb[0].mxu0
        %911 = vdwg.mxu0
        %v912 = vlaneseq
        %v913 = vshrl.u32 %v912, 7
        %v914 = vsub.s32 2, %v913
        %v915 = vrot.slane %v490, %v914
        %v916 = vadd.f32 %v882, %v915
        %v917 = vadd.f32 %v885, %v915
        %v918 = vadd.f32 %v890, %v915
        %v919 = vadd.f32 %v893, %v915
        %v920 = vadd.f32 %v898, %v915
        %v921 = vadd.f32 %v901, %v915
        %v922 = vadd.f32 %v906, %v915
        %v923 = vadd.f32 %v909, %v915
        %v924 = vpack.c.bf16 %v504, %v503
        %v925 = vpack.c.bf16 %v506, %v505
        %926 = vmatprep.subr.bf16.mxu0 0
        %927 = vmatpush1.bf16.msra.mxu0 %v924
        %928 = vmatprep.subr.bf16.mxu0 0
        %929 = vmatpush1.bf16.msra.mxu0 %v925
        %930 = vmatprep.subr.bf16.mxu0 0
        %931 = vmatpush1.bf16.msra.mxu0 0
        %932 = vmatprep.subr.bf16.mxu0 0
        %933 = vmatpush1.bf16.msra.mxu0 0
        %934 = vmatprep.subr.bf16.mxu0 0
        %935 = vmatpush1.bf16.msra.mxu0 0
        %936 = vmatprep.subr.bf16.mxu0 0
        %937 = vmatpush1.bf16.msra.mxu0 0
        %938 = vmatprep.subr.bf16.mxu0 0
        %939 = vmatpush1.bf16.msra.mxu0 0
        %940 = vmatprep.subr.bf16.mxu0 0
        %941 = vmatpush1.bf16.msra.mxu0 0
        %942 = vmatprep.subr.bf16.mxu0 0
        %943 = vmatpush1.bf16.msra.mxu0 0
        %944 = vmatprep.subr.bf16.mxu0 0
        %945 = vmatpush1.bf16.msra.mxu0 0
        %946 = vmatprep.subr.bf16.mxu0 0
        %947 = vmatpush1.bf16.msra.mxu0 0
        %948 = vmatprep.subr.bf16.mxu0 0
        %949 = vmatpush1.bf16.msra.mxu0 0
        %950 = vmatprep.subr.bf16.mxu0 0
        %951 = vmatpush1.bf16.msra.mxu0 0
        %952 = vmatprep.subr.bf16.mxu0 0
        %953 = vmatpush1.bf16.msra.mxu0 0
        %954 = vmatprep.subr.bf16.mxu0 0
        %955 = vmatpush1.bf16.msra.mxu0 0
        %956 = vmatprep.subr.bf16.mxu0 0
        %957 = vmatpush1.bf16.msra.mxu0 0
        %958 = vmatprep.mubr.bf16.mxu0 0
        %959 = vmatmul.mubr.bf16.gmra.mrb[0].mxu0 %v796
        %v960 = vpop.f32.mrb[0].mxu0
        %v961 = vadd.f32 0.0, %v960
        %v962 = vpop.f32.mrb[0].mxu0
        %v963 = vpop.f32.mrb[0].mxu0
        %v964 = vadd.f32 0.0, %v963
        %v965 = vpop.f32.mrb[0].mxu0
        %966 = vdwg.mxu0
        %v967 = vlaneseq
        %v968 = vshrl.u32 %v967, 7
        %v969 = vsub.s32 3, %v968
        %v970 = vrot.slane %v490, %v969
        %v971 = vadd.f32 %v961, %v970
        %v972 = vadd.f32 %v964, %v970
        %v973 = vpack.c.bf16 %v781, %v780
        %v974 = vpack.c.bf16 %v783, %v782
        %v975 = vpack.c.bf16 %v785, %v784
        %v976 = vpack.c.bf16 %v787, %v786
        %v977 = vpack.c.bf16 %v843, %v843
        %v978 = vpack.c.bf16 %v844, %v844
        %v979 = vpack.c.bf16 %v917, %v916
        %v980 = vpack.c.bf16 %v919, %v918
        %v981 = vpack.c.bf16 %v921, %v920
        %v982 = vpack.c.bf16 %v923, %v922
        %v983 = vpack.c.bf16 %v971, %v971
        %v984 = vpack.c.bf16 %v972, %v972
        %v985 = vld [vmem:[%s2] sm:$0x3]
        %v986 = vld [vmem:[%s3] sm:$0x3]
        %vm987 = vcmp.gt.f32.partialorder %v985, 0.0
        %v988 = vsel %vm987, -inf, 0.0
        %v991 = vunpack.c.l.s4 1966171168
        %v992 = vunpack.c.0.s8 %v991
        %v993 = vlaneseq
        %v994 = vshrl.u32 %v993, 7
        %v995 = vsub.s32 %v992, %v994
        %v996 = vrot.slane %v988, %v995
        %v997 = vcombine.high %v996, %v996
        %v999 = vunpack.c.l.s4 1966171168
        %v1000 = vunpack.c.0.s8 %v999
        %v1001 = vlaneseq
        %v1002 = vshrl.u32 %v1001, 7
        %v1003 = vsub.s32 %v1000, %v1002
        %v1004 = vrot.slane %v996, %v1003
        %v1006 = vunpack.c.l.s4 1966171168
        %v1007 = vunpack.c.0.s8 %v1006
        %v1008 = vlaneseq
        %v1009 = vshrl.u32 %v1008, 7
        %v1010 = vsub.s32 %v1007, %v1009
        %v1011 = vrot.slane %v997, %v1010
        %v1012 = vlaneseq
        %v1013 = vshrl.u32 %v1012, 7
        %v1014 = vsub.s32 0, %v1013
        %v1015 = vrot.slane %v1004, %v1014
        %v1016 = vlaneseq
        %v1017 = vshrl.u32 %v1016, 7
        %v1018 = vsub.s32 0, %v1017
        %v1019 = vrot.slane %v1011, %v1018
        %vm1022 = vcmp.gt.f32.partialorder %v986, 0.0
        %v1023 = vsel %vm1022, -inf, 0.0
        %v1026 = vunpack.c.l.s4 1966171168
        %v1027 = vunpack.c.0.s8 %v1026
        %v1028 = vlaneseq
        %v1029 = vshrl.u32 %v1028, 7
        %v1030 = vsub.s32 %v1027, %v1029
        %v1031 = vrot.slane %v1023, %v1030
        %v1032 = vcombine.high %v1031, %v1031
        %v1034 = vunpack.c.l.s4 1966171168
        %v1035 = vunpack.c.0.s8 %v1034
        %v1036 = vlaneseq
        %v1037 = vshrl.u32 %v1036, 7
        %v1038 = vsub.s32 %v1035, %v1037
        %v1039 = vrot.slane %v1031, %v1038
        %v1041 = vunpack.c.l.s4 1966171168
        %v1042 = vunpack.c.0.s8 %v1041
        %v1043 = vlaneseq
        %v1044 = vshrl.u32 %v1043, 7
        %v1045 = vsub.s32 %v1042, %v1044
        %v1046 = vrot.slane %v1032, %v1045
        %v1047 = vlaneseq
        %v1048 = vshrl.u32 %v1047, 7
        %v1049 = vsub.s32 0, %v1048
        %v1050 = vrot.slane %v1039, %v1049
        %v1051 = vlaneseq
        %v1052 = vshrl.u32 %v1051, 7
        %v1053 = vsub.s32 0, %v1052
        %v1054 = vrot.slane %v1046, %v1053
        %vm1057 = vcmask 130048
        %v1059 = vsel %vm1057, %v973, 0
        %v1062 = vsel %vm1057, %v974, 0
        %v1065 = vsel %vm1057, %v977, 0
        %1067 = vmatprep.subr.bf16.mxu0 0
        %1068 = vmatpush1.bf16.xpose.msra.mxu0 %v1065
        %1069 = vmatprep.subr.bf16.mxu0 0
        %1070 = vmatpush1.bf16.xpose.msra.mxu0 0
        %1071 = vmatprep.subr.bf16.mxu0 0
        %1072 = vmatpush1.bf16.xpose.msra.mxu0 0
        %1073 = vmatprep.subr.bf16.mxu0 0
        %1074 = vmatpush1.bf16.xpose.msra.mxu0 0
        %1075 = vmatprep.subr.bf16.mxu0 0
        %1076 = vmatpush1.bf16.xpose.msra.mxu0 0
        %1077 = vmatprep.subr.bf16.mxu0 0
        %1078 = vmatpush1.bf16.xpose.msra.mxu0 0
        %1079 = vmatprep.subr.bf16.mxu0 0
        %1080 = vmatpush1.bf16.xpose.msra.mxu0 0
        %1081 = vmatprep.subr.bf16.mxu0 0
        %1082 = vmatpush1.bf16.xpose.msra.mxu0 0
        %1083 = vmatprep.subr.bf16.mxu0 0
        %1084 = vmatpush1.bf16.xpose.msra.mxu0 0
        %1085 = vmatprep.subr.bf16.mxu0 0
        %1086 = vmatpush1.bf16.xpose.msra.mxu0 0
        %1087 = vmatprep.subr.bf16.mxu0 0
        %1088 = vmatpush1.bf16.xpose.msra.mxu0 0
        %1089 = vmatprep.subr.bf16.mxu0 0
        %1090 = vmatpush1.bf16.xpose.msra.mxu0 0
        %1091 = vmatprep.subr.bf16.mxu0 0
        %1092 = vmatpush1.bf16.xpose.msra.mxu0 0
        %1093 = vmatprep.subr.bf16.mxu0 0
        %1094 = vmatpush1.bf16.xpose.msra.mxu0 0
        %1095 = vmatprep.subr.bf16.mxu0 0
        %1096 = vmatpush1.bf16.xpose.msra.mxu0 0
        %1097 = vmatprep.subr.bf16.mxu0 0
        %1098 = vmatpush1.bf16.xpose.msra.mxu0 0
        %1099 = vmatprep.mubr.bf16.mxu0 0
        %1100 = vmatmul.mubr.bf16.gmra.mrb[0].mxu0 %v1059
        %v1101 = vpop.f32.mrb[0].mxu0
        %v1102 = vadd.f32 0.0, %v1101
        %v1103 = vpop.f32.mrb[0].mxu0
        %v1104 = vpop.f32.mrb[0].mxu0
        %v1105 = vadd.f32 0.0, %v1104
        %v1106 = vpop.f32.mrb[0].mxu0
        %1107 = vmatprep.mubr.bf16.mxu0 0
        %1108 = vmatmul.mubr.bf16.gmra.mrb[0].mxu0 %v1062
        %v1109 = vpop.f32.mrb[0].mxu0
        %v1110 = vadd.f32 0.0, %v1109
        %v1111 = vpop.f32.mrb[0].mxu0
        %v1112 = vpop.f32.mrb[0].mxu0
        %v1113 = vadd.f32 0.0, %v1112
        %v1114 = vpop.f32.mrb[0].mxu0
        %1115 = vdwg.mxu0
        %v1117 = vsel %vm1057, %v975, 0
        %v1120 = vsel %vm1057, %v976, 0
        %v1123 = vsel %vm1057, %v978, 0
        %1125 = vmatprep.subr.bf16.mxu0 0
        %1126 = vmatpush1.bf16.xpose.msra.mxu0 %v1123
        %1127 = vmatprep.subr.bf16.mxu0 0
        %1128 = vmatpush1.bf16.xpose.msra.mxu0 0
        %1129 = vmatprep.subr.bf16.mxu0 0
        %1130 = vmatpush1.bf16.xpose.msra.mxu0 0
        %1131 = vmatprep.subr.bf16.mxu0 0
        %1132 = vmatpush1.bf16.xpose.msra.mxu0 0
        %1133 = vmatprep.subr.bf16.mxu0 0
        %1134 = vmatpush1.bf16.xpose.msra.mxu0 0
        %1135 = vmatprep.subr.bf16.mxu0 0
        %1136 = vmatpush1.bf16.xpose.msra.mxu0 0
        %1137 = vmatprep.subr.bf16.mxu0 0
        %1138 = vmatpush1.bf16.xpose.msra.mxu0 0
        %1139 = vmatprep.subr.bf16.mxu0 0
        %1140 = vmatpush1.bf16.xpose.msra.mxu0 0
        %1141 = vmatprep.subr.bf16.mxu0 0
        %1142 = vmatpush1.bf16.xpose.msra.mxu0 0
        %1143 = vmatprep.subr.bf16.mxu0 0
        %1144 = vmatpush1.bf16.xpose.msra.mxu0 0
        %1145 = vmatprep.subr.bf16.mxu0 0
        %1146 = vmatpush1.bf16.xpose.msra.mxu0 0
        %1147 = vmatprep.subr.bf16.mxu0 0
        %1148 = vmatpush1.bf16.xpose.msra.mxu0 0
        %1149 = vmatprep.subr.bf16.mxu0 0
        %1150 = vmatpush1.bf16.xpose.msra.mxu0 0
        %1151 = vmatprep.subr.bf16.mxu0 0
        %1152 = vmatpush1.bf16.xpose.msra.mxu0 0
        %1153 = vmatprep.subr.bf16.mxu0 0
        %1154 = vmatpush1.bf16.xpose.msra.mxu0 0
        %1155 = vmatprep.subr.bf16.mxu0 0
        %1156 = vmatpush1.bf16.xpose.msra.mxu0 0
        %1157 = vmatprep.mubr.bf16.mxu0 0
        %1158 = vmatmul.mubr.bf16.gmra.mrb[0].mxu0 %v1117
        %v1159 = vpop.f32.mrb[0].mxu0
        %v1160 = vadd.f32 0.0, %v1159
        %v1161 = vpop.f32.mrb[0].mxu0
        %v1162 = vpop.f32.mrb[0].mxu0
        %v1163 = vadd.f32 0.0, %v1162
        %v1164 = vpop.f32.mrb[0].mxu0
        %1165 = vmatprep.mubr.bf16.mxu0 0
        %1166 = vmatmul.mubr.bf16.gmra.mrb[0].mxu0 %v1120
        %v1167 = vpop.f32.mrb[0].mxu0
        %v1168 = vadd.f32 0.0, %v1167
        %v1169 = vpop.f32.mrb[0].mxu0
        %v1170 = vpop.f32.mrb[0].mxu0
        %v1171 = vadd.f32 0.0, %v1170
        %v1172 = vpop.f32.mrb[0].mxu0
        %1173 = vdwg.mxu0
        %1176 = vrot.lane.b32.xlu0 %v973, 112
        %v1177 = vpop.permute.xlu0 %1176
        %1178 = vrot.lane.b32.xlu0 %v974, 112
        %v1179 = vpop.permute.xlu0 %1178
        %1181 = vrot.lane.b32.xlu0 %v977, 112
        %v1182 = vpop.permute.xlu0 %1181
        %v1184 = vsel %vm1057, %v1177, 0
        %v1187 = vsel %vm1057, %v1179, 0
        %v1190 = vsel %vm1057, %v1182, 0
        %1192 = vmatprep.subr.bf16.mxu0 0
        %1193 = vmatpush1.bf16.xpose.msra.mxu0 %v1190
        %1194 = vmatprep.subr.bf16.mxu0 0
        %1195 = vmatpush1.bf16.xpose.msra.mxu0 0
        %1196 = vmatprep.subr.bf16.mxu0 0
        %1197 = vmatpush1.bf16.xpose.msra.mxu0 0
        %1198 = vmatprep.subr.bf16.mxu0 0
        %1199 = vmatpush1.bf16.xpose.msra.mxu0 0
        %1200 = vmatprep.subr.bf16.mxu0 0
        %1201 = vmatpush1.bf16.xpose.msra.mxu0 0
        %1202 = vmatprep.subr.bf16.mxu0 0
        %1203 = vmatpush1.bf16.xpose.msra.mxu0 0
        %1204 = vmatprep.subr.bf16.mxu0 0
        %1205 = vmatpush1.bf16.xpose.msra.mxu0 0
        %1206 = vmatprep.subr.bf16.mxu0 0
        %1207 = vmatpush1.bf16.xpose.msra.mxu0 0
        %1208 = vmatprep.subr.bf16.mxu0 0
        %1209 = vmatpush1.bf16.xpose.msra.mxu0 0
        %1210 = vmatprep.subr.bf16.mxu0 0
        %1211 = vmatpush1.bf16.xpose.msra.mxu0 0
        %1212 = vmatprep.subr.bf16.mxu0 0
        %1213 = vmatpush1.bf16.xpose.msra.mxu0 0
        %1214 = vmatprep.subr.bf16.mxu0 0
        %1215 = vmatpush1.bf16.xpose.msra.mxu0 0
        %1216 = vmatprep.subr.bf16.mxu0 0
        %1217 = vmatpush1.bf16.xpose.msra.mxu0 0
        %1218 = vmatprep.subr.bf16.mxu0 0
        %1219 = vmatpush1.bf16.xpose.msra.mxu0 0
        %1220 = vmatprep.subr.bf16.mxu0 0
        %1221 = vmatpush1.bf16.xpose.msra.mxu0 0
        %1222 = vmatprep.subr.bf16.mxu0 0
        %1223 = vmatpush1.bf16.xpose.msra.mxu0 0
        %1224 = vmatprep.mubr.bf16.mxu0 0
        %1225 = vmatmul.mubr.bf16.gmra.mrb[0].mxu0 %v1184
        %v1226 = vpop.f32.mrb[0].mxu0
        %v1227 = vadd.f32 0.0, %v1226
        %v1228 = vpop.f32.mrb[0].mxu0
        %v1229 = vpop.f32.mrb[0].mxu0
        %v1230 = vadd.f32 0.0, %v1229
        %v1231 = vpop.f32.mrb[0].mxu0
        %1232 = vmatprep.mubr.bf16.mxu0 0
        %1233 = vmatmul.mubr.bf16.gmra.mrb[0].mxu0 %v1187
        %v1234 = vpop.f32.mrb[0].mxu0
        %v1235 = vadd.f32 0.0, %v1234
        %v1236 = vpop.f32.mrb[0].mxu0
        %v1237 = vpop.f32.mrb[0].mxu0
        %v1238 = vadd.f32 0.0, %v1237
        %v1239 = vpop.f32.mrb[0].mxu0
        %1240 = vdwg.mxu0
        %1243 = vrot.lane.b32.xlu0 %v975, 112
        %v1244 = vpop.permute.xlu0 %1243
        %1245 = vrot.lane.b32.xlu0 %v976, 112
        %v1246 = vpop.permute.xlu0 %1245
        %1248 = vrot.lane.b32.xlu0 %v978, 112
        %v1249 = vpop.permute.xlu0 %1248
        %v1251 = vsel %vm1057, %v1244, 0
        %v1254 = vsel %vm1057, %v1246, 0
        %v1257 = vsel %vm1057, %v1249, 0
        %1259 = vmatprep.subr.bf16.mxu0 0
        %1260 = vmatpush1.bf16.xpose.msra.mxu0 %v1257
        %1261 = vmatprep.subr.bf16.mxu0 0
        %1262 = vmatpush1.bf16.xpose.msra.mxu0 0
        %1263 = vmatprep.subr.bf16.mxu0 0
        %1264 = vmatpush1.bf16.xpose.msra.mxu0 0
        %1265 = vmatprep.subr.bf16.mxu0 0
        %1266 = vmatpush1.bf16.xpose.msra.mxu0 0
        %1267 = vmatprep.subr.bf16.mxu0 0
        %1268 = vmatpush1.bf16.xpose.msra.mxu0 0
        %1269 = vmatprep.subr.bf16.mxu0 0
        %1270 = vmatpush1.bf16.xpose.msra.mxu0 0
        %1271 = vmatprep.subr.bf16.mxu0 0
        %1272 = vmatpush1.bf16.xpose.msra.mxu0 0
        %1273 = vmatprep.subr.bf16.mxu0 0
        %1274 = vmatpush1.bf16.xpose.msra.mxu0 0
        %1275 = vmatprep.subr.bf16.mxu0 0
        %1276 = vmatpush1.bf16.xpose.msra.mxu0 0
        %1277 = vmatprep.subr.bf16.mxu0 0
        %1278 = vmatpush1.bf16.xpose.msra.mxu0 0
        %1279 = vmatprep.subr.bf16.mxu0 0
        %1280 = vmatpush1.bf16.xpose.msra.mxu0 0
        %1281 = vmatprep.subr.bf16.mxu0 0
        %1282 = vmatpush1.bf16.xpose.msra.mxu0 0
        %1283 = vmatprep.subr.bf16.mxu0 0
        %1284 = vmatpush1.bf16.xpose.msra.mxu0 0
        %1285 = vmatprep.subr.bf16.mxu0 0
        %1286 = vmatpush1.bf16.xpose.msra.mxu0 0
        %1287 = vmatprep.subr.bf16.mxu0 0
        %1288 = vmatpush1.bf16.xpose.msra.mxu0 0
        %1289 = vmatprep.subr.bf16.mxu0 0
        %1290 = vmatpush1.bf16.xpose.msra.mxu0 0
        %1291 = vmatprep.mubr.bf16.mxu0 0
        %1292 = vmatmul.mubr.bf16.gmra.mrb[0].mxu0 %v1251
        %v1293 = vpop.f32.mrb[0].mxu0
        %v1294 = vadd.f32 0.0, %v1293
        %v1295 = vpop.f32.mrb[0].mxu0
        %v1296 = vpop.f32.mrb[0].mxu0
        %v1297 = vadd.f32 0.0, %v1296
        %v1298 = vpop.f32.mrb[0].mxu0
        %1299 = vmatprep.mubr.bf16.mxu0 0
        %1300 = vmatmul.mubr.bf16.gmra.mrb[0].mxu0 %v1254
        %v1301 = vpop.f32.mrb[0].mxu0
        %v1302 = vadd.f32 0.0, %v1301
        %v1303 = vpop.f32.mrb[0].mxu0
        %v1304 = vpop.f32.mrb[0].mxu0
        %v1305 = vadd.f32 0.0, %v1304
        %v1306 = vpop.f32.mrb[0].mxu0
        %1307 = vdwg.mxu0
        %vm1308 = vcmask 64512
        %v1309 = vsel %vm1308, %v1102, -inf
        %v1310 = vsel %vm1308, %v1105, -inf
        %v1311 = vsel %vm1308, %v1110, -inf
        %v1312 = vsel %vm1308, %v1113, -inf
        %v1313 = vsel %vm1308, %v1160, -inf
        %v1314 = vmax.f32 %v1309, %v1313
        %v1315 = vsel %vm1308, %v1163, -inf
        %v1316 = vmax.f32 %v1310, %v1315
        %v1317 = vsel %vm1308, %v1168, -inf
        %v1318 = vmax.f32 %v1311, %v1317
        %v1319 = vsel %vm1308, %v1171, -inf
        %v1320 = vmax.f32 %v1312, %v1319
        %v1321 = vmax.f32 %v1314, %v1316
        %v1322 = vmax.f32 %v1318, %v1320
        %v1323 = vmax.f32 %v1321, %v1322
        %1324 = vmax.xlane.f32.xlu0 %v1323
        %v1325 = vpop.xlane.xlu0 %1324
        %v1326 = vrot.slane %v1325, 4
        %v1327 = vmax.f32 %v1325, %v1326
        %v1328 = vrot.slane %v1327, 2
        %v1329 = vmax.f32 %v1327, %v1328
        %v1330 = vrot.slane %v1329, 1
        %v1331 = vmax.f32 %v1329, %v1330
        %s1332 = vtos %v1331
        %v1333 = vsel %vm1308, %v1227, -inf
        %v1334 = vsel %vm1308, %v1230, -inf
        %v1335 = vsel %vm1308, %v1235, -inf
        %v1336 = vsel %vm1308, %v1238, -inf
        %v1337 = vsel %vm1308, %v1294, -inf
        %v1338 = vmax.f32 %v1333, %v1337
        %v1339 = vsel %vm1308, %v1297, -inf
        %v1340 = vmax.f32 %v1334, %v1339
        %v1341 = vsel %vm1308, %v1302, -inf
        %v1342 = vmax.f32 %v1335, %v1341
        %v1343 = vsel %vm1308, %v1305, -inf
        %v1344 = vmax.f32 %v1336, %v1343
        %v1345 = vmax.f32 %v1338, %v1340
        %v1346 = vmax.f32 %v1342, %v1344
        %v1347 = vmax.f32 %v1345, %v1346
        %1348 = vmax.xlane.f32.xlu0 %v1347
        %v1349 = vpop.xlane.xlu0 %1348
        %v1350 = vrot.slane %v1349, 4
        %v1351 = vmax.f32 %v1349, %v1350
        %v1352 = vrot.slane %v1351, 2
        %v1353 = vmax.f32 %v1351, %v1352
        %v1354 = vrot.slane %v1353, 1
        %v1355 = vmax.f32 %v1353, %v1354
        %s1356 = vtos %v1355
        %s1357 = smax.f32 %s1332, %s1356
        %v1358 = vstv %s1357
        %v1359 = vsub.f32 %v1102, %v1358
        %v1360 = vsub.f32 %v1105, %v1358
        %v1361 = vsub.f32 %v1110, %v1358
        %v1362 = vsub.f32 %v1113, %v1358
        %v1363 = vsub.f32 %v1160, %v1358
        %v1364 = vsub.f32 %v1163, %v1358
        %v1365 = vsub.f32 %v1168, %v1358
        %v1366 = vsub.f32 %v1171, %v1358
        %v1367 = vmax.f32 %v1359, -50000.0
        %v1368 = vmax.f32 %v1360, -50000.0
        %v1369 = vmax.f32 %v1361, -50000.0
        %v1370 = vmax.f32 %v1362, -50000.0
        %v1371 = vmax.f32 %v1363, -50000.0
        %v1372 = vmax.f32 %v1364, -50000.0
        %v1373 = vmax.f32 %v1365, -50000.0
        %v1374 = vmax.f32 %v1366, -50000.0
        %v1375 = vmin.f32 %v1367, 50000.0
        %v1376 = vmin.f32 %v1368, 50000.0
        %v1377 = vmin.f32 %v1369, 50000.0
        %v1378 = vmin.f32 %v1370, 50000.0
        %v1379 = vmin.f32 %v1371, 50000.0
        %v1380 = vmin.f32 %v1372, 50000.0
        %v1381 = vmin.f32 %v1373, 50000.0
        %v1382 = vmin.f32 %v1374, 50000.0
        %1383 = vxpose.xlu0.b32.start [1/16] %v1375, 128
        %1384 = vxpose.xlu0.b32.cont [2/16] %v1376, 128
        %1385 = vxpose.xlu0.b32.cont [3/16] %v1377, 128
        %1386 = vxpose.xlu0.b32.cont [4/16] %v1378, 128
        %1387 = vxpose.xlu0.b32.cont [5/16] 0.0, 128
        %1388 = vxpose.xlu0.b32.cont [6/16] 0.0, 128
        %1389 = vxpose.xlu0.b32.cont [7/16] 0.0, 128
        %1390 = vxpose.xlu0.b32.cont [8/16] 0.0, 128
        %1391 = vxpose.xlu0.b32.cont [9/16] 0.0, 128
        %1392 = vxpose.xlu0.b32.cont [10/16] 0.0, 128
        %1393 = vxpose.xlu0.b32.cont [11/16] 0.0, 128
        %1394 = vxpose.xlu0.b32.cont [12/16] 0.0, 128
        %1395 = vxpose.xlu0.b32.cont [13/16] 0.0, 128
        %1396 = vxpose.xlu0.b32.cont [14/16] 0.0, 128
        %1397 = vxpose.xlu0.b32.cont [15/16] 0.0, 128
        %1398 = vxpose.xlu0.b32.end [16/16] 0.0, 128
        %v1399 = vpop.trf.xlu0
        %v1400 = vpop.trf.xlu0
        %v1401 = vpop.trf.xlu0
        %v1402 = vpop.trf.xlu0
        %v1403 = vpop.trf.xlu0
        %v1404 = vpop.trf.xlu0
        %v1405 = vpop.trf.xlu0
        %v1406 = vpop.trf.xlu0
        %v1407 = vpop.trf.xlu0
        %v1408 = vpop.trf.xlu0
        %v1409 = vpop.trf.xlu0
        %v1410 = vpop.trf.xlu0
        %v1411 = vpop.trf.xlu0
        %v1412 = vpop.trf.xlu0
        %v1413 = vpop.trf.xlu0
        %v1414 = vpop.trf.xlu0
        %1415 = vxpose.xlu0.b32.start [1/16] %v1379, 128
        %1416 = vxpose.xlu0.b32.cont [2/16] %v1380, 128
        %1417 = vxpose.xlu0.b32.cont [3/16] %v1381, 128
        %1418 = vxpose.xlu0.b32.cont [4/16] %v1382, 128
        %1419 = vxpose.xlu0.b32.cont [5/16] 0.0, 128
        %1420 = vxpose.xlu0.b32.cont [6/16] 0.0, 128
        %1421 = vxpose.xlu0.b32.cont [7/16] 0.0, 128
        %1422 = vxpose.xlu0.b32.cont [8/16] 0.0, 128
        %1423 = vxpose.xlu0.b32.cont [9/16] 0.0, 128
        %1424 = vxpose.xlu0.b32.cont [10/16] 0.0, 128
        %1425 = vxpose.xlu0.b32.cont [11/16] 0.0, 128
        %1426 = vxpose.xlu0.b32.cont [12/16] 0.0, 128
        %1427 = vxpose.xlu0.b32.cont [13/16] 0.0, 128
        %1428 = vxpose.xlu0.b32.cont [14/16] 0.0, 128
        %1429 = vxpose.xlu0.b32.cont [15/16] 0.0, 128
        %1430 = vxpose.xlu0.b32.end [16/16] 0.0, 128
        %v1431 = vpop.trf.xlu0
        %v1432 = vpop.trf.xlu0
        %v1433 = vpop.trf.xlu0
        %v1434 = vpop.trf.xlu0
        %v1435 = vpop.trf.xlu0
        %v1436 = vpop.trf.xlu0
        %v1437 = vpop.trf.xlu0
        %v1438 = vpop.trf.xlu0
        %v1439 = vpop.trf.xlu0
        %v1440 = vpop.trf.xlu0
        %v1441 = vpop.trf.xlu0
        %v1442 = vpop.trf.xlu0
        %v1443 = vpop.trf.xlu0
        %v1444 = vpop.trf.xlu0
        %v1445 = vpop.trf.xlu0
        %v1446 = vpop.trf.xlu0
        %v1447 = vsel %vm515, %v1399, -inf
        %1448 = vmax.xlane.f32.xlu0 %v1447
        %v1449 = vpop.xlane.xlu0 %1448
        %v1450 = vsel %vm515, %v1431, -inf
        %1451 = vmax.xlane.f32.xlu0 %v1450
        %v1452 = vpop.xlane.xlu0 %1451
        %v1453 = vsub.f32 %v1399, %v1449
        %v1454 = vsub.f32 %v1431, %v1452
        %v1455 = vmax.f32 %v1453, -50000.0
        %v1456 = vmax.f32 %v1454, -50000.0
        %v1457 = vmin.f32 %v1455, 50000.0
        %v1458 = vmin.f32 %v1456, 50000.0
        %v1459 = vadd.f32 %v1457, %v1015
        %v1460 = vadd.f32 %v1458, %v1019
        %v1461 = vsel %vm515, %v1459, -inf
        %1462 = vmax.xlane.f32.xlu0 %v1461
        %v1463 = vpop.xlane.xlu0 %1462
        %v1464 = vsel %vm515, %v1460, -inf
        %1465 = vmax.xlane.f32.xlu0 %v1464
        %v1466 = vpop.xlane.xlu0 %1465
        %v1467 = vsub.f32 %v1459, %v1463
        %v1468 = vsub.f32 %v1460, %v1466
        %v1469 = vmul.f32 %v1467, 1.442695
        %v1470 = vpow.pop %v1469
        %v1471 = vmul.f32 %v1468, 1.442695
        %v1472 = vpow.pop %v1471
        %v1473 = vsel %vm515, %v1470, 0.0
        %1474 = vadd.xlane.f32.xlu0 %v1473
        %v1475 = vpop.xlane.xlu0 %1474
        %v1476 = vsel %vm515, %v1472, 0.0
        %1477 = vadd.xlane.f32.xlu0 %v1476
        %v1478 = vpop.xlane.xlu0 %1477
        %v1479 = vrcp.pop %v1475
        %v1480 = vmul.f32 %v1470, %v1479
        %v1481 = vrcp.pop %v1478
        %v1482 = vmul.f32 %v1472, %v1481
        %v1483 = vadd.f32 %v1375, %v1050
        %v1484 = vadd.f32 %v1376, %v1050
        %v1485 = vadd.f32 %v1377, %v1050
        %v1486 = vadd.f32 %v1378, %v1050
        %v1487 = vadd.f32 %v1379, %v1054
        %v1488 = vadd.f32 %v1380, %v1054
        %v1489 = vadd.f32 %v1381, %v1054
        %v1490 = vadd.f32 %v1382, %v1054
        %v1491 = vsel %vm1308, %v1483, -inf
        %1492 = vmax.xlane.f32.xlu0 %v1491
        %v1493 = vpop.xlane.xlu0 %1492
        %v1494 = vsel %vm1308, %v1484, -inf
        %1495 = vmax.xlane.f32.xlu0 %v1494
        %v1496 = vpop.xlane.xlu0 %1495
        %v1497 = vsel %vm1308, %v1485, -inf
        %1498 = vmax.xlane.f32.xlu0 %v1497
        %v1499 = vpop.xlane.xlu0 %1498
        %v1500 = vsel %vm1308, %v1486, -inf
        %1501 = vmax.xlane.f32.xlu0 %v1500
        %v1502 = vpop.xlane.xlu0 %1501
        %v1503 = vsel %vm1308, %v1487, -inf
        %1504 = vmax.xlane.f32.xlu0 %v1503
        %v1505 = vpop.xlane.xlu0 %1504
        %v1506 = vsel %vm1308, %v1488, -inf
        %1507 = vmax.xlane.f32.xlu0 %v1506
        %v1508 = vpop.xlane.xlu0 %1507
        %v1509 = vsel %vm1308, %v1489, -inf
        %1510 = vmax.xlane.f32.xlu0 %v1509
        %v1511 = vpop.xlane.xlu0 %1510
        %v1512 = vsel %vm1308, %v1490, -inf
        %1513 = vmax.xlane.f32.xlu0 %v1512
        %v1514 = vpop.xlane.xlu0 %1513
        %v1515 = vsub.f32 %v1483, %v1493
        %v1516 = vsub.f32 %v1484, %v1496
        %v1517 = vsub.f32 %v1485, %v1499
        %v1518 = vsub.f32 %v1486, %v1502
        %v1519 = vsub.f32 %v1487, %v1505
        %v1520 = vsub.f32 %v1488, %v1508
        %v1521 = vsub.f32 %v1489, %v1511
        %v1522 = vsub.f32 %v1490, %v1514
        %v1523 = vmul.f32 %v1515, 1.442695
        %v1524 = vpow.pop %v1523
        %v1525 = vmul.f32 %v1516, 1.442695
        %v1526 = vpow.pop %v1525
        %v1527 = vmul.f32 %v1517, 1.442695
        %v1528 = vpow.pop %v1527
        %v1529 = vmul.f32 %v1518, 1.442695
        %v1530 = vpow.pop %v1529
        %v1531 = vmul.f32 %v1519, 1.442695
        %v1532 = vpow.pop %v1531
        %v1533 = vmul.f32 %v1520, 1.442695
        %v1534 = vpow.pop %v1533
        %v1535 = vmul.f32 %v1521, 1.442695
        %v1536 = vpow.pop %v1535
        %v1537 = vmul.f32 %v1522, 1.442695
        %v1538 = vpow.pop %v1537
        %v1539 = vsel %vm1308, %v1524, 0.0
        %1540 = vadd.xlane.f32.xlu0 %v1539
        %v1541 = vpop.xlane.xlu0 %1540
        %v1542 = vsel %vm1308, %v1526, 0.0
        %1543 = vadd.xlane.f32.xlu0 %v1542
        %v1544 = vpop.xlane.xlu0 %1543
        %v1545 = vsel %vm1308, %v1528, 0.0
        %1546 = vadd.xlane.f32.xlu0 %v1545
        %v1547 = vpop.xlane.xlu0 %1546
        %v1548 = vsel %vm1308, %v1530, 0.0
        %1549 = vadd.xlane.f32.xlu0 %v1548
        %v1550 = vpop.xlane.xlu0 %1549
        %v1551 = vsel %vm1308, %v1532, 0.0
        %1552 = vadd.xlane.f32.xlu0 %v1551
        %v1553 = vpop.xlane.xlu0 %1552
        %v1554 = vsel %vm1308, %v1534, 0.0
        %1555 = vadd.xlane.f32.xlu0 %v1554
        %v1556 = vpop.xlane.xlu0 %1555
        %v1557 = vsel %vm1308, %v1536, 0.0
        %1558 = vadd.xlane.f32.xlu0 %v1557
        %v1559 = vpop.xlane.xlu0 %1558
        %v1560 = vsel %vm1308, %v1538, 0.0
        %1561 = vadd.xlane.f32.xlu0 %v1560
        %v1562 = vpop.xlane.xlu0 %1561
        %v1563 = vrcp.pop %v1541
        %v1564 = vmul.f32 %v1524, %v1563
        %v1565 = vrcp.pop %v1544
        %v1566 = vmul.f32 %v1526, %v1565
        %v1567 = vrcp.pop %v1547
        %v1568 = vmul.f32 %v1528, %v1567
        %v1569 = vrcp.pop %v1550
        %v1570 = vmul.f32 %v1530, %v1569
        %v1571 = vrcp.pop %v1553
        %v1572 = vmul.f32 %v1532, %v1571
        %v1573 = vrcp.pop %v1556
        %v1574 = vmul.f32 %v1534, %v1573
        %v1575 = vrcp.pop %v1559
        %v1576 = vmul.f32 %v1536, %v1575
        %v1577 = vrcp.pop %v1562
        %v1578 = vmul.f32 %v1538, %v1577
        %v1579 = vpack.c.bf16 %v1566, %v1564
        %v1580 = vpack.c.bf16 %v1570, %v1568
        %v1581 = vpack.c.bf16 %v1574, %v1572
        %v1582 = vpack.c.bf16 %v1578, %v1576
        %v1584 = vsel %vm1308, %v1579, 0
        %v1587 = vsel %vm1308, %v1580, 0
        %vm1589 = vcmask 1043456
        %v1591 = vsel %vm1589, %v983, 0
        %1593 = vmatprep.subr.bf16.mxu0 0
        %1594 = vmatpush1.bf16.msra.mxu0 %v1591
        %1595 = vmatprep.subr.bf16.mxu0 0
        %1596 = vmatpush1.bf16.msra.mxu0 0
        %1597 = vmatprep.subr.bf16.mxu0 0
        %1598 = vmatpush1.bf16.msra.mxu0 0
        %1599 = vmatprep.subr.bf16.mxu0 0
        %1600 = vmatpush1.bf16.msra.mxu0 0
        %1601 = vmatprep.subr.bf16.mxu0 0
        %1602 = vmatpush1.bf16.msra.mxu0 0
        %1603 = vmatprep.subr.bf16.mxu0 0
        %1604 = vmatpush1.bf16.msra.mxu0 0
        %1605 = vmatprep.subr.bf16.mxu0 0
        %1606 = vmatpush1.bf16.msra.mxu0 0
        %1607 = vmatprep.subr.bf16.mxu0 0
        %1608 = vmatpush1.bf16.msra.mxu0 0
        %1609 = vmatprep.subr.bf16.mxu0 0
        %1610 = vmatpush1.bf16.msra.mxu0 0
        %1611 = vmatprep.subr.bf16.mxu0 0
        %1612 = vmatpush1.bf16.msra.mxu0 0
        %1613 = vmatprep.subr.bf16.mxu0 0
        %1614 = vmatpush1.bf16.msra.mxu0 0
        %1615 = vmatprep.subr.bf16.mxu0 0
        %1616 = vmatpush1.bf16.msra.mxu0 0
        %1617 = vmatprep.subr.bf16.mxu0 0
        %1618 = vmatpush1.bf16.msra.mxu0 0
        %1619 = vmatprep.subr.bf16.mxu0 0
        %1620 = vmatpush1.bf16.msra.mxu0 0
        %1621 = vmatprep.subr.bf16.mxu0 0
        %1622 = vmatpush1.bf16.msra.mxu0 0
        %1623 = vmatprep.subr.bf16.mxu0 0
        %1624 = vmatpush1.bf16.msra.mxu0 0
        %1625 = vmatprep.mubr.bf16.mxu0 0
        %1626 = vmatmul.mubr.bf16.gmra.mrb[0].mxu0 %v1584
        %v1627 = vpop.f32.mrb[0].mxu0
        %v1628 = vadd.f32 0.0, %v1627
        %v1629 = vpop.f32.mrb[0].mxu0
        %v1630 = vpop.f32.mrb[0].mxu0
        %v1631 = vadd.f32 0.0, %v1630
        %v1632 = vpop.f32.mrb[0].mxu0
        %1633 = vmatprep.mubr.bf16.mxu0 0
        %1634 = vmatmul.mubr.bf16.gmra.mrb[0].mxu0 %v1587
        %v1635 = vpop.f32.mrb[0].mxu0
        %v1636 = vadd.f32 0.0, %v1635
        %v1637 = vpop.f32.mrb[0].mxu0
        %v1638 = vpop.f32.mrb[0].mxu0
        %v1639 = vadd.f32 0.0, %v1638
        %v1640 = vpop.f32.mrb[0].mxu0
        %1641 = vdwg.mxu0
        %v1643 = vsel %vm1308, %v1581, 0
        %v1646 = vsel %vm1308, %v1582, 0
        %v1649 = vsel %vm1589, %v984, 0
        %1651 = vmatprep.subr.bf16.mxu0 0
        %1652 = vmatpush1.bf16.msra.mxu0 %v1649
        %1653 = vmatprep.subr.bf16.mxu0 0
        %1654 = vmatpush1.bf16.msra.mxu0 0
        %1655 = vmatprep.subr.bf16.mxu0 0
        %1656 = vmatpush1.bf16.msra.mxu0 0
        %1657 = vmatprep.subr.bf16.mxu0 0
        %1658 = vmatpush1.bf16.msra.mxu0 0
        %1659 = vmatprep.subr.bf16.mxu0 0
        %1660 = vmatpush1.bf16.msra.mxu0 0
        %1661 = vmatprep.subr.bf16.mxu0 0
        %1662 = vmatpush1.bf16.msra.mxu0 0
        %1663 = vmatprep.subr.bf16.mxu0 0
        %1664 = vmatpush1.bf16.msra.mxu0 0
        %1665 = vmatprep.subr.bf16.mxu0 0
        %1666 = vmatpush1.bf16.msra.mxu0 0
        %1667 = vmatprep.subr.bf16.mxu0 0
        %1668 = vmatpush1.bf16.msra.mxu0 0
        %1669 = vmatprep.subr.bf16.mxu0 0
        %1670 = vmatpush1.bf16.msra.mxu0 0
        %1671 = vmatprep.subr.bf16.mxu0 0
        %1672 = vmatpush1.bf16.msra.mxu0 0
        %1673 = vmatprep.subr.bf16.mxu0 0
        %1674 = vmatpush1.bf16.msra.mxu0 0
        %1675 = vmatprep.subr.bf16.mxu0 0
        %1676 = vmatpush1.bf16.msra.mxu0 0
        %1677 = vmatprep.subr.bf16.mxu0 0
        %1678 = vmatpush1.bf16.msra.mxu0 0
        %1679 = vmatprep.subr.bf16.mxu0 0
        %1680 = vmatpush1.bf16.msra.mxu0 0
        %1681 = vmatprep.subr.bf16.mxu0 0
        %1682 = vmatpush1.bf16.msra.mxu0 0
        %1683 = vmatprep.mubr.bf16.mxu0 0
        %1684 = vmatmul.mubr.bf16.gmra.mrb[0].mxu0 %v1643
        %v1685 = vpop.f32.mrb[0].mxu0
        %v1686 = vadd.f32 0.0, %v1685
        %v1687 = vpop.f32.mrb[0].mxu0
        %v1688 = vpop.f32.mrb[0].mxu0
        %v1689 = vadd.f32 0.0, %v1688
        %v1690 = vpop.f32.mrb[0].mxu0
        %1691 = vmatprep.mubr.bf16.mxu0 0
        %1692 = vmatmul.mubr.bf16.gmra.mrb[0].mxu0 %v1646
        %v1693 = vpop.f32.mrb[0].mxu0
        %v1694 = vadd.f32 0.0, %v1693
        %v1695 = vpop.f32.mrb[0].mxu0
        %v1696 = vpop.f32.mrb[0].mxu0
        %v1697 = vadd.f32 0.0, %v1696
        %v1698 = vpop.f32.mrb[0].mxu0
        %1699 = vdwg.mxu0
        %v1700 = vpack.c.bf16 %v1480, %v1480
        %v1701 = vpack.c.bf16 %v1482, %v1482
        %v1703 = vsel %vm515, %v1700, 0
        %1705 = vmatprep.subr.bf16.mxu0 0
        %1706 = vmatpush1.bf16.msra.mxu0 %v979
        %1707 = vmatprep.subr.bf16.mxu0 0
        %1708 = vmatpush1.bf16.msra.mxu0 %v980
        %1709 = vmatprep.subr.bf16.mxu0 0
        %1710 = vmatpush1.bf16.msra.mxu0 0
        %1711 = vmatprep.subr.bf16.mxu0 0
        %1712 = vmatpush1.bf16.msra.mxu0 0
        %1713 = vmatprep.subr.bf16.mxu0 0
        %1714 = vmatpush1.bf16.msra.mxu0 0
        %1715 = vmatprep.subr.bf16.mxu0 0
        %1716 = vmatpush1.bf16.msra.mxu0 0
        %1717 = vmatprep.subr.bf16.mxu0 0
        %1718 = vmatpush1.bf16.msra.mxu0 0
        %1719 = vmatprep.subr.bf16.mxu0 0
        %1720 = vmatpush1.bf16.msra.mxu0 0
        %1721 = vmatprep.subr.bf16.mxu0 0
        %1722 = vmatpush1.bf16.msra.mxu0 0
        %1723 = vmatprep.subr.bf16.mxu0 0
        %1724 = vmatpush1.bf16.msra.mxu0 0
        %1725 = vmatprep.subr.bf16.mxu0 0
        %1726 = vmatpush1.bf16.msra.mxu0 0
        %1727 = vmatprep.subr.bf16.mxu0 0
        %1728 = vmatpush1.bf16.msra.mxu0 0
        %1729 = vmatprep.subr.bf16.mxu0 0
        %1730 = vmatpush1.bf16.msra.mxu0 0
        %1731 = vmatprep.subr.bf16.mxu0 0
        %1732 = vmatpush1.bf16.msra.mxu0 0
        %1733 = vmatprep.subr.bf16.mxu0 0
        %1734 = vmatpush1.bf16.msra.mxu0 0
        %1735 = vmatprep.subr.bf16.mxu0 0
        %1736 = vmatpush1.bf16.msra.mxu0 0
        %1737 = vmatprep.mubr.bf16.mxu0 0
        %1738 = vmatmul.mubr.bf16.gmra.mrb[0].mxu0 %v1703
        %v1739 = vpop.f32.mrb[0].mxu0
        %v1740 = vadd.f32 0.0, %v1739
        %v1741 = vpop.f32.mrb[0].mxu0
        %v1742 = vpop.f32.mrb[0].mxu0
        %v1743 = vpop.f32.mrb[0].mxu0
        %1744 = vdwg.mxu0
        %v1746 = vsel %vm515, %v1701, 0
        %1748 = vmatprep.subr.bf16.mxu0 0
        %1749 = vmatpush1.bf16.msra.mxu0 %v981
        %1750 = vmatprep.subr.bf16.mxu0 0
        %1751 = vmatpush1.bf16.msra.mxu0 %v982
        %1752 = vmatprep.subr.bf16.mxu0 0
        %1753 = vmatpush1.bf16.msra.mxu0 0
        %1754 = vmatprep.subr.bf16.mxu0 0
        %1755 = vmatpush1.bf16.msra.mxu0 0
        %1756 = vmatprep.subr.bf16.mxu0 0
        %1757 = vmatpush1.bf16.msra.mxu0 0
        %1758 = vmatprep.subr.bf16.mxu0 0
        %1759 = vmatpush1.bf16.msra.mxu0 0
        %1760 = vmatprep.subr.bf16.mxu0 0
        %1761 = vmatpush1.bf16.msra.mxu0 0
        %1762 = vmatprep.subr.bf16.mxu0 0
        %1763 = vmatpush1.bf16.msra.mxu0 0
        %1764 = vmatprep.subr.bf16.mxu0 0
        %1765 = vmatpush1.bf16.msra.mxu0 0
        %1766 = vmatprep.subr.bf16.mxu0 0
        %1767 = vmatpush1.bf16.msra.mxu0 0
        %1768 = vmatprep.subr.bf16.mxu0 0
        %1769 = vmatpush1.bf16.msra.mxu0 0
        %1770 = vmatprep.subr.bf16.mxu0 0
        %1771 = vmatpush1.bf16.msra.mxu0 0
        %1772 = vmatprep.subr.bf16.mxu0 0
        %1773 = vmatpush1.bf16.msra.mxu0 0
        %1774 = vmatprep.subr.bf16.mxu0 0
        %1775 = vmatpush1.bf16.msra.mxu0 0
        %1776 = vmatprep.subr.bf16.mxu0 0
        %1777 = vmatpush1.bf16.msra.mxu0 0
        %1778 = vmatprep.subr.bf16.mxu0 0
        %1779 = vmatpush1.bf16.msra.mxu0 0
        %1780 = vmatprep.mubr.bf16.mxu0 0
        %1781 = vmatmul.mubr.bf16.gmra.mrb[0].mxu0 %v1746
        %v1782 = vpop.f32.mrb[0].mxu0
        %v1783 = vadd.f32 0.0, %v1782
        %v1784 = vpop.f32.mrb[0].mxu0
        %v1785 = vpop.f32.mrb[0].mxu0
        %v1786 = vpop.f32.mrb[0].mxu0
        %1787 = vdwg.mxu0
        %v1788 = vsub.f32 %v1227, %v1358
        %v1789 = vsub.f32 %v1230, %v1358
        %v1790 = vsub.f32 %v1235, %v1358
        %v1791 = vsub.f32 %v1238, %v1358
        %v1792 = vsub.f32 %v1294, %v1358
        %v1793 = vsub.f32 %v1297, %v1358
        %v1794 = vsub.f32 %v1302, %v1358
        %v1795 = vsub.f32 %v1305, %v1358
        %v1796 = vmax.f32 %v1788, -50000.0
        %v1797 = vmax.f32 %v1789, -50000.0
        %v1798 = vmax.f32 %v1790, -50000.0
        %v1799 = vmax.f32 %v1791, -50000.0
        %v1800 = vmax.f32 %v1792, -50000.0
        %v1801 = vmax.f32 %v1793, -50000.0
        %v1802 = vmax.f32 %v1794, -50000.0
        %v1803 = vmax.f32 %v1795, -50000.0
        %v1804 = vmin.f32 %v1796, 50000.0
        %v1805 = vmin.f32 %v1797, 50000.0
        %v1806 = vmin.f32 %v1798, 50000.0
        %v1807 = vmin.f32 %v1799, 50000.0
        %v1808 = vmin.f32 %v1800, 50000.0
        %v1809 = vmin.f32 %v1801, 50000.0
        %v1810 = vmin.f32 %v1802, 50000.0
        %v1811 = vmin.f32 %v1803, 50000.0
        %1812 = vxpose.xlu0.b32.start [1/16] %v1804, 128
        %1813 = vxpose.xlu0.b32.cont [2/16] %v1805, 128
        %1814 = vxpose.xlu0.b32.cont [3/16] %v1806, 128
        %1815 = vxpose.xlu0.b32.cont [4/16] %v1807, 128
        %1816 = vxpose.xlu0.b32.cont [5/16] 0.0, 128
        %1817 = vxpose.xlu0.b32.cont [6/16] 0.0, 128
        %1818 = vxpose.xlu0.b32.cont [7/16] 0.0, 128
        %1819 = vxpose.xlu0.b32.cont [8/16] 0.0, 128
        %1820 = vxpose.xlu0.b32.cont [9/16] 0.0, 128
        %1821 = vxpose.xlu0.b32.cont [10/16] 0.0, 128
        %1822 = vxpose.xlu0.b32.cont [11/16] 0.0, 128
        %1823 = vxpose.xlu0.b32.cont [12/16] 0.0, 128
        %1824 = vxpose.xlu0.b32.cont [13/16] 0.0, 128
        %1825 = vxpose.xlu0.b32.cont [14/16] 0.0, 128
        %1826 = vxpose.xlu0.b32.cont [15/16] 0.0, 128
        %1827 = vxpose.xlu0.b32.end [16/16] 0.0, 128
        %v1828 = vpop.trf.xlu0
        %v1829 = vpop.trf.xlu0
        %v1830 = vpop.trf.xlu0
        %v1831 = vpop.trf.xlu0
        %v1832 = vpop.trf.xlu0
        %v1833 = vpop.trf.xlu0
        %v1834 = vpop.trf.xlu0
        %v1835 = vpop.trf.xlu0
        %v1836 = vpop.trf.xlu0
        %v1837 = vpop.trf.xlu0
        %v1838 = vpop.trf.xlu0
        %v1839 = vpop.trf.xlu0
        %v1840 = vpop.trf.xlu0
        %v1841 = vpop.trf.xlu0
        %v1842 = vpop.trf.xlu0
        %v1843 = vpop.trf.xlu0
        %1844 = vxpose.xlu0.b32.start [1/16] %v1808, 128
        %1845 = vxpose.xlu0.b32.cont [2/16] %v1809, 128
        %1846 = vxpose.xlu0.b32.cont [3/16] %v1810, 128
        %1847 = vxpose.xlu0.b32.cont [4/16] %v1811, 128
        %1848 = vxpose.xlu0.b32.cont [5/16] 0.0, 128
        %1849 = vxpose.xlu0.b32.cont [6/16] 0.0, 128
        %1850 = vxpose.xlu0.b32.cont [7/16] 0.0, 128
        %1851 = vxpose.xlu0.b32.cont [8/16] 0.0, 128
        %1852 = vxpose.xlu0.b32.cont [9/16] 0.0, 128
        %1853 = vxpose.xlu0.b32.cont [10/16] 0.0, 128
        %1854 = vxpose.xlu0.b32.cont [11/16] 0.0, 128
        %1855 = vxpose.xlu0.b32.cont [12/16] 0.0, 128
        %1856 = vxpose.xlu0.b32.cont [13/16] 0.0, 128
        %1857 = vxpose.xlu0.b32.cont [14/16] 0.0, 128
        %1858 = vxpose.xlu0.b32.cont [15/16] 0.0, 128
        %1859 = vxpose.xlu0.b32.end [16/16] 0.0, 128
        %v1860 = vpop.trf.xlu0
        %v1861 = vpop.trf.xlu0
        %v1862 = vpop.trf.xlu0
        %v1863 = vpop.trf.xlu0
        %v1864 = vpop.trf.xlu0
        %v1865 = vpop.trf.xlu0
        %v1866 = vpop.trf.xlu0
        %v1867 = vpop.trf.xlu0
        %v1868 = vpop.trf.xlu0
        %v1869 = vpop.trf.xlu0
        %v1870 = vpop.trf.xlu0
        %v1871 = vpop.trf.xlu0
        %v1872 = vpop.trf.xlu0
        %v1873 = vpop.trf.xlu0
        %v1874 = vpop.trf.xlu0
        %v1875 = vpop.trf.xlu0
        %v1876 = vsel %vm515, %v1828, -inf
        %1877 = vmax.xlane.f32.xlu0 %v1876
        %v1878 = vpop.xlane.xlu0 %1877
        %v1879 = vsel %vm515, %v1860, -inf
        %1880 = vmax.xlane.f32.xlu0 %v1879
        %v1881 = vpop.xlane.xlu0 %1880
        %v1882 = vsub.f32 %v1828, %v1878
        %v1883 = vsub.f32 %v1860, %v1881
        %v1884 = vmax.f32 %v1882, -50000.0
        %v1885 = vmax.f32 %v1883, -50000.0
        %v1886 = vmin.f32 %v1884, 50000.0
        %v1887 = vmin.f32 %v1885, 50000.0
        %v1888 = vadd.f32 %v1886, %v1015
        %v1889 = vadd.f32 %v1887, %v1019
        %v1890 = vsel %vm515, %v1888, -inf
        %1891 = vmax.xlane.f32.xlu0 %v1890
        %v1892 = vpop.xlane.xlu0 %1891
        %v1893 = vsel %vm515, %v1889, -inf
        %1894 = vmax.xlane.f32.xlu0 %v1893
        %v1895 = vpop.xlane.xlu0 %1894
        %v1896 = vsub.f32 %v1888, %v1892
        %v1897 = vsub.f32 %v1889, %v1895
        %v1898 = vmul.f32 %v1896, 1.442695
        %v1899 = vpow.pop %v1898
        %v1900 = vmul.f32 %v1897, 1.442695
        %v1901 = vpow.pop %v1900
        %v1902 = vsel %vm515, %v1899, 0.0
        %1903 = vadd.xlane.f32.xlu0 %v1902
        %v1904 = vpop.xlane.xlu0 %1903
        %v1905 = vsel %vm515, %v1901, 0.0
        %1906 = vadd.xlane.f32.xlu0 %v1905
        %v1907 = vpop.xlane.xlu0 %1906
        %v1908 = vrcp.pop %v1904
        %v1909 = vmul.f32 %v1899, %v1908
        %v1910 = vrcp.pop %v1907
        %v1911 = vmul.f32 %v1901, %v1910
        %v1912 = vadd.f32 %v1804, %v1050
        %v1913 = vadd.f32 %v1805, %v1050
        %v1914 = vadd.f32 %v1806, %v1050
        %v1915 = vadd.f32 %v1807, %v1050
        %v1916 = vadd.f32 %v1808, %v1054
        %v1917 = vadd.f32 %v1809, %v1054
        %v1918 = vadd.f32 %v1810, %v1054
        %v1919 = vadd.f32 %v1811, %v1054
        %v1920 = vsel %vm1308, %v1912, -inf
        %1921 = vmax.xlane.f32.xlu0 %v1920
        %v1922 = vpop.xlane.xlu0 %1921
        %v1923 = vsel %vm1308, %v1913, -inf
        %1924 = vmax.xlane.f32.xlu0 %v1923
        %v1925 = vpop.xlane.xlu0 %1924
        %v1926 = vsel %vm1308, %v1914, -inf
        %1927 = vmax.xlane.f32.xlu0 %v1926
        %v1928 = vpop.xlane.xlu0 %1927
        %v1929 = vsel %vm1308, %v1915, -inf
        %1930 = vmax.xlane.f32.xlu0 %v1929
        %v1931 = vpop.xlane.xlu0 %1930
        %v1932 = vsel %vm1308, %v1916, -inf
        %1933 = vmax.xlane.f32.xlu0 %v1932
        %v1934 = vpop.xlane.xlu0 %1933
        %v1935 = vsel %vm1308, %v1917, -inf
        %1936 = vmax.xlane.f32.xlu0 %v1935
        %v1937 = vpop.xlane.xlu0 %1936
        %v1938 = vsel %vm1308, %v1918, -inf
        %1939 = vmax.xlane.f32.xlu0 %v1938
        %v1940 = vpop.xlane.xlu0 %1939
        %v1941 = vsel %vm1308, %v1919, -inf
        %1942 = vmax.xlane.f32.xlu0 %v1941
        %v1943 = vpop.xlane.xlu0 %1942
        %v1944 = vsub.f32 %v1912, %v1922
        %v1945 = vsub.f32 %v1913, %v1925
        %v1946 = vsub.f32 %v1914, %v1928
        %v1947 = vsub.f32 %v1915, %v1931
        %v1948 = vsub.f32 %v1916, %v1934
        %v1949 = vsub.f32 %v1917, %v1937
        %v1950 = vsub.f32 %v1918, %v1940
        %v1951 = vsub.f32 %v1919, %v1943
        %v1952 = vmul.f32 %v1944, 1.442695
        %v1953 = vpow.pop %v1952
        %v1954 = vmul.f32 %v1945, 1.442695
        %v1955 = vpow.pop %v1954
        %v1956 = vmul.f32 %v1946, 1.442695
        %v1957 = vpow.pop %v1956
        %v1958 = vmul.f32 %v1947, 1.442695
        %v1959 = vpow.pop %v1958
        %v1960 = vmul.f32 %v1948, 1.442695
        %v1961 = vpow.pop %v1960
        %v1962 = vmul.f32 %v1949, 1.442695
        %v1963 = vpow.pop %v1962
        %v1964 = vmul.f32 %v1950, 1.442695
        %v1965 = vpow.pop %v1964
        %v1966 = vmul.f32 %v1951, 1.442695
        %v1967 = vpow.pop %v1966
        %v1968 = vsel %vm1308, %v1953, 0.0
        %1969 = vadd.xlane.f32.xlu0 %v1968
        %v1970 = vpop.xlane.xlu0 %1969
        %v1971 = vsel %vm1308, %v1955, 0.0
        %1972 = vadd.xlane.f32.xlu0 %v1971
        %v1973 = vpop.xlane.xlu0 %1972
        %v1974 = vsel %vm1308, %v1957, 0.0
        %1975 = vadd.xlane.f32.xlu0 %v1974
        %v1976 = vpop.xlane.xlu0 %1975
        %v1977 = vsel %vm1308, %v1959, 0.0
        %1978 = vadd.xlane.f32.xlu0 %v1977
        %v1979 = vpop.xlane.xlu0 %1978
        %v1980 = vsel %vm1308, %v1961, 0.0
        %1981 = vadd.xlane.f32.xlu0 %v1980
        %v1982 = vpop.xlane.xlu0 %1981
        %v1983 = vsel %vm1308, %v1963, 0.0
        %1984 = vadd.xlane.f32.xlu0 %v1983
        %v1985 = vpop.xlane.xlu0 %1984
        %v1986 = vsel %vm1308, %v1965, 0.0
        %1987 = vadd.xlane.f32.xlu0 %v1986
        %v1988 = vpop.xlane.xlu0 %1987
        %v1989 = vsel %vm1308, %v1967, 0.0
        %1990 = vadd.xlane.f32.xlu0 %v1989
        %v1991 = vpop.xlane.xlu0 %1990
        %v1992 = vrcp.pop %v1970
        %v1993 = vmul.f32 %v1953, %v1992
        %v1994 = vrcp.pop %v1973
        %v1995 = vmul.f32 %v1955, %v1994
        %v1996 = vrcp.pop %v1976
        %v1997 = vmul.f32 %v1957, %v1996
        %v1998 = vrcp.pop %v1979
        %v1999 = vmul.f32 %v1959, %v1998
        %v2000 = vrcp.pop %v1982
        %v2001 = vmul.f32 %v1961, %v2000
        %v2002 = vrcp.pop %v1985
        %v2003 = vmul.f32 %v1963, %v2002
        %v2004 = vrcp.pop %v1988
        %v2005 = vmul.f32 %v1965, %v2004
        %v2006 = vrcp.pop %v1991
        %v2007 = vmul.f32 %v1967, %v2006
        %v2008 = vpack.c.bf16 %v1995, %v1993
        %v2009 = vpack.c.bf16 %v1999, %v1997
        %v2010 = vpack.c.bf16 %v2003, %v2001
        %v2011 = vpack.c.bf16 %v2007, %v2005
        %2013 = vrot.lane.b32.xlu0 %v983, 112
        %v2014 = vpop.permute.xlu0 %2013
        %v2016 = vsel %vm1308, %v2008, 0
        %v2019 = vsel %vm1308, %v2009, 0
        %v2022 = vsel %vm1589, %v2014, 0
        %2024 = vmatprep.subr.bf16.mxu0 0
        %2025 = vmatpush1.bf16.msra.mxu0 %v2022
        %2026 = vmatprep.subr.bf16.mxu0 0
        %2027 = vmatpush1.bf16.msra.mxu0 0
        %2028 = vmatprep.subr.bf16.mxu0 0
        %2029 = vmatpush1.bf16.msra.mxu0 0
        %2030 = vmatprep.subr.bf16.mxu0 0
        %2031 = vmatpush1.bf16.msra.mxu0 0
        %2032 = vmatprep.subr.bf16.mxu0 0
        %2033 = vmatpush1.bf16.msra.mxu0 0
        %2034 = vmatprep.subr.bf16.mxu0 0
        %2035 = vmatpush1.bf16.msra.mxu0 0
        %2036 = vmatprep.subr.bf16.mxu0 0
        %2037 = vmatpush1.bf16.msra.mxu0 0
        %2038 = vmatprep.subr.bf16.mxu0 0
        %2039 = vmatpush1.bf16.msra.mxu0 0
        %2040 = vmatprep.subr.bf16.mxu0 0
        %2041 = vmatpush1.bf16.msra.mxu0 0
        %2042 = vmatprep.subr.bf16.mxu0 0
        %2043 = vmatpush1.bf16.msra.mxu0 0
        %2044 = vmatprep.subr.bf16.mxu0 0
        %2045 = vmatpush1.bf16.msra.mxu0 0
        %2046 = vmatprep.subr.bf16.mxu0 0
        %2047 = vmatpush1.bf16.msra.mxu0 0
        %2048 = vmatprep.subr.bf16.mxu0 0
        %2049 = vmatpush1.bf16.msra.mxu0 0
        %2050 = vmatprep.subr.bf16.mxu0 0
        %2051 = vmatpush1.bf16.msra.mxu0 0
        %2052 = vmatprep.subr.bf16.mxu0 0
        %2053 = vmatpush1.bf16.msra.mxu0 0
        %2054 = vmatprep.subr.bf16.mxu0 0
        %2055 = vmatpush1.bf16.msra.mxu0 0
        %2056 = vmatprep.mubr.bf16.mxu0 0
        %2057 = vmatmul.mubr.bf16.gmra.mrb[0].mxu0 %v2016
        %v2058 = vpop.f32.mrb[0].mxu0
        %v2059 = vadd.f32 0.0, %v2058
        %v2060 = vpop.f32.mrb[0].mxu0
        %v2061 = vpop.f32.mrb[0].mxu0
        %v2062 = vadd.f32 0.0, %v2061
        %v2063 = vpop.f32.mrb[0].mxu0
        %2064 = vmatprep.mubr.bf16.mxu0 0
        %2065 = vmatmul.mubr.bf16.gmra.mrb[0].mxu0 %v2019
        %v2066 = vpop.f32.mrb[0].mxu0
        %v2067 = vadd.f32 0.0, %v2066
        %v2068 = vpop.f32.mrb[0].mxu0
        %v2069 = vpop.f32.mrb[0].mxu0
        %v2070 = vadd.f32 0.0, %v2069
        %v2071 = vpop.f32.mrb[0].mxu0
        %2072 = vdwg.mxu0
        %2074 = vrot.lane.b32.xlu0 %v984, 112
        %v2075 = vpop.permute.xlu0 %2074
        %v2077 = vsel %vm1308, %v2010, 0
        %v2080 = vsel %vm1308, %v2011, 0
        %v2083 = vsel %vm1589, %v2075, 0
        %2085 = vmatprep.subr.bf16.mxu0 0
        %2086 = vmatpush1.bf16.msra.mxu0 %v2083
        %2087 = vmatprep.subr.bf16.mxu0 0
        %2088 = vmatpush1.bf16.msra.mxu0 0
        %2089 = vmatprep.subr.bf16.mxu0 0
        %2090 = vmatpush1.bf16.msra.mxu0 0
        %2091 = vmatprep.subr.bf16.mxu0 0
        %2092 = vmatpush1.bf16.msra.mxu0 0
        %2093 = vmatprep.subr.bf16.mxu0 0
        %2094 = vmatpush1.bf16.msra.mxu0 0
        %2095 = vmatprep.subr.bf16.mxu0 0
        %2096 = vmatpush1.bf16.msra.mxu0 0
        %2097 = vmatprep.subr.bf16.mxu0 0
        %2098 = vmatpush1.bf16.msra.mxu0 0
        %2099 = vmatprep.subr.bf16.mxu0 0
        %2100 = vmatpush1.bf16.msra.mxu0 0
        %2101 = vmatprep.subr.bf16.mxu0 0
        %2102 = vmatpush1.bf16.msra.mxu0 0
        %2103 = vmatprep.subr.bf16.mxu0 0
        %2104 = vmatpush1.bf16.msra.mxu0 0
        %2105 = vmatprep.subr.bf16.mxu0 0
        %2106 = vmatpush1.bf16.msra.mxu0 0
        %2107 = vmatprep.subr.bf16.mxu0 0
        %2108 = vmatpush1.bf16.msra.mxu0 0
        %2109 = vmatprep.subr.bf16.mxu0 0
        %2110 = vmatpush1.bf16.msra.mxu0 0
        %2111 = vmatprep.subr.bf16.mxu0 0
        %2112 = vmatpush1.bf16.msra.mxu0 0
        %2113 = vmatprep.subr.bf16.mxu0 0
        %2114 = vmatpush1.bf16.msra.mxu0 0
        %2115 = vmatprep.subr.bf16.mxu0 0
        %2116 = vmatpush1.bf16.msra.mxu0 0
        %2117 = vmatprep.mubr.bf16.mxu0 0
        %2118 = vmatmul.mubr.bf16.gmra.mrb[0].mxu0 %v2077
        %v2119 = vpop.f32.mrb[0].mxu0
        %v2120 = vadd.f32 0.0, %v2119
        %v2121 = vpop.f32.mrb[0].mxu0
        %v2122 = vpop.f32.mrb[0].mxu0
        %v2123 = vadd.f32 0.0, %v2122
        %v2124 = vpop.f32.mrb[0].mxu0
        %2125 = vmatprep.mubr.bf16.mxu0 0
        %2126 = vmatmul.mubr.bf16.gmra.mrb[0].mxu0 %v2080
        %v2127 = vpop.f32.mrb[0].mxu0
        %v2128 = vadd.f32 0.0, %v2127
        %v2129 = vpop.f32.mrb[0].mxu0
        %v2130 = vpop.f32.mrb[0].mxu0
        %v2131 = vadd.f32 0.0, %v2130
        %v2132 = vpop.f32.mrb[0].mxu0
        %2133 = vdwg.mxu0
        %v2134 = vpack.c.bf16 %v1909, %v1909
        %v2135 = vpack.c.bf16 %v1911, %v1911
        %2138 = vrot.lane.b32.xlu0 %v979, 112
        %v2139 = vpop.permute.xlu0 %2138
        %2140 = vrot.lane.b32.xlu0 %v980, 112
        %v2141 = vpop.permute.xlu0 %2140
        %v2145 = vsel %vm515, %v2134, 0
        %2147 = vmatprep.subr.bf16.mxu0 0
        %2148 = vmatpush1.bf16.msra.mxu0 %v2139
        %2149 = vmatprep.subr.bf16.mxu0 0
        %2150 = vmatpush1.bf16.msra.mxu0 %v2141
        %2151 = vmatprep.subr.bf16.mxu0 0
        %2152 = vmatpush1.bf16.msra.mxu0 0
        %2153 = vmatprep.subr.bf16.mxu0 0
        %2154 = vmatpush1.bf16.msra.mxu0 0
        %2155 = vmatprep.subr.bf16.mxu0 0
        %2156 = vmatpush1.bf16.msra.mxu0 0
        %2157 = vmatprep.subr.bf16.mxu0 0
        %2158 = vmatpush1.bf16.msra.mxu0 0
        %2159 = vmatprep.subr.bf16.mxu0 0
        %2160 = vmatpush1.bf16.msra.mxu0 0
        %2161 = vmatprep.subr.bf16.mxu0 0
        %2162 = vmatpush1.bf16.msra.mxu0 0
        %2163 = vmatprep.subr.bf16.mxu0 0
        %2164 = vmatpush1.bf16.msra.mxu0 0
        %2165 = vmatprep.subr.bf16.mxu0 0
        %2166 = vmatpush1.bf16.msra.mxu0 0
        %2167 = vmatprep.subr.bf16.mxu0 0
        %2168 = vmatpush1.bf16.msra.mxu0 0
        %2169 = vmatprep.subr.bf16.mxu0 0
        %2170 = vmatpush1.bf16.msra.mxu0 0
        %2171 = vmatprep.subr.bf16.mxu0 0
        %2172 = vmatpush1.bf16.msra.mxu0 0
        %2173 = vmatprep.subr.bf16.mxu0 0
        %2174 = vmatpush1.bf16.msra.mxu0 0
        %2175 = vmatprep.subr.bf16.mxu0 0
        %2176 = vmatpush1.bf16.msra.mxu0 0
        %2177 = vmatprep.subr.bf16.mxu0 0
        %2178 = vmatpush1.bf16.msra.mxu0 0
        %2179 = vmatprep.mubr.bf16.mxu0 0
        %2180 = vmatmul.mubr.bf16.gmra.mrb[0].mxu0 %v2145
        %v2181 = vpop.f32.mrb[0].mxu0
        %v2182 = vadd.f32 0.0, %v2181
        %v2183 = vpop.f32.mrb[0].mxu0
        %v2184 = vpop.f32.mrb[0].mxu0
        %v2185 = vpop.f32.mrb[0].mxu0
        %2186 = vdwg.mxu0
        %2189 = vrot.lane.b32.xlu0 %v981, 112
        %v2190 = vpop.permute.xlu0 %2189
        %2191 = vrot.lane.b32.xlu0 %v982, 112
        %v2192 = vpop.permute.xlu0 %2191
        %v2196 = vsel %vm515, %v2135, 0
        %2198 = vmatprep.subr.bf16.mxu0 0
        %2199 = vmatpush1.bf16.msra.mxu0 %v2190
        %2200 = vmatprep.subr.bf16.mxu0 0
        %2201 = vmatpush1.bf16.msra.mxu0 %v2192
        %2202 = vmatprep.subr.bf16.mxu0 0
        %2203 = vmatpush1.bf16.msra.mxu0 0
        %2204 = vmatprep.subr.bf16.mxu0 0
        %2205 = vmatpush1.bf16.msra.mxu0 0
        %2206 = vmatprep.subr.bf16.mxu0 0
        %2207 = vmatpush1.bf16.msra.mxu0 0
        %2208 = vmatprep.subr.bf16.mxu0 0
        %2209 = vmatpush1.bf16.msra.mxu0 0
        %2210 = vmatprep.subr.bf16.mxu0 0
        %2211 = vmatpush1.bf16.msra.mxu0 0
        %2212 = vmatprep.subr.bf16.mxu0 0
        %2213 = vmatpush1.bf16.msra.mxu0 0
        %2214 = vmatprep.subr.bf16.mxu0 0
        %2215 = vmatpush1.bf16.msra.mxu0 0
        %2216 = vmatprep.subr.bf16.mxu0 0
        %2217 = vmatpush1.bf16.msra.mxu0 0
        %2218 = vmatprep.subr.bf16.mxu0 0
        %2219 = vmatpush1.bf16.msra.mxu0 0
        %2220 = vmatprep.subr.bf16.mxu0 0
        %2221 = vmatpush1.bf16.msra.mxu0 0
        %2222 = vmatprep.subr.bf16.mxu0 0
        %2223 = vmatpush1.bf16.msra.mxu0 0
        %2224 = vmatprep.subr.bf16.mxu0 0
        %2225 = vmatpush1.bf16.msra.mxu0 0
        %2226 = vmatprep.subr.bf16.mxu0 0
        %2227 = vmatpush1.bf16.msra.mxu0 0
        %2228 = vmatprep.subr.bf16.mxu0 0
        %2229 = vmatpush1.bf16.msra.mxu0 0
        %2230 = vmatprep.mubr.bf16.mxu0 0
        %2231 = vmatmul.mubr.bf16.gmra.mrb[0].mxu0 %v2196
        %v2232 = vpop.f32.mrb[0].mxu0
        %v2233 = vadd.f32 0.0, %v2232
        %v2234 = vpop.f32.mrb[0].mxu0
        %v2235 = vpop.f32.mrb[0].mxu0
        %v2236 = vpop.f32.mrb[0].mxu0
        %2237 = vdwg.mxu0
        %2246 = vrot.lane.b32.xlu0 %v2059, 16
        %v2247 = vpop.permute.xlu0 %2246
        %2248 = vrot.lane.b32.xlu0 %v2062, 16
        %v2249 = vpop.permute.xlu0 %2248
        %2250 = vrot.lane.b32.xlu0 %v2067, 16
        %v2251 = vpop.permute.xlu0 %2250
        %2252 = vrot.lane.b32.xlu0 %v2070, 16
        %v2253 = vpop.permute.xlu0 %2252
        %2254 = vrot.lane.b32.xlu0 %v2120, 16
        %v2255 = vpop.permute.xlu0 %2254
        %2256 = vrot.lane.b32.xlu0 %v2123, 16
        %v2257 = vpop.permute.xlu0 %2256
        %2258 = vrot.lane.b32.xlu0 %v2128, 16
        %v2259 = vpop.permute.xlu0 %2258
        %2260 = vrot.lane.b32.xlu0 %v2131, 16
        %v2261 = vpop.permute.xlu0 %2260
        %v2270 = vsel %vm1057, %v1628, %v2247
        %v2271 = vsel %vm1057, %v1631, %v2249
        %v2272 = vsel %vm1057, %v1636, %v2251
        %v2273 = vsel %vm1057, %v1639, %v2253
        %v2274 = vsel %vm1057, %v1686, %v2255
        %v2275 = vsel %vm1057, %v1689, %v2257
        %v2276 = vsel %vm1057, %v1694, %v2259
        %v2277 = vsel %vm1057, %v1697, %v2261
        %v2278 = vpack.c.bf16 %v2271, %v2270
        %v2279 = vpack.c.bf16 %v2273, %v2272
        %v2280 = vpack.c.bf16 %v2275, %v2274
        %v2281 = vpack.c.bf16 %v2277, %v2276
        %2284 = vrot.lane.b32.xlu0 %v2182, 16
        %v2285 = vpop.permute.xlu0 %2284
        %2286 = vrot.lane.b32.xlu0 %v2233, 16
        %v2287 = vpop.permute.xlu0 %2286
        %v2290 = vsel %vm1057, %v1740, %v2285
        %v2291 = vsel %vm1057, %v1783, %v2287
        %v2292 = vpack.c.bf16 %v2290, %v2290
        %v2293 = vpack.c.bf16 %v2291, %v2291
        %v2294 = vpack.c.bf16 %v508, %v507
        %v2295 = vpack.c.bf16 %v510, %v509
        %v2296 = vpack.c.bf16 %v512, %v511
        %v2297 = vpack.c.bf16 %v514, %v513
        %v2299 = vsel %vm515, %v2278, 0
        %v2302 = vsel %vm515, %v2279, 0
        %v2305 = vsel %vm515, %v2280, 0
        %v2308 = vsel %vm515, %v2281, 0
        %2310 = vmatprep.subr.bf16.mxu0 0
        %2311 = vmatpush1.bf16.msra.mxu0 %v2294
        %2312 = vmatprep.subr.bf16.mxu0 0
        %2313 = vmatpush1.bf16.msra.mxu0 %v2295
        %2314 = vmatprep.subr.bf16.mxu0 0
        %2315 = vmatpush1.bf16.msra.mxu0 0
        %2316 = vmatprep.subr.bf16.mxu0 0
        %2317 = vmatpush1.bf16.msra.mxu0 0
        %2318 = vmatprep.subr.bf16.mxu0 0
        %2319 = vmatpush1.bf16.msra.mxu0 0
        %2320 = vmatprep.subr.bf16.mxu0 0
        %2321 = vmatpush1.bf16.msra.mxu0 0
        %2322 = vmatprep.subr.bf16.mxu0 0
        %2323 = vmatpush1.bf16.msra.mxu0 0
        %2324 = vmatprep.subr.bf16.mxu0 0
        %2325 = vmatpush1.bf16.msra.mxu0 0
        %2326 = vmatprep.subr.bf16.mxu0 0
        %2327 = vmatpush1.bf16.msra.mxu0 0
        %2328 = vmatprep.subr.bf16.mxu0 0
        %2329 = vmatpush1.bf16.msra.mxu0 0
        %2330 = vmatprep.subr.bf16.mxu0 0
        %2331 = vmatpush1.bf16.msra.mxu0 0
        %2332 = vmatprep.subr.bf16.mxu0 0
        %2333 = vmatpush1.bf16.msra.mxu0 0
        %2334 = vmatprep.subr.bf16.mxu0 0
        %2335 = vmatpush1.bf16.msra.mxu0 0
        %2336 = vmatprep.subr.bf16.mxu0 0
        %2337 = vmatpush1.bf16.msra.mxu0 0
        %2338 = vmatprep.subr.bf16.mxu0 0
        %2339 = vmatpush1.bf16.msra.mxu0 0
        %2340 = vmatprep.subr.bf16.mxu0 0
        %2341 = vmatpush1.bf16.msra.mxu0 0
        %2342 = vmatprep.mubr.bf16.mxu0 0
        %2343 = vmatmul.mubr.bf16.gmra.mrb[0].mxu0 %v2299
        %v2344 = vpop.f32.mrb[0].mxu0
        %v2345 = vadd.f32 0.0, %v2344
        %v2346 = vpop.f32.mrb[0].mxu0
        %v2347 = vpop.f32.mrb[0].mxu0
        %v2348 = vadd.f32 0.0, %v2347
        %v2349 = vpop.f32.mrb[0].mxu0
        %2350 = vmatprep.mubr.bf16.mxu0 0
        %2351 = vmatmul.mubr.bf16.gmra.mrb[0].mxu0 %v2302
        %v2352 = vpop.f32.mrb[0].mxu0
        %v2353 = vadd.f32 0.0, %v2352
        %v2354 = vpop.f32.mrb[0].mxu0
        %v2355 = vpop.f32.mrb[0].mxu0
        %v2356 = vadd.f32 0.0, %v2355
        %v2357 = vpop.f32.mrb[0].mxu0
        %2358 = vmatprep.mubr.bf16.mxu0 0
        %2359 = vmatmul.mubr.bf16.gmra.mrb[0].mxu0 %v2305
        %v2360 = vpop.f32.mrb[0].mxu0
        %v2361 = vadd.f32 0.0, %v2360
        %v2362 = vpop.f32.mrb[0].mxu0
        %v2363 = vpop.f32.mrb[0].mxu0
        %v2364 = vadd.f32 0.0, %v2363
        %v2365 = vpop.f32.mrb[0].mxu0
        %2366 = vmatprep.mubr.bf16.mxu0 0
        %2367 = vmatmul.mubr.bf16.gmra.mrb[0].mxu0 %v2308
        %v2368 = vpop.f32.mrb[0].mxu0
        %v2369 = vadd.f32 0.0, %v2368
        %v2370 = vpop.f32.mrb[0].mxu0
        %v2371 = vpop.f32.mrb[0].mxu0
        %v2372 = vadd.f32 0.0, %v2371
        %v2373 = vpop.f32.mrb[0].mxu0
        %2374 = vdwg.mxu0
        %v2377 = vunpack.c.l.b16 %v2292
        %v2378 = vunpack.c.l.b16 %v2293
        %v2379 = vpack.c.b16 %v2378, %v2377
        %v2381 = vsel %vm515, %v2379, 0
        %2383 = vmatprep.subr.bf16.mxu0 0
        %2384 = vmatpush1.bf16.msra.mxu0 %v2296
        %2385 = vmatprep.subr.bf16.mxu0 0
        %2386 = vmatpush1.bf16.msra.mxu0 %v2297
        %2387 = vmatprep.subr.bf16.mxu0 0
        %2388 = vmatpush1.bf16.msra.mxu0 0
        %2389 = vmatprep.subr.bf16.mxu0 0
        %2390 = vmatpush1.bf16.msra.mxu0 0
        %2391 = vmatprep.subr.bf16.mxu0 0
        %2392 = vmatpush1.bf16.msra.mxu0 0
        %2393 = vmatprep.subr.bf16.mxu0 0
        %2394 = vmatpush1.bf16.msra.mxu0 0
        %2395 = vmatprep.subr.bf16.mxu0 0
        %2396 = vmatpush1.bf16.msra.mxu0 0
        %2397 = vmatprep.subr.bf16.mxu0 0
        %2398 = vmatpush1.bf16.msra.mxu0 0
        %2399 = vmatprep.subr.bf16.mxu0 0
        %2400 = vmatpush1.bf16.msra.mxu0 0
        %2401 = vmatprep.subr.bf16.mxu0 0
        %2402 = vmatpush1.bf16.msra.mxu0 0
        %2403 = vmatprep.subr.bf16.mxu0 0
        %2404 = vmatpush1.bf16.msra.mxu0 0
        %2405 = vmatprep.subr.bf16.mxu0 0
        %2406 = vmatpush1.bf16.msra.mxu0 0
        %2407 = vmatprep.subr.bf16.mxu0 0
        %2408 = vmatpush1.bf16.msra.mxu0 0
        %2409 = vmatprep.subr.bf16.mxu0 0
        %2410 = vmatpush1.bf16.msra.mxu0 0
        %2411 = vmatprep.subr.bf16.mxu0 0
        %2412 = vmatpush1.bf16.msra.mxu0 0
        %2413 = vmatprep.subr.bf16.mxu0 0
        %2414 = vmatpush1.bf16.msra.mxu0 0
        %2415 = vmatprep.mubr.bf16.mxu0 0
        %2416 = vmatmul.mubr.bf16.gmra.mrb[0].mxu0 %v2381
        %v2417 = vpop.f32.mrb[0].mxu0
        %v2418 = vadd.f32 0.0, %v2417
        %v2419 = vpop.f32.mrb[0].mxu0
        %v2420 = vpop.f32.mrb[0].mxu0
        %v2421 = vadd.f32 0.0, %v2420
        %v2422 = vpop.f32.mrb[0].mxu0
        %2423 = vdwg.mxu0
        %v2424 = vlaneseq
        %v2425 = vshrl.u32 %v2424, 7
        %v2426 = vsub.s32 4, %v2425
        %v2427 = vrot.slane %v489, %v2426
        %v2428 = vadd.f32 %v2345, %v2427
        %v2429 = vadd.f32 %v2348, %v2427
        %v2430 = vadd.f32 %v2353, %v2427
        %v2431 = vadd.f32 %v2356, %v2427
        %v2432 = vadd.f32 %v2361, %v2427
        %v2433 = vadd.f32 %v2364, %v2427
        %v2434 = vadd.f32 %v2369, %v2427
        %v2435 = vadd.f32 %v2372, %v2427
        %v2436 = vlaneseq
        %v2437 = vshrl.u32 %v2436, 7
        %v2438 = vsub.s32 5, %v2437
        %v2439 = vrot.slane %v489, %v2438
        %v2440 = vadd.f32 %v2418, %v2439
        %v2441 = vadd.f32 %v2421, %v2439
        %v2442 = vlaneseq
        %v2443 = vshrl.u32 %v2442, 7
        %v2444 = vsub.s32 6, %v2443
        %v2445 = vrot.slane %v489, %v2444
        %v2446 = vmul.f32 %v2445, %v2428
        %v2447 = vmul.f32 %v2445, %v2429
        %v2448 = vmul.f32 %v2445, %v2430
        %v2449 = vmul.f32 %v2445, %v2431
        %v2450 = vmul.f32 %v2445, %v2432
        %v2451 = vmul.f32 %v2445, %v2433
        %v2452 = vmul.f32 %v2445, %v2434
        %v2453 = vmul.f32 %v2445, %v2435
        %v2454 = vadd.f32 %v637, %v2446
        %v2455 = vadd.f32 %v638, %v2447
        %v2456 = vadd.f32 %v639, %v2448
        %v2457 = vadd.f32 %v640, %v2449
        %v2458 = vadd.f32 %v641, %v2450
        %v2459 = vadd.f32 %v642, %v2451
        %v2460 = vadd.f32 %v643, %v2452
        %v2461 = vadd.f32 %v644, %v2453
        %2462 = vst.msk [vmem:[#allocation10] sm:$0xff] %vm515, %v2454
        %2463 = vst.msk [vmem:[#allocation10 + $0x8] sm:$0xff] %vm515, %v2455
        %2464 = vst.msk [vmem:[#allocation10 + $0x10] sm:$0xff] %vm515, %v2456
        %2465 = vst.msk [vmem:[#allocation10 + $0x18] sm:$0xff] %vm515, %v2457
        %2466 = vst.msk [vmem:[#allocation10 + $0x20] sm:$0xff] %vm515, %v2458
        %2467 = vst.msk [vmem:[#allocation10 + $0x28] sm:$0xff] %vm515, %v2459
        %2468 = vst.msk [vmem:[#allocation10 + $0x30] sm:$0xff] %vm515, %v2460
        %2469 = vst.msk [vmem:[#allocation10 + $0x38] sm:$0xff] %vm515, %v2461
        %v2470 = vlaneseq
        %v2471 = vshrl.u32 %v2470, 7
        %v2472 = vsub.s32 7, %v2471
        %v2473 = vrot.slane %v489, %v2472
        %v2474 = vmul.f32 %v2473, %v2440
        %v2475 = vmul.f32 %v2473, %v2441
        %v2476 = vadd.f32 %v681, %v2474
        %v2477 = vadd.f32 %v682, %v2475
        %2478 = vst.msk [vmem:[#allocation11] sm:$0xff] %vm515, %v2476
        %2479 = vst.msk [vmem:[#allocation11 + $0x8] sm:$0xff] %vm515, %v2477
        // Predicated region
        $region77: #{tpu_custom_call.1} parent=51 // pred_check
          %p2480 = pneg %p226
        $region78: #{tpu_custom_call.1} parent=51 // pred_check_branch
          %2482 = sbr.rel (%p2480) target = $region80
        $region79: #{tpu_custom_call.1} parent=51 // pred_region
          %s2484 = ssub.s32 1024, 1024
          %2485 = vsyncadd [#allocation4], %s2484
          %s2486 = sshll.u32 [#allocation10], 4
          %s2487 = int_to_ptr.vmem [resolvable:$true] %s2486
          %2492 = dma.vmem_to_hbm [thread:$0]  %s2487, 1024, %s8, [#allocation4], 128, 128, 8
        $region80: #{tpu_custom_call.1} parent=51 // pred_fallthru
          _
        // Predicated region
        $region81: #{tpu_custom_call.1} parent=51 // pred_check
          %p2493 = pneg %p247
        $region82: #{tpu_custom_call.1} parent=51 // pred_check_branch
          %2495 = sbr.rel (%p2493) target = $region84
        $region83: #{tpu_custom_call.1} parent=51 // pred_region
          %s2497 = ssub.s32 256, 256
          %2498 = vsyncadd [#allocation12], %s2497
          %s2499 = sshll.u32 [#allocation11], 4
          %s2500 = int_to_ptr.vmem [resolvable:$true] %s2499
          %2505 = dma.vmem_to_hbm [thread:$0]  %s2500, 256, %s9, [#allocation12], 128, 128, 8
        $region84: #{tpu_custom_call.1} parent=51 // pred_fallthru
          _
        // Predicated region
        $region85: #{tpu_custom_call.1} parent=51 // pred_check
          %p2506 = pneg %p226
        $region86: #{tpu_custom_call.1} parent=51 // pred_check_branch
          %2508 = sbr.rel (%p2506) target = $region88
        $region87: #{tpu_custom_call.1} parent=51 // pred_region
          %2509 = dma.done [#allocation4], 1024
        $region88: #{tpu_custom_call.1} parent=51 // pred_fallthru
          _
        // Predicated region
        $region89: #{tpu_custom_call.1} parent=51 // pred_check
          %p2510 = pneg %p247
        $region90: #{tpu_custom_call.1} parent=51 // pred_check_branch
          %2512 = sbr.rel (%p2510) target = $region92
        $region91: #{tpu_custom_call.1} parent=51 // pred_region
          %2513 = dma.done [#allocation12], 256
        $region92: #{tpu_custom_call.1} parent=51 // pred_fallthru
          _
      $region52: #{tpu_custom_call.1} parent=5 // pred_fallthru
        _
      %p2514 = scmp.le.s32.totalorder 2, %s20
      // Predicated region
      $region93: #{tpu_custom_call.1} parent=5 // pred_check
        %p2515 = pneg %p2514
      $region94: #{tpu_custom_call.1} parent=5 // pred_check_branch
        %2517 = sbr.rel (%p2515) target = $region96
      $region95: #{tpu_custom_call.1} parent=5 // pred_region
        %s2518 = ssub.s32 %s20, 2
      $region96: #{tpu_custom_call.1} parent=5 // pred_fallthru
        _
    $region6: #{tpu_custom_call.1} parent=1 // loop_footer
      %s24 = sadd.s32 1, %s20
    $region7: #{tpu_custom_call.1} parent=1 // loop_footer_branch
      %19 = sbr.rel target = $region3
    $region8: #{tpu_custom_call.1} parent=1 // loop_exit
      _
    %2519 = vsyncpa [#allocation3], 1
    %s2520 = scalar_lea.sflag [#allocation3], 1
    %2521 = vsyncpa %s2520, 1
    %2522 = vsyncpa [#allocation6], 1
    %2523 = vsyncpa [#allocation4], 1
    %s2524 = scalar_lea.sflag [#allocation4], 1
    %2525 = vsyncpa %s2524, 1
    %2526 = vsyncpa [#allocation12], 1

</llo_original>
